<compile_context>
chip_gen: v7x
topology: tpu7x:2x2x1
jax: 0.10.0
libtpu: 0.0.40
codegen_flags: <defaults>
</compile_context>

<pallas_src>
import jax
import jax.numpy as jnp
from jax.experimental import pallas as pl
from jax.experimental.pallas import tpu as pltpu

COMPUTE_DTYPE = jnp.bfloat16   # MXU operand / inter-layer activation storage dtype
STAT_DTYPE = jnp.float32       # accumulation / statistics / final Linear dtype


# ----------------------------- per-generation budgets -----------------------------

def _vmem_limit_bytes():
    """~3/4 of physical VMEM, capped at 100 MiB (=> ~96 MiB on 128 MiB v5e/v6e,
    ~48 MiB on 64 MiB v7x) -- per-generation budget with pipeline headroom."""
    try:
        cap = int(pltpu.get_tpu_info().vmem_capacity_bytes)
    except Exception:
        cap = 128 * 1024 * 1024
    return max(32 * 1024 * 1024, min((cap * 3) // 4, 100 * 1024 * 1024))


def _compiler_params():
    return pltpu.CompilerParams(
        dimension_semantics=("parallel",),          # megacore / dual-TC batch sharding
        vmem_limit_bytes=_vmem_limit_bytes())


# Weights never change across the batch grid: place them whole in VMEM
# (fetched once, no per-step double-buffering).
_WEIGHT_SPEC = pl.BlockSpec(memory_space=pltpu.MemorySpace.VMEM)


# ----------------------------- in-kernel helpers -----------------------------

def _conv3x3_relu_fused(xp_ref, w_ref):
    """Fused-K 3x3 conv (stride 1, zero-bordered input) + ReLU for one batch element.

    xp_ref: (1, H+2, W+2, Cin)  COMPUTE_DTYPE, zero border already present
    w_ref:  (9*Cin, Cout)       COMPUTE_DTYPE, K stacked (kh-major, kw, ci)
    returns (H*W, Cout) float32 activation.
    """
    _, hp2, wp2, cin = xp_ref.shape
    h, w = hp2 - 2, wp2 - 2
    # Build the (H*W, 9*Cin) patch matrix once in VMEM (the shifted-slice copies are
    # paid once), then a single large-K MXU GEMM with f32 accumulation.
    taps = [xp_ref[0, kh:kh + h, kw:kw + w, :]
            for kh in range(3) for kw in range(3)]
    patches = jnp.concatenate(taps, axis=-1).reshape(h * w, 9 * cin)
    y = jnp.dot(patches, w_ref[...], preferred_element_type=jnp.float32)
    return jnp.maximum(y, 0.0)


def _mean_std(y, n):
    """Single-pass per-channel spatial mean / unbiased std (ddof=1, torch .std).

    y: (n, Cout) float32.  Sum / sum-of-squares accumulated in f32.
    """
    s = jnp.sum(y, axis=0, keepdims=True)
    ss = jnp.sum(y * y, axis=0, keepdims=True)
    mean = s / n
    var = jnp.maximum(ss - s * mean, 0.0) / (n - 1)
    return mean, jnp.sqrt(var)


def _store_padded(o_ref, y):
    """Write y into the interior of the zero-bordered output block (pad-free chaining).

    o_ref: (1, H+2, W+2, Cout) COMPUTE_DTYPE;  y: (H*W, Cout) float32.
    """
    _, hp2, wp2, cout = o_ref.shape
    h, w = hp2 - 2, wp2 - 2
    zrow = jnp.zeros((1, 1, wp2, cout), o_ref.dtype)
    zcol = jnp.zeros((1, h, 1, cout), o_ref.dtype)
    o_ref[:, 0:1, :, :] = zrow
    o_ref[:, hp2 - 1:hp2, :, :] = zrow
    o_ref[:, 1:h + 1, 0:1, :] = zcol
    o_ref[:, 1:h + 1, wp2 - 1:wp2, :] = zcol
    o_ref[:, 1:h + 1, 1:w + 1, :] = y.reshape(1, h, w, cout).astype(o_ref.dtype)


# ----------------------------- Pallas kernels -----------------------------

def conv3x3_relu_pad_stem_kernel(xp_ref, w_ref, o_ref):
    """Stem conv + ReLU -> zero-bordered map.  Not captured -> no stats pass.

    The stem's contraction (K = 9*in_ch <= 36) is tiny whichever way it is laid out,
    so the simple per-tap accumulation is kept; captured layers use the fused-K GEMM.
    w_ref: (9, Cin, Cout).
    """
    _, hp2, wp2, cin = xp_ref.shape
    h, w = hp2 - 2, wp2 - 2
    cout = o_ref.shape[3]
    acc = jnp.zeros((h * w, cout), jnp.float32)
    for kh in range(3):
        for kw in range(3):
            tap = xp_ref[0, kh:kh + h, kw:kw + w, :].reshape(h * w, cin)
            acc = acc + jnp.dot(tap, w_ref[kh * 3 + kw],
                                preferred_element_type=jnp.float32)
    _store_padded(o_ref, jnp.maximum(acc, 0.0))


def conv3x3_relu_pad_stats_kernel(xp_ref, w_ref, o_ref, mean_ref, std_ref):
    """Captured mid layer: fused-K conv + ReLU -> zero-bordered map + spatial mean/std
    computed on the VMEM-resident f32 activation (single pass, never re-read)."""
    _, hp2, wp2, cout = o_ref.shape
    n = (hp2 - 2) * (wp2 - 2)
    y = _conv3x3_relu_fused(xp_ref, w_ref)                        # (n, Cout) f32
    mean, std = _mean_std(y, n)
    mean_ref[...] = mean.reshape(1, 1, cout)
    std_ref[...] = std.reshape(1, 1, cout)
    _store_padded(o_ref, y)


def conv3x3_relu_stats_linear_kernel(xp_ref, pmean_ref, pstd_ref, w_ref,
                                     wlt_ref, b_ref, o_ref):
    """Last captured layer: fused-K conv + ReLU + mean/std, fused with the
    spectral-norm Linear epilogue.  The widest feature map never touches HBM.

    wlt_ref: (F, out_ftrs) f32 with rows ordered [m1|m2, m3, s1|s2, s3]
    (the module's torch.cat(means + stds) column order, transposed).
    """
    c_last = w_ref.shape[1]
    c_prev = pmean_ref.shape[2]
    n = (xp_ref.shape[1] - 2) * (xp_ref.shape[2] - 2)
    out_ftrs = b_ref.shape[1]

    y = _conv3x3_relu_fused(xp_ref, w_ref)                        # (n, c_last) f32
    m3, s3 = _mean_std(y, n)                                      # (1, c_last) f32
    pm = pmean_ref[...].reshape(1, c_prev)
    ps = pstd_ref[...].reshape(1, c_prev)

    out = jnp.dot(pm, wlt_ref[0:c_prev, :],
                  preferred_element_type=jnp.float32)
    out = out + jnp.dot(m3, wlt_ref[c_prev:c_prev + c_last, :],
                        preferred_element_type=jnp.float32)
    out = out + jnp.dot(ps, wlt_ref[c_prev + c_last:2 * c_prev + c_last, :],
                        preferred_element_type=jnp.float32)
    out = out + jnp.dot(s3, wlt_ref[2 * c_prev + c_last:2 * c_prev + 2 * c_last, :],
                        preferred_element_type=jnp.float32)
    o_ref[...] = (out + b_ref[...]).reshape(1, 1, out_ftrs)


# ----------------------------- kernel wrappers -----------------------------

def _weight_matrix(w_hwio):
    """(3,3,Cin,Cout) -> (9*Cin, Cout) MXU-operand weight (K-stacked, bf16)."""
    kh, kw, cin, cout = w_hwio.shape
    return w_hwio.reshape(kh * kw * cin, cout).astype(COMPUTE_DTYPE)


def conv3x3_relu_pad_stem(xp, w_hwio):
    """Stem conv: zero-bordered map in -> zero-bordered map out (no stats)."""
    n, hp2, wp2, cin = xp.shape
    cout = w_hwio.shape[-1]
    w_taps = w_hwio.reshape(9, cin, cout).astype(COMPUTE_DTYPE)
    return pl.pallas_call(
        conv3x3_relu_pad_stem_kernel,
        out_shape=jax.ShapeDtypeStruct((n, hp2, wp2, cout), COMPUTE_DTYPE),
        grid=(n,),
        in_specs=[pl.BlockSpec((1, hp2, wp2, cin), lambda i: (i, 0, 0, 0)),
                  _WEIGHT_SPEC],
        out_specs=pl.BlockSpec((1, hp2, wp2, cout), lambda i: (i, 0, 0, 0)),
        compiler_params=_compiler_params(),
    )(xp, w_taps)


def conv3x3_relu_pad_stats(xp, w_hwio):
    """Captured conv: zero-bordered map out + fused per-channel spatial mean / std."""
    n, hp2, wp2, cin = xp.shape
    cout = w_hwio.shape[-1]
    return pl.pallas_call(
        conv3x3_relu_pad_stats_kernel,
        out_shape=(jax.ShapeDtypeStruct((n, hp2, wp2, cout), COMPUTE_DTYPE),
                   jax.ShapeDtypeStruct((n, 1, cout), STAT_DTYPE),
                   jax.ShapeDtypeStruct((n, 1, cout), STAT_DTYPE)),
        grid=(n,),
        in_specs=[pl.BlockSpec((1, hp2, wp2, cin), lambda i: (i, 0, 0, 0)),
                  _WEIGHT_SPEC],
        out_specs=(pl.BlockSpec((1, hp2, wp2, cout), lambda i: (i, 0, 0, 0)),
                   pl.BlockSpec((1, 1, cout), lambda i: (i, 0, 0)),
                   pl.BlockSpec((1, 1, cout), lambda i: (i, 0, 0))),
        compiler_params=_compiler_params(),
    )(xp, _weight_matrix(w_hwio))


def conv3x3_relu_stats_linear(xp, prev_mean, prev_std, w_hwio, w_lin_sn, b_lin):
    """Final captured conv fused with MEAN|STD concat + spectral-norm Linear."""
    n, hp2, wp2, cin = xp.shape
    c_prev = prev_mean.shape[-1]
    out_ftrs = w_lin_sn.shape[0]
    wlt = w_lin_sn.T.astype(STAT_DTYPE)                 # (F, out_ftrs)
    bias = b_lin.reshape(1, out_ftrs).astype(STAT_DTYPE)
    out = pl.pallas_call(
        conv3x3_relu_stats_linear_kernel,
        out_shape=jax.ShapeDtypeStruct((n, 1, out_ftrs), STAT_DTYPE),
        grid=(n,),
        in_specs=[pl.BlockSpec((1, hp2, wp2, cin), lambda i: (i, 0, 0, 0)),
                  pl.BlockSpec((1, 1, c_prev), lambda i: (i, 0, 0)),
                  pl.BlockSpec((1, 1, c_prev), lambda i: (i, 0, 0)),
                  _WEIGHT_SPEC,          # conv weight (9*Cin, Cout)
                  _WEIGHT_SPEC,          # spectral-normalized Linear weight (F, out)
                  _WEIGHT_SPEC],         # bias (1, out)
        out_specs=pl.BlockSpec((1, 1, out_ftrs), lambda i: (i, 0, 0)),
        compiler_params=_compiler_params(),
    )(xp, prev_mean, prev_std, _weight_matrix(w_hwio), wlt, bias)
    return out[:, 0, :]


# ----------------------------- JAX glue -----------------------------

def spectral_norm_fold(w, key, n_iters=20):
    """Fold spectral norm into the weight (PyTorch eval path: W / sigma)."""
    u = jax.random.normal(key, (w.shape[0],), jnp.float32)
    u = u / (jnp.linalg.norm(u) + 1e-12)
    v = jnp.zeros((w.shape[1],), jnp.float32)
    for _ in range(n_iters):
        v = w.T @ u
        v = v / (jnp.linalg.norm(v) + 1e-12)
        u = w @ v
        u = u / (jnp.linalg.norm(u) + 1e-12)
    sigma = u @ (w @ v)
    return w / sigma


def features_stats_forward(x_nchw, params):
    """FeaturesStats.forward with ftrs_stats = MEAN | STD and out_ftrs set."""
    x = jnp.transpose(x_nchw, (0, 2, 3, 1)).astype(jnp.float32)       # NHWC
    # The only host-side pad in the whole chain is on the tiny network input; every
    # layer kernel emits an already zero-bordered map for the next layer.
    xp = jnp.pad(x, ((0, 0), (1, 1), (1, 1), (0, 0))).astype(COMPUTE_DTYPE)

    # ---- stand-in feature source (PretrainedVGGSource.get_ftrs) ----
    y1p = conv3x3_relu_pad_stem(xp, params["wc1"])                    # stem, not captured
    y2p, m1, s1 = conv3x3_relu_pad_stats(y1p, params["wc2"])          # capture layer 1
    y3p, m2, s2 = conv3x3_relu_pad_stats(y2p, params["wc3"])          # capture layer 2

    # ---- FeaturesStats body: MEAN|STD concat + spectral-norm Linear, fused into the
    # ---- last captured conv (its feature map never reaches HBM).
    prev_mean = jnp.concatenate([m1, m2], axis=-1)                    # (N, 1, c2+c3), tiny
    prev_std = jnp.concatenate([s1, s2], axis=-1)
    return conv3x3_relu_stats_linear(y3p, prev_mean, prev_std,
                                     params["wc4"], params["w_lin_sn"],
                                     params["b_lin"])


# ----------------------------- pure-JAX reference -----------------------------

def reference(x_nchw, params):
    """Reference mirroring the kernel path's production numerics exactly (bf16 MXU
    operands / bf16 inter-layer activations, f32 accumulation, stats and Linear)."""
    x = jnp.transpose(x_nchw, (0, 2, 3, 1)).astype(jnp.float32)

    def conv_relu(v, w):
        y = jax.lax.conv_general_dilated(
            v.astype(COMPUTE_DTYPE), w.astype(COMPUTE_DTYPE), (1, 1),
            ((1, 1), (1, 1)), dimension_numbers=("NHWC", "HWIO", "NHWC"),
            preferred_element_type=jnp.float32)
        return jnp.maximum(y, 0.0)

    y1 = conv_relu(x, params["wc1"])
    f1 = conv_relu(y1, params["wc2"])
    f2 = conv_relu(f1, params["wc3"])
    f3 = conv_relu(f2, params["wc4"])

    means = [f.mean(axis=(1, 2)) for f in (f1, f2, f3)]
    stds = [jnp.std(f, axis=(1, 2), ddof=1) for f in (f1, f2, f3)]
    stats = jnp.concatenate(means + stds, axis=1)
    return stats @ params["w_lin_sn"].T + params["b_lin"]


# ----------------------------- main -----------------------------

if __name__ == "__main__":
    N, in_ch, in_sz = 2, 4, 16
    # Lane-aligned (multiple-of-128) captured channel widths, matching real VGG
    # capture widths and keeping feature stores / K-concatenation lane-dense.
    c1, c2, c3, c4 = 128, 128, 256, 256
    out_ftrs = 32
    lin_in_ftrs = 2 * (c2 + c3 + c4)            # MEAN + STD over captured layers

    keys = jax.random.split(jax.random.PRNGKey(0), 8)
    params = {
        "wc1": 0.1 * jax.random.normal(keys[0], (3, 3, in_ch, c1), jnp.float32),
        "wc2": 0.1 * jax.random.normal(keys[1], (3, 3, c1, c2), jnp.float32),
        "wc3": 0.1 * jax.random.normal(keys[2], (3, 3, c2, c3), jnp.float32),
        "wc4": 0.1 * jax.random.normal(keys[3], (3, 3, c3, c4), jnp.float32),
        "b_lin": 0.1 * jax.random.normal(keys[5], (out_ftrs,), jnp.float32),
    }
    w_lin = 0.1 * jax.random.normal(keys[4], (out_ftrs, lin_in_ftrs), jnp.float32)
    params["w_lin_sn"] = spectral_norm_fold(w_lin, keys[6])

    x = jax.random.normal(keys[7], (N, in_ch, in_sz, in_sz), jnp.float32)

    out = jax.block_until_ready(features_stats_forward(x, params))
    ref = reference(x, params)

    assert out.shape == (N, out_ftrs), out.shape
    err = float(jnp.max(jnp.abs(out - ref)))
    assert jnp.allclose(out, ref, atol=1e-2, rtol=1e-2), err

    print("KERNEL_OK")
</pallas_src>

<mosaic_0001>
module attributes {stable_mosaic.version = 11 : i64} {
  func.func @conv3x3_relu_pad_stem_kernel(%arg0: i32, %arg1: memref<1x18x18x4xbf16, #tpu.memory_space<vmem>>, %arg2: memref<9x4x128xbf16, #tpu.memory_space<vmem>>, %arg3: memref<1x18x18x128xbf16, #tpu.memory_space<vmem>>) attributes {dimension_semantics = [#tpu.dimension_semantics<parallel>], iteration_bounds = array<i64: 2>, scalar_prefetch = 0 : i64, scratch_operands = 0 : i64, tpu.core_type = #tpu.core_type<tc>, window_params = [{transform_indices = @transform_0, window_bounds = array<i64: 1, 18, 18, 4>}, {pipeline_mode = #tpu.pipeline_mode<synchronous>, transform_indices = @transform_1, window_bounds = array<i64: 9, 4, 128>}, {transform_indices = @transform_2, window_bounds = array<i64: 1, 18, 18, 128>}]} {
    %cst = arith.constant 0.000000e+00 : f32
    %0 = vector.broadcast %cst : f32 to vector<256x128xf32>
    %c0 = arith.constant 0 : index
    %c0_0 = arith.constant 0 : index
    %c0_1 = arith.constant 0 : index
    %c0_2 = arith.constant 0 : index
    %1 = vector.load %arg1[%c0, %c0_0, %c0_1, %c0_2] : memref<1x18x18x4xbf16, #tpu.memory_space<vmem>>, vector<1x16x16x4xbf16>
    %2 = vector.shape_cast %1 : vector<1x16x16x4xbf16> to vector<16x16x4xbf16>
    %3 = vector.shape_cast %2 : vector<16x16x4xbf16> to vector<256x4xbf16>
    %c0_3 = arith.constant 0 : index
    %c0_4 = arith.constant 0 : index
    %c0_5 = arith.constant 0 : index
    %4 = vector.load %arg2[%c0_3, %c0_4, %c0_5] : memref<9x4x128xbf16, #tpu.memory_space<vmem>>, vector<1x4x128xbf16>
    %5 = vector.shape_cast %4 : vector<1x4x128xbf16> to vector<4x128xbf16>
    %cst_6 = arith.constant dense<0.000000e+00> : vector<256x128xf32>
    %6 = tpu.matmul %3, %5, %cst_6 {dimension_numbers = #tpu.dot_dimension_numbers<[1], [0], [0], [1], [0, 0, 1, 1], [], []>} : vector<256x4xbf16>, vector<4x128xbf16>, vector<256x128xf32> -> vector<256x128xf32>
    %7 = arith.addf %0, %6 : vector<256x128xf32>
    %c0_7 = arith.constant 0 : index
    %c0_8 = arith.constant 0 : index
    %c1 = arith.constant 1 : index
    %c0_9 = arith.constant 0 : index
    %8 = vector.load %arg1[%c0_7, %c0_8, %c1, %c0_9] : memref<1x18x18x4xbf16, #tpu.memory_space<vmem>>, vector<1x16x16x4xbf16>
    %9 = vector.shape_cast %8 : vector<1x16x16x4xbf16> to vector<16x16x4xbf16>
    %10 = vector.shape_cast %9 : vector<16x16x4xbf16> to vector<256x4xbf16>
    %c1_10 = arith.constant 1 : index
    %c0_11 = arith.constant 0 : index
    %c0_12 = arith.constant 0 : index
    %11 = vector.load %arg2[%c1_10, %c0_11, %c0_12] : memref<9x4x128xbf16, #tpu.memory_space<vmem>>, vector<1x4x128xbf16>
    %12 = vector.shape_cast %11 : vector<1x4x128xbf16> to vector<4x128xbf16>
    %cst_13 = arith.constant dense<0.000000e+00> : vector<256x128xf32>
    %13 = tpu.matmul %10, %12, %cst_13 {dimension_numbers = #tpu.dot_dimension_numbers<[1], [0], [0], [1], [0, 0, 1, 1], [], []>} : vector<256x4xbf16>, vector<4x128xbf16>, vector<256x128xf32> -> vector<256x128xf32>
    %14 = arith.addf %7, %13 : vector<256x128xf32>
    %c0_14 = arith.constant 0 : index
    %c0_15 = arith.constant 0 : index
    %c2 = arith.constant 2 : index
    %c0_16 = arith.constant 0 : index
    %15 = vector.load %arg1[%c0_14, %c0_15, %c2, %c0_16] : memref<1x18x18x4xbf16, #tpu.memory_space<vmem>>, vector<1x16x16x4xbf16>
    %16 = vector.shape_cast %15 : vector<1x16x16x4xbf16> to vector<16x16x4xbf16>
    %17 = vector.shape_cast %16 : vector<16x16x4xbf16> to vector<256x4xbf16>
    %c2_17 = arith.constant 2 : index
    %c0_18 = arith.constant 0 : index
    %c0_19 = arith.constant 0 : index
    %18 = vector.load %arg2[%c2_17, %c0_18, %c0_19] : memref<9x4x128xbf16, #tpu.memory_space<vmem>>, vector<1x4x128xbf16>
    %19 = vector.shape_cast %18 : vector<1x4x128xbf16> to vector<4x128xbf16>
    %cst_20 = arith.constant dense<0.000000e+00> : vector<256x128xf32>
    %20 = tpu.matmul %17, %19, %cst_20 {dimension_numbers = #tpu.dot_dimension_numbers<[1], [0], [0], [1], [0, 0, 1, 1], [], []>} : vector<256x4xbf16>, vector<4x128xbf16>, vector<256x128xf32> -> vector<256x128xf32>
    %21 = arith.addf %14, %20 : vector<256x128xf32>
    %c0_21 = arith.constant 0 : index
    %c1_22 = arith.constant 1 : index
    %c0_23 = arith.constant 0 : index
    %c0_24 = arith.constant 0 : index
    %22 = vector.load %arg1[%c0_21, %c1_22, %c0_23, %c0_24] : memref<1x18x18x4xbf16, #tpu.memory_space<vmem>>, vector<1x16x16x4xbf16>
    %23 = vector.shape_cast %22 : vector<1x16x16x4xbf16> to vector<16x16x4xbf16>
    %24 = vector.shape_cast %23 : vector<16x16x4xbf16> to vector<256x4xbf16>
    %c3 = arith.constant 3 : index
    %c0_25 = arith.constant 0 : index
    %c0_26 = arith.constant 0 : index
    %25 = vector.load %arg2[%c3, %c0_25, %c0_26] : memref<9x4x128xbf16, #tpu.memory_space<vmem>>, vector<1x4x128xbf16>
    %26 = vector.shape_cast %25 : vector<1x4x128xbf16> to vector<4x128xbf16>
    %cst_27 = arith.constant dense<0.000000e+00> : vector<256x128xf32>
    %27 = tpu.matmul %24, %26, %cst_27 {dimension_numbers = #tpu.dot_dimension_numbers<[1], [0], [0], [1], [0, 0, 1, 1], [], []>} : vector<256x4xbf16>, vector<4x128xbf16>, vector<256x128xf32> -> vector<256x128xf32>
    %28 = arith.addf %21, %27 : vector<256x128xf32>
    %c0_28 = arith.constant 0 : index
    %c1_29 = arith.constant 1 : index
    %c1_30 = arith.constant 1 : index
    %c0_31 = arith.constant 0 : index
    %29 = vector.load %arg1[%c0_28, %c1_29, %c1_30, %c0_31] : memref<1x18x18x4xbf16, #tpu.memory_space<vmem>>, vector<1x16x16x4xbf16>
    %30 = vector.shape_cast %29 : vector<1x16x16x4xbf16> to vector<16x16x4xbf16>
    %31 = vector.shape_cast %30 : vector<16x16x4xbf16> to vector<256x4xbf16>
    %c4 = arith.constant 4 : index
    %c0_32 = arith.constant 0 : index
    %c0_33 = arith.constant 0 : index
    %32 = vector.load %arg2[%c4, %c0_32, %c0_33] : memref<9x4x128xbf16, #tpu.memory_space<vmem>>, vector<1x4x128xbf16>
    %33 = vector.shape_cast %32 : vector<1x4x128xbf16> to vector<4x128xbf16>
    %cst_34 = arith.constant dense<0.000000e+00> : vector<256x128xf32>
    %34 = tpu.matmul %31, %33, %cst_34 {dimension_numbers = #tpu.dot_dimension_numbers<[1], [0], [0], [1], [0, 0, 1, 1], [], []>} : vector<256x4xbf16>, vector<4x128xbf16>, vector<256x128xf32> -> vector<256x128xf32>
    %35 = arith.addf %28, %34 : vector<256x128xf32>
    %c0_35 = arith.constant 0 : index
    %c1_36 = arith.constant 1 : index
    %c2_37 = arith.constant 2 : index
    %c0_38 = arith.constant 0 : index
    %36 = vector.load %arg1[%c0_35, %c1_36, %c2_37, %c0_38] : memref<1x18x18x4xbf16, #tpu.memory_space<vmem>>, vector<1x16x16x4xbf16>
    %37 = vector.shape_cast %36 : vector<1x16x16x4xbf16> to vector<16x16x4xbf16>
    %38 = vector.shape_cast %37 : vector<16x16x4xbf16> to vector<256x4xbf16>
    %c5 = arith.constant 5 : index
    %c0_39 = arith.constant 0 : index
    %c0_40 = arith.constant 0 : index
    %39 = vector.load %arg2[%c5, %c0_39, %c0_40] : memref<9x4x128xbf16, #tpu.memory_space<vmem>>, vector<1x4x128xbf16>
    %40 = vector.shape_cast %39 : vector<1x4x128xbf16> to vector<4x128xbf16>
    %cst_41 = arith.constant dense<0.000000e+00> : vector<256x128xf32>
    %41 = tpu.matmul %38, %40, %cst_41 {dimension_numbers = #tpu.dot_dimension_numbers<[1], [0], [0], [1], [0, 0, 1, 1], [], []>} : vector<256x4xbf16>, vector<4x128xbf16>, vector<256x128xf32> -> vector<256x128xf32>
    %42 = arith.addf %35, %41 : vector<256x128xf32>
    %c0_42 = arith.constant 0 : index
    %c2_43 = arith.constant 2 : index
    %c0_44 = arith.constant 0 : index
    %c0_45 = arith.constant 0 : index
    %43 = vector.load %arg1[%c0_42, %c2_43, %c0_44, %c0_45] : memref<1x18x18x4xbf16, #tpu.memory_space<vmem>>, vector<1x16x16x4xbf16>
    %44 = vector.shape_cast %43 : vector<1x16x16x4xbf16> to vector<16x16x4xbf16>
    %45 = vector.shape_cast %44 : vector<16x16x4xbf16> to vector<256x4xbf16>
    %c6 = arith.constant 6 : index
    %c0_46 = arith.constant 0 : index
    %c0_47 = arith.constant 0 : index
    %46 = vector.load %arg2[%c6, %c0_46, %c0_47] : memref<9x4x128xbf16, #tpu.memory_space<vmem>>, vector<1x4x128xbf16>
    %47 = vector.shape_cast %46 : vector<1x4x128xbf16> to vector<4x128xbf16>
    %cst_48 = arith.constant dense<0.000000e+00> : vector<256x128xf32>
    %48 = tpu.matmul %45, %47, %cst_48 {dimension_numbers = #tpu.dot_dimension_numbers<[1], [0], [0], [1], [0, 0, 1, 1], [], []>} : vector<256x4xbf16>, vector<4x128xbf16>, vector<256x128xf32> -> vector<256x128xf32>
    %49 = arith.addf %42, %48 : vector<256x128xf32>
    %c0_49 = arith.constant 0 : index
    %c2_50 = arith.constant 2 : index
    %c1_51 = arith.constant 1 : index
    %c0_52 = arith.constant 0 : index
    %50 = vector.load %arg1[%c0_49, %c2_50, %c1_51, %c0_52] : memref<1x18x18x4xbf16, #tpu.memory_space<vmem>>, vector<1x16x16x4xbf16>
    %51 = vector.shape_cast %50 : vector<1x16x16x4xbf16> to vector<16x16x4xbf16>
    %52 = vector.shape_cast %51 : vector<16x16x4xbf16> to vector<256x4xbf16>
    %c7 = arith.constant 7 : index
    %c0_53 = arith.constant 0 : index
    %c0_54 = arith.constant 0 : index
    %53 = vector.load %arg2[%c7, %c0_53, %c0_54] : memref<9x4x128xbf16, #tpu.memory_space<vmem>>, vector<1x4x128xbf16>
    %54 = vector.shape_cast %53 : vector<1x4x128xbf16> to vector<4x128xbf16>
    %cst_55 = arith.constant dense<0.000000e+00> : vector<256x128xf32>
    %55 = tpu.matmul %52, %54, %cst_55 {dimension_numbers = #tpu.dot_dimension_numbers<[1], [0], [0], [1], [0, 0, 1, 1], [], []>} : vector<256x4xbf16>, vector<4x128xbf16>, vector<256x128xf32> -> vector<256x128xf32>
    %56 = arith.addf %49, %55 : vector<256x128xf32>
    %c0_56 = arith.constant 0 : index
    %c2_57 = arith.constant 2 : index
    %c2_58 = arith.constant 2 : index
    %c0_59 = arith.constant 0 : index
    %57 = vector.load %arg1[%c0_56, %c2_57, %c2_58, %c0_59] : memref<1x18x18x4xbf16, #tpu.memory_space<vmem>>, vector<1x16x16x4xbf16>
    %58 = vector.shape_cast %57 : vector<1x16x16x4xbf16> to vector<16x16x4xbf16>
    %59 = vector.shape_cast %58 : vector<16x16x4xbf16> to vector<256x4xbf16>
    %c8 = arith.constant 8 : index
    %c0_60 = arith.constant 0 : index
    %c0_61 = arith.constant 0 : index
    %60 = vector.load %arg2[%c8, %c0_60, %c0_61] : memref<9x4x128xbf16, #tpu.memory_space<vmem>>, vector<1x4x128xbf16>
    %61 = vector.shape_cast %60 : vector<1x4x128xbf16> to vector<4x128xbf16>
    %cst_62 = arith.constant dense<0.000000e+00> : vector<256x128xf32>
    %62 = tpu.matmul %59, %61, %cst_62 {dimension_numbers = #tpu.dot_dimension_numbers<[1], [0], [0], [1], [0, 0, 1, 1], [], []>} : vector<256x4xbf16>, vector<4x128xbf16>, vector<256x128xf32> -> vector<256x128xf32>
    %63 = arith.addf %56, %62 : vector<256x128xf32>
    %cst_63 = arith.constant 0.000000e+00 : f32
    %64 = vector.broadcast %cst_63 : f32 to vector<256x128xf32>
    %65 = arith.maximumf %63, %64 : vector<256x128xf32>
    %cst_64 = arith.constant 0.000000e+00 : bf16
    %66 = vector.broadcast %cst_64 : bf16 to vector<1x1x18x128xbf16>
    %cst_65 = arith.constant 0.000000e+00 : bf16
    %67 = vector.broadcast %cst_65 : bf16 to vector<1x16x1x128xbf16>
    %c0_66 = arith.constant 0 : index
    %c0_67 = arith.constant 0 : index
    %c0_68 = arith.constant 0 : index
    %c0_69 = arith.constant 0 : index
    %68 = vector.load %arg3[%c0_66, %c0_67, %c0_68, %c0_69] : memref<1x18x18x128xbf16, #tpu.memory_space<vmem>>, vector<1x1x18x128xbf16>
    tpu.vector_store %arg3[%c0_66, %c0_67, %c0_68, %c0_69], %66 {strides = array<i32>} : memref<1x18x18x128xbf16, #tpu.memory_space<vmem>>, vector<1x1x18x128xbf16>,
    %c0_70 = arith.constant 0 : index
    %c17 = arith.constant 17 : index
    %c0_71 = arith.constant 0 : index
    %c0_72 = arith.constant 0 : index
    %69 = vector.load %arg3[%c0_70, %c17, %c0_71, %c0_72] : memref<1x18x18x128xbf16, #tpu.memory_space<vmem>>, vector<1x1x18x128xbf16>
    tpu.vector_store %arg3[%c0_70, %c17, %c0_71, %c0_72], %66 {strides = array<i32>} : memref<1x18x18x128xbf16, #tpu.memory_space<vmem>>, vector<1x1x18x128xbf16>,
    %c0_73 = arith.constant 0 : index
    %c1_74 = arith.constant 1 : index
    %c0_75 = arith.constant 0 : index
    %c0_76 = arith.constant 0 : index
    %70 = vector.load %arg3[%c0_73, %c1_74, %c0_75, %c0_76] : memref<1x18x18x128xbf16, #tpu.memory_space<vmem>>, vector<1x16x1x128xbf16>
    tpu.vector_store %arg3[%c0_73, %c1_74, %c0_75, %c0_76], %67 {strides = array<i32>} : memref<1x18x18x128xbf16, #tpu.memory_space<vmem>>, vector<1x16x1x128xbf16>,
    %c0_77 = arith.constant 0 : index
    %c1_78 = arith.constant 1 : index
    %c17_79 = arith.constant 17 : index
    %c0_80 = arith.constant 0 : index
    %71 = vector.load %arg3[%c0_77, %c1_78, %c17_79, %c0_80] : memref<1x18x18x128xbf16, #tpu.memory_space<vmem>>, vector<1x16x1x128xbf16>
    tpu.vector_store %arg3[%c0_77, %c1_78, %c17_79, %c0_80], %67 {strides = array<i32>} : memref<1x18x18x128xbf16, #tpu.memory_space<vmem>>, vector<1x16x1x128xbf16>,
    %72 = vector.shape_cast %65 : vector<256x128xf32> to vector<1x16x16x128xf32>
    %73 = arith.truncf %72 : vector<1x16x16x128xf32> to vector<1x16x16x128xbf16>
    %c0_81 = arith.constant 0 : index
    %c1_82 = arith.constant 1 : index
    %c1_83 = arith.constant 1 : index
    %c0_84 = arith.constant 0 : index
    %74 = vector.load %arg3[%c0_81, %c1_82, %c1_83, %c0_84] : memref<1x18x18x128xbf16, #tpu.memory_space<vmem>>, vector<1x16x16x128xbf16>
    tpu.vector_store %arg3[%c0_81, %c1_82, %c1_83, %c0_84], %73 {strides = array<i32>} : memref<1x18x18x128xbf16, #tpu.memory_space<vmem>>, vector<1x16x16x128xbf16>,
    return
  }
  func.func @transform_0(%arg0: i32) -> (i32, i32, i32, i32) {
    %c0_i32 = arith.constant 0 : i32
    %c0_i32_0 = arith.constant 0 : i32
    %c0_i32_1 = arith.constant 0 : i32
    %c0_i32_2 = arith.constant 0 : i32
    return %arg0, %c0_i32, %c0_i32_0, %c0_i32_1 : i32, i32, i32, i32
  }
  func.func @transform_1(%arg0: i32) -> (i32, i32, i32) {
    %c0_i32 = arith.constant 0 : i32
    %c0_i32_0 = arith.constant 0 : i32
    %c0_i32_1 = arith.constant 0 : i32
    %c0_i32_2 = arith.constant 0 : i32
    return %c0_i32, %c0_i32_0, %c0_i32_1 : i32, i32, i32
  }
  func.func @transform_2(%arg0: i32) -> (i32, i32, i32, i32) {
    %c0_i32 = arith.constant 0 : i32
    %c0_i32_0 = arith.constant 0 : i32
    %c0_i32_1 = arith.constant 0 : i32
    %c0_i32_2 = arith.constant 0 : i32
    return %arg0, %c0_i32, %c0_i32_0, %c0_i32_1 : i32, i32, i32, i32
  }
}

</mosaic_0001>

<llo_original>
// kernel: tpu_custom_call.1
$region0: #{tpu_custom_call.1}
  #allocation0 [shape = 'u32[]', space=smem, size = 0x4, offset = 0x4, fixed_abs, tag = 'smem constant byte address 0x4 - core index']
  #allocation1 [shape = 'u32[144,128]{1,0:T(1,128)}', space=vmem, size = 0x12000, scoped, tag = 'internal scratch']
  %s0 = inlined_call_operand.hbm [shape: bf16[2,18,18,4], index: 0, kind: input, shape index: {}]
  %s1 = inlined_call_operand.hbm [shape: bf16[9,4,128], index: 1, kind: input, shape index: {}]
  %s2 = inlined_call_operand.hbm [shape: bf16[2,18,18,128], index: 2, kind: output, shape index: {}]
  %s3 = sld [smem:[#allocation0]]
  $region49: #{tpu_custom_call.1} parent=0
    _
  %s5 = ssub.s32 1, %s3
  %s6 = scalar_select 0, %s5, %s3
  $region1: #{tpu_custom_call.1} parent=0
    #allocation2 [shape = 'u8[221184]{0}', space=vmem, size = 0x36000, scoped, tag = 'input window, operand 0']
    #allocation3 [shape = 's32[2]{0}', space=sflag, size = 0x8, scoped, tag = 'scoped memory for tpu_custom_call.1']
    #allocation4 [shape = 's32[2]{0}', space=sflag, size = 0x8, scoped, tag = 'scoped memory for tpu_custom_call.1']
    #allocation5 [shape = 'u8[9216]{0}', space=vmem, size = 0x2400, scoped, tag = 'input window, operand 1, single buffered']
    #allocation6 [shape = 's32[1]{0}', space=sflag, size = 0x4, scoped, tag = 'scoped memory for tpu_custom_call.1']
    #allocation7 [shape = 'u8[221184]{0}', space=vmem, size = 0x36000, scoped, tag = 'output window, operand 0']
    %7 = vsyncpa [#allocation3], 0
    %s8 = scalar_lea.sflag [#allocation3], 1
    %9 = vsyncpa %s8, 0
    %10 = vsyncpa [#allocation6], 0
    %11 = vsyncpa [#allocation4], 0
    %s12 = scalar_lea.sflag [#allocation4], 1
    %13 = vsyncpa %s12, 0
    loop: start=0, step=1, limit=4
    $region2: #{tpu_custom_call.1} parent=1 // loop_pre_header
      _
    $region3: #{tpu_custom_call.1} parent=1 // loop_header
      %s15 = sphi 0, %s19
      %p16 = scmp.ge.s32.totalorder %s15, 4
      %s25 = sphi 0, %s27
      %s28 = sphi 0, %s25
      %s29 = sphi 0, %s28
      %s45 = sphi 0, %s29
      %s49 = sphi 0, %s49
      %s51 = sphi 0, %s49
      %s52 = sphi 0, %s51
      %s66 = sphi 0, %s52
      %s72 = sphi 0, %s74
      %s75 = sphi 0, %s72
      %s76 = sphi 0, %s75
      %s92 = sphi 0, %s76
    $region4: #{tpu_custom_call.1} parent=1 // loop_header_branch
      %18 = sbr.rel (%p16) target = $region8
    $region5: #{tpu_custom_call.1} parent=1 // loop_body
      %s20 = ssub.s32 %s15, 1
      %s21 = ssub.s32 %s15, 2
      %s22 = sadd.s32 %s15, 1
      %s23 = ssub.s32 %s15, %s22
      %p24 = scmp.eq.s32.totalorder %s23, 0
      %s26 = sadd.s32 %s25, 1
      %s27 = scalar_select %p24, %s25, %s26
      %p30 = pneg %p24
      %p31 = scmp.eq.s32.totalorder %s15, 1
      %p32 = por %p30, %p31
      %p33 = scmp.ne.s32.totalorder %s25, %s28
      %p34 = scmp.eq.s32.totalorder %s15, 0
      %p35 = por %p33, %p34
      %p36 = scmp.ne.s32.totalorder %s25, %s28
      %p37 = scmp.eq.s32.totalorder %s20, 1
      %p38 = por %p36, %p37
      %p39 = scmp.ne.s32.totalorder %s28, %s29
      %p40 = scmp.eq.s32.totalorder %s20, 0
      %p41 = por %p39, %p40
      %p42 = scmp.ne.s32.totalorder %s28, %s29
      %p43 = scmp.eq.s32.totalorder %s21, 1
      %p44 = por %p42, %p43
      %p46 = scmp.ne.s32.totalorder %s29, %s45
      %p47 = scmp.eq.s32.totalorder %s21, 0
      %p48 = por %p46, %p47
      %s50 = sadd.s32 %s49, 1
      %p53 = scmp.eq.s32.totalorder %s15, 1
      %p54 = scmp.ne.s32.totalorder %s49, %s51
      %p55 = scmp.eq.s32.totalorder %s15, 0
      %p56 = por %p54, %p55
      %p57 = scmp.ne.s32.totalorder %s49, %s51
      %p58 = scmp.eq.s32.totalorder %s20, 1
      %p59 = por %p57, %p58
      %p60 = scmp.ne.s32.totalorder %s51, %s52
      %p61 = scmp.eq.s32.totalorder %s20, 0
      %p62 = por %p60, %p61
      %p63 = scmp.ne.s32.totalorder %s51, %s52
      %p64 = scmp.eq.s32.totalorder %s21, 1
      %p65 = por %p63, %p64
      %p67 = scmp.ne.s32.totalorder %s52, %s66
      %p68 = scmp.eq.s32.totalorder %s21, 0
      %p69 = por %p67, %p68
      %s70 = ssub.s32 %s15, %s22
      %p71 = scmp.eq.s32.totalorder %s70, 0
      %s73 = sadd.s32 %s72, 1
      %s74 = scalar_select %p71, %s72, %s73
      %p77 = pneg %p71
      %p78 = scmp.eq.s32.totalorder %s15, 1
      %p79 = por %p77, %p78
      %p80 = scmp.ne.s32.totalorder %s72, %s75
      %p81 = scmp.eq.s32.totalorder %s15, 0
      %p82 = por %p80, %p81
      %p83 = scmp.ne.s32.totalorder %s72, %s75
      %p84 = scmp.eq.s32.totalorder %s20, 1
      %p85 = por %p83, %p84
      %p86 = scmp.ne.s32.totalorder %s75, %s76
      %p87 = scmp.eq.s32.totalorder %s20, 0
      %p88 = por %p86, %p87
      %p89 = scmp.ne.s32.totalorder %s75, %s76
      %p90 = scmp.eq.s32.totalorder %s21, 1
      %p91 = por %p89, %p90
      %p93 = scmp.ne.s32.totalorder %s76, %s92
      %p94 = scmp.eq.s32.totalorder %s21, 0
      %p95 = por %p93, %p94
      %p96 = scmp.le.s32.totalorder 1, %s15
      %p97 = scmp.lt.s32.totalorder %s15, 3
      %p98 = pnand %p96, %p97
      %p99 = pneg %p98
      // Predicated region
      $region9: #{tpu_custom_call.1} parent=5 // pred_check
        _
      $region10: #{tpu_custom_call.1} parent=5 // pred_check_branch
        %101 = sbr.rel (%p98) target = $region12
      $region11: #{tpu_custom_call.1} parent=5 // pred_region
        %s102 = ssub.s32 %s15, 1
        // Predicated region
        $region13: #{tpu_custom_call.1} parent=11 // pred_check
          %p103 = pneg %p62
        $region14: #{tpu_custom_call.1} parent=11 // pred_check_branch
          %105 = sbr.rel (%p103) target = $region16
        $region15: #{tpu_custom_call.1} parent=11 // pred_region
          %s107 = ssub.s32 288, 288
          %108 = vsyncadd [#allocation6], %s107
          %s109 = sshll.u32 [#allocation5], 4
          %s110 = int_to_ptr.vmem [resolvable:$true] %s109
          %115 = dma.hbm_to_vmem [thread:$0]  %s1, 288, %s110, [#allocation6], 32, 32, 2
        $region16: #{tpu_custom_call.1} parent=11 // pred_fallthru
          _
      $region12: #{tpu_custom_call.1} parent=5 // pred_fallthru
        _
      %p116 = scmp.lt.s32.totalorder %s15, 2
      // Predicated region
      $region17: #{tpu_custom_call.1} parent=5 // pred_check
        %p117 = pneg %p116
      $region18: #{tpu_custom_call.1} parent=5 // pred_check_branch
        %119 = sbr.rel (%p117) target = $region20
      $region19: #{tpu_custom_call.1} parent=5 // pred_region
        // Predicated region
        $region21: #{tpu_custom_call.1} parent=19 // pred_check
          %p120 = pneg %p35
        $region22: #{tpu_custom_call.1} parent=19 // pred_check_branch
          %122 = sbr.rel (%p120) target = $region24
        $region23: #{tpu_custom_call.1} parent=19 // pred_region
          %s123 = sand.u32 %s25, 1
          %s124 = scalar_lea.sflag [#allocation3], %s123
          %s125 = sand.u32 %s25, 1
          %s126 = smul.addr %s125, 216
          %s127 = scalar_lea.vmem [#allocation2], %s126
          %s129 = ssub.s32 3456, 3456
          %130 = vsyncadd %s124, %s129
          %s131 = smul.addr %s15, 54
          %s132 = smul.addr %s131, 64
          %s133 = scalar_lea.hbm %s0, %s132
          %s134 = sshll.u32 %s127, 4
          %s135 = int_to_ptr.vmem [resolvable:$true] %s134
          %140 = dma.hbm_to_vmem [thread:$0]  %s133, 3456, %s135, %s124, 64, 64, 4
        $region24: #{tpu_custom_call.1} parent=19 // pred_fallthru
          _
      $region20: #{tpu_custom_call.1} parent=5 // pred_fallthru
        _
      %p141 = scmp.le.s32.totalorder 1, %s15
      %p142 = scmp.lt.s32.totalorder %s15, 3
      %p143 = pnand %p141, %p142
      %p144 = pneg %p143
      // Predicated region
      $region25: #{tpu_custom_call.1} parent=5 // pred_check
        _
      $region26: #{tpu_custom_call.1} parent=5 // pred_check_branch
        %146 = sbr.rel (%p143) target = $region28
      $region27: #{tpu_custom_call.1} parent=5 // pred_region
        %s147 = ssub.s32 %s15, 1
        %s148 = sand.u32 %s28, 1
        %s149 = scalar_lea.sflag [#allocation3], %s148
        %s150 = sand.u32 %s28, 1
        %s151 = smul.addr %s150, 216
        %s152 = scalar_lea.vmem [#allocation2], %s151
        // Predicated region
        $region29: #{tpu_custom_call.1} parent=27 // pred_check
          %p153 = pneg %p41
        $region30: #{tpu_custom_call.1} parent=27 // pred_check_branch
          %155 = sbr.rel (%p153) target = $region32
        $region31: #{tpu_custom_call.1} parent=27 // pred_region
          %156 = dma.done %s149, 3456
        $region32: #{tpu_custom_call.1} parent=27 // pred_fallthru
          _
        // Predicated region
        $region33: #{tpu_custom_call.1} parent=27 // pred_check
          %p157 = pneg %p62
        $region34: #{tpu_custom_call.1} parent=27 // pred_check_branch
          %159 = sbr.rel (%p157) target = $region36
        $region35: #{tpu_custom_call.1} parent=27 // pred_region
          %160 = dma.done [#allocation6], 288
        $region36: #{tpu_custom_call.1} parent=27 // pred_fallthru
          _
        %s161 = sand.u32 %s28, 1
        %s162 = scalar_lea.sflag [#allocation3], %s161
        %s163 = sand.u32 %s28, 1
        %s164 = smul.addr %s163, 216
        %s165 = scalar_lea.vmem [#allocation2], %s164
        %p166 = pneg %p41
        %p167 = pneg %p38
        %p168 = pneg %p62
        %p169 = pneg %p59
        %p170 = pneg %p88
        %p171 = pneg %p85
        %s172 = sand.u32 %s75, 1
        %s173 = scalar_lea.sflag [#allocation4], %s172
        %s174 = sand.u32 %s75, 1
        %s175 = smul.addr %s174, 216
        %s176 = scalar_lea.vmem [#allocation7], %s175
        %v178 = vld [vmem:[%s152] sm:$0xf]
        %v179 = vld [vmem:[%s152 + $0x4] sm:$0xf]
        %v180 = vld [vmem:[%s152 + $0xc] sm:$0xf]
        %v181 = vld [vmem:[%s152 + $0x10] sm:$0xf]
        %v182 = vld [vmem:[%s152 + $0x18] sm:$0xf]
        %v183 = vld [vmem:[%s152 + $0x1c] sm:$0xf]
        %v184 = vld [vmem:[%s152 + $0x24] sm:$0xf]
        %v185 = vld [vmem:[%s152 + $0x28] sm:$0xf]
        %v186 = vld [vmem:[%s152 + $0x30] sm:$0xf]
        %v187 = vld [vmem:[%s152 + $0x34] sm:$0xf]
        %v188 = vld [vmem:[%s152 + $0x3c] sm:$0xf]
        %v189 = vld [vmem:[%s152 + $0x40] sm:$0xf]
        %v190 = vld [vmem:[%s152 + $0x48] sm:$0xf]
        %v191 = vld [vmem:[%s152 + $0x4c] sm:$0xf]
        %v192 = vld [vmem:[%s152 + $0x54] sm:$0xf]
        %v193 = vld [vmem:[%s152 + $0x58] sm:$0xf]
        %v194 = vld [vmem:[%s152 + $0x60] sm:$0xf]
        %v195 = vld [vmem:[%s152 + $0x64] sm:$0xf]
        %v196 = vld [vmem:[%s152 + $0x6c] sm:$0xf]
        %v197 = vld [vmem:[%s152 + $0x70] sm:$0xf]
        %v198 = vld [vmem:[%s152 + $0x78] sm:$0xf]
        %v199 = vld [vmem:[%s152 + $0x7c] sm:$0xf]
        %v200 = vld [vmem:[%s152 + $0x84] sm:$0xf]
        %v201 = vld [vmem:[%s152 + $0x88] sm:$0xf]
        %v202 = vld [vmem:[%s152 + $0x90] sm:$0xf]
        %v203 = vld [vmem:[%s152 + $0x94] sm:$0xf]
        %v204 = vld [vmem:[%s152 + $0x9c] sm:$0xf]
        %v205 = vld [vmem:[%s152 + $0xa0] sm:$0xf]
        %v206 = vld [vmem:[%s152 + $0xa8] sm:$0xf]
        %v207 = vld [vmem:[%s152 + $0xac] sm:$0xf]
        %v208 = vld [vmem:[%s152 + $0xb4] sm:$0xf]
        %v209 = vld [vmem:[%s152 + $0xb8] sm:$0xf]
        %v210 = vld [vmem:[#allocation5] sm:$0x3]
        %v211 = vld [vmem:[%s152 + $0x8] sm:$0x1]
        %v212 = vld [vmem:[%s152 + $0x14] sm:$0x1]
        %v213 = vld [vmem:[%s152 + $0x20] sm:$0x1]
        %v214 = vld [vmem:[%s152 + $0x2c] sm:$0x1]
        %v215 = vld [vmem:[%s152 + $0x38] sm:$0x1]
        %v216 = vld [vmem:[%s152 + $0x44] sm:$0x1]
        %v217 = vld [vmem:[%s152 + $0x50] sm:$0x1]
        %v218 = vld [vmem:[%s152 + $0x5c] sm:$0x1]
        %v219 = vld [vmem:[%s152 + $0x68] sm:$0x1]
        %v220 = vld [vmem:[%s152 + $0x74] sm:$0x1]
        %v221 = vld [vmem:[%s152 + $0x80] sm:$0x1]
        %v222 = vld [vmem:[%s152 + $0x8c] sm:$0x1]
        %v223 = vld [vmem:[%s152 + $0x98] sm:$0x1]
        %v224 = vld [vmem:[%s152 + $0xa4] sm:$0x1]
        %v225 = vld [vmem:[%s152 + $0xb0] sm:$0x1]
        %v226 = vld [vmem:[%s152 + $0xbc] sm:$0x1]
        %vm227 = vsmask.f32 3328
        %vm228 = vsmask.f32 7440
        %vm229 = vmor %vm227, %vm228
        %v231 = vshrl.u32 %v178, 16
        %v233 = vrot.slane %v231, 4
        %v234 = vshll.u32 %v178, 16
        %v236 = vrot.slane %v234, 5
        %v237 = vor.u32 %v233, %v236
        %v238 = vrot.slane %v237, 4
        %v240 = vshll.u32 %v179, 16
        %v242 = vrot.slane %v240, 5
        %v243 = vsel %vm229, %v238, %v242
        %v244 = vshrl.u32 %v179, 16
        %v246 = vrot.slane %v244, 4
        %v247 = vor.u32 %v246, %v242
        %v248 = vrot.slane %v247, 4
        %v250 = vshll.u32 %v211, 16
        %v252 = vrot.slane %v250, 5
        %v253 = vsel %vm229, %v248, %v252
        %v255 = vshrl.u32 %v180, 16
        %v257 = vrot.slane %v255, 4
        %v258 = vshll.u32 %v180, 16
        %v260 = vrot.slane %v258, 5
        %v261 = vor.u32 %v257, %v260
        %v262 = vrot.slane %v261, 4
        %v264 = vshll.u32 %v181, 16
        %v266 = vrot.slane %v264, 5
        %v267 = vsel %vm229, %v262, %v266
        %v268 = vshrl.u32 %v181, 16
        %v270 = vrot.slane %v268, 4
        %v271 = vor.u32 %v270, %v266
        %v272 = vrot.slane %v271, 4
        %v274 = vshll.u32 %v212, 16
        %v276 = vrot.slane %v274, 5
        %v277 = vsel %vm229, %v272, %v276
        %v279 = vshrl.u32 %v182, 16
        %v281 = vrot.slane %v279, 4
        %v282 = vshll.u32 %v182, 16
        %v284 = vrot.slane %v282, 5
        %v285 = vor.u32 %v281, %v284
        %v286 = vrot.slane %v285, 4
        %v288 = vshll.u32 %v183, 16
        %v290 = vrot.slane %v288, 5
        %v291 = vsel %vm229, %v286, %v290
        %v292 = vshrl.u32 %v183, 16
        %v294 = vrot.slane %v292, 4
        %v295 = vor.u32 %v294, %v290
        %v296 = vrot.slane %v295, 4
        %v298 = vshll.u32 %v213, 16
        %v300 = vrot.slane %v298, 5
        %v301 = vsel %vm229, %v296, %v300
        %v303 = vshrl.u32 %v184, 16
        %v305 = vrot.slane %v303, 4
        %v306 = vshll.u32 %v184, 16
        %v308 = vrot.slane %v306, 5
        %v309 = vor.u32 %v305, %v308
        %v310 = vrot.slane %v309, 4
        %v312 = vshll.u32 %v185, 16
        %v314 = vrot.slane %v312, 5
        %v315 = vsel %vm229, %v310, %v314
        %v316 = vshrl.u32 %v185, 16
        %v318 = vrot.slane %v316, 4
        %v319 = vor.u32 %v318, %v314
        %v320 = vrot.slane %v319, 4
        %v322 = vshll.u32 %v214, 16
        %v324 = vrot.slane %v322, 5
        %v325 = vsel %vm229, %v320, %v324
        %v327 = vshrl.u32 %v186, 16
        %v329 = vrot.slane %v327, 4
        %v330 = vshll.u32 %v186, 16
        %v332 = vrot.slane %v330, 5
        %v333 = vor.u32 %v329, %v332
        %v334 = vrot.slane %v333, 4
        %v336 = vshll.u32 %v187, 16
        %v338 = vrot.slane %v336, 5
        %v339 = vsel %vm229, %v334, %v338
        %v340 = vshrl.u32 %v187, 16
        %v342 = vrot.slane %v340, 4
        %v343 = vor.u32 %v342, %v338
        %v344 = vrot.slane %v343, 4
        %v346 = vshll.u32 %v215, 16
        %v348 = vrot.slane %v346, 5
        %v349 = vsel %vm229, %v344, %v348
        %v351 = vshrl.u32 %v188, 16
        %v353 = vrot.slane %v351, 4
        %v354 = vshll.u32 %v188, 16
        %v356 = vrot.slane %v354, 5
        %v357 = vor.u32 %v353, %v356
        %v358 = vrot.slane %v357, 4
        %v360 = vshll.u32 %v189, 16
        %v362 = vrot.slane %v360, 5
        %v363 = vsel %vm229, %v358, %v362
        %v364 = vshrl.u32 %v189, 16
        %v366 = vrot.slane %v364, 4
        %v367 = vor.u32 %v366, %v362
        %v368 = vrot.slane %v367, 4
        %v370 = vshll.u32 %v216, 16
        %v372 = vrot.slane %v370, 5
        %v373 = vsel %vm229, %v368, %v372
        %v375 = vshrl.u32 %v190, 16
        %v377 = vrot.slane %v375, 4
        %v378 = vshll.u32 %v190, 16
        %v380 = vrot.slane %v378, 5
        %v381 = vor.u32 %v377, %v380
        %v382 = vrot.slane %v381, 4
        %v384 = vshll.u32 %v191, 16
        %v386 = vrot.slane %v384, 5
        %v387 = vsel %vm229, %v382, %v386
        %v388 = vshrl.u32 %v191, 16
        %v390 = vrot.slane %v388, 4
        %v391 = vor.u32 %v390, %v386
        %v392 = vrot.slane %v391, 4
        %v394 = vshll.u32 %v217, 16
        %v396 = vrot.slane %v394, 5
        %v397 = vsel %vm229, %v392, %v396
        %v399 = vshrl.u32 %v192, 16
        %v401 = vrot.slane %v399, 4
        %v402 = vshll.u32 %v192, 16
        %v404 = vrot.slane %v402, 5
        %v405 = vor.u32 %v401, %v404
        %v406 = vrot.slane %v405, 4
        %v408 = vshll.u32 %v193, 16
        %v410 = vrot.slane %v408, 5
        %v411 = vsel %vm229, %v406, %v410
        %v412 = vshrl.u32 %v193, 16
        %v414 = vrot.slane %v412, 4
        %v415 = vor.u32 %v414, %v410
        %v416 = vrot.slane %v415, 4
        %v418 = vshll.u32 %v218, 16
        %v420 = vrot.slane %v418, 5
        %v421 = vsel %vm229, %v416, %v420
        %v423 = vshrl.u32 %v194, 16
        %v425 = vrot.slane %v423, 4
        %v426 = vshll.u32 %v194, 16
        %v428 = vrot.slane %v426, 5
        %v429 = vor.u32 %v425, %v428
        %v430 = vrot.slane %v429, 4
        %v432 = vshll.u32 %v195, 16
        %v434 = vrot.slane %v432, 5
        %v435 = vsel %vm229, %v430, %v434
        %v436 = vshrl.u32 %v195, 16
        %v438 = vrot.slane %v436, 4
        %v439 = vor.u32 %v438, %v434
        %v440 = vrot.slane %v439, 4
        %v442 = vshll.u32 %v219, 16
        %v444 = vrot.slane %v442, 5
        %v445 = vsel %vm229, %v440, %v444
        %v447 = vshrl.u32 %v196, 16
        %v449 = vrot.slane %v447, 4
        %v450 = vshll.u32 %v196, 16
        %v452 = vrot.slane %v450, 5
        %v453 = vor.u32 %v449, %v452
        %v454 = vrot.slane %v453, 4
        %v456 = vshll.u32 %v197, 16
        %v458 = vrot.slane %v456, 5
        %v459 = vsel %vm229, %v454, %v458
        %v460 = vshrl.u32 %v197, 16
        %v462 = vrot.slane %v460, 4
        %v463 = vor.u32 %v462, %v458
        %v464 = vrot.slane %v463, 4
        %v466 = vshll.u32 %v220, 16
        %v468 = vrot.slane %v466, 5
        %v469 = vsel %vm229, %v464, %v468
        %v471 = vshrl.u32 %v198, 16
        %v473 = vrot.slane %v471, 4
        %v474 = vshll.u32 %v198, 16
        %v476 = vrot.slane %v474, 5
        %v477 = vor.u32 %v473, %v476
        %v478 = vrot.slane %v477, 4
        %v480 = vshll.u32 %v199, 16
        %v482 = vrot.slane %v480, 5
        %v483 = vsel %vm229, %v478, %v482
        %v484 = vshrl.u32 %v199, 16
        %v486 = vrot.slane %v484, 4
        %v487 = vor.u32 %v486, %v482
        %v488 = vrot.slane %v487, 4
        %v490 = vshll.u32 %v221, 16
        %v492 = vrot.slane %v490, 5
        %v493 = vsel %vm229, %v488, %v492
        %v495 = vshrl.u32 %v200, 16
        %v497 = vrot.slane %v495, 4
        %v498 = vshll.u32 %v200, 16
        %v500 = vrot.slane %v498, 5
        %v501 = vor.u32 %v497, %v500
        %v502 = vrot.slane %v501, 4
        %v504 = vshll.u32 %v201, 16
        %v506 = vrot.slane %v504, 5
        %v507 = vsel %vm229, %v502, %v506
        %v508 = vshrl.u32 %v201, 16
        %v510 = vrot.slane %v508, 4
        %v511 = vor.u32 %v510, %v506
        %v512 = vrot.slane %v511, 4
        %v514 = vshll.u32 %v222, 16
        %v516 = vrot.slane %v514, 5
        %v517 = vsel %vm229, %v512, %v516
        %v519 = vshrl.u32 %v202, 16
        %v521 = vrot.slane %v519, 4
        %v522 = vshll.u32 %v202, 16
        %v524 = vrot.slane %v522, 5
        %v525 = vor.u32 %v521, %v524
        %v526 = vrot.slane %v525, 4
        %v528 = vshll.u32 %v203, 16
        %v530 = vrot.slane %v528, 5
        %v531 = vsel %vm229, %v526, %v530
        %v532 = vshrl.u32 %v203, 16
        %v534 = vrot.slane %v532, 4
        %v535 = vor.u32 %v534, %v530
        %v536 = vrot.slane %v535, 4
        %v538 = vshll.u32 %v223, 16
        %v540 = vrot.slane %v538, 5
        %v541 = vsel %vm229, %v536, %v540
        %v543 = vshrl.u32 %v204, 16
        %v545 = vrot.slane %v543, 4
        %v546 = vshll.u32 %v204, 16
        %v548 = vrot.slane %v546, 5
        %v549 = vor.u32 %v545, %v548
        %v550 = vrot.slane %v549, 4
        %v552 = vshll.u32 %v205, 16
        %v554 = vrot.slane %v552, 5
        %v555 = vsel %vm229, %v550, %v554
        %v556 = vshrl.u32 %v205, 16
        %v558 = vrot.slane %v556, 4
        %v559 = vor.u32 %v558, %v554
        %v560 = vrot.slane %v559, 4
        %v562 = vshll.u32 %v224, 16
        %v564 = vrot.slane %v562, 5
        %v565 = vsel %vm229, %v560, %v564
        %v567 = vshrl.u32 %v206, 16
        %v569 = vrot.slane %v567, 4
        %v570 = vshll.u32 %v206, 16
        %v572 = vrot.slane %v570, 5
        %v573 = vor.u32 %v569, %v572
        %v574 = vrot.slane %v573, 4
        %v576 = vshll.u32 %v207, 16
        %v578 = vrot.slane %v576, 5
        %v579 = vsel %vm229, %v574, %v578
        %v580 = vshrl.u32 %v207, 16
        %v582 = vrot.slane %v580, 4
        %v583 = vor.u32 %v582, %v578
        %v584 = vrot.slane %v583, 4
        %v586 = vshll.u32 %v225, 16
        %v588 = vrot.slane %v586, 5
        %v589 = vsel %vm229, %v584, %v588
        %v591 = vshrl.u32 %v208, 16
        %v593 = vrot.slane %v591, 4
        %v594 = vshll.u32 %v208, 16
        %v596 = vrot.slane %v594, 5
        %v597 = vor.u32 %v593, %v596
        %v598 = vrot.slane %v597, 4
        %v600 = vshll.u32 %v209, 16
        %v602 = vrot.slane %v600, 5
        %v603 = vsel %vm229, %v598, %v602
        %v604 = vshrl.u32 %v209, 16
        %v606 = vrot.slane %v604, 4
        %v607 = vor.u32 %v606, %v602
        %v608 = vrot.slane %v607, 4
        %v610 = vshll.u32 %v226, 16
        %v612 = vrot.slane %v610, 5
        %v613 = vsel %vm229, %v608, %v612
        %s614 = scalar_lea.vmem [#allocation5], 2
        %v615 = vld [vmem:[%s614] sm:$0x3]
        %v616 = vunpack.c.l.b16 %v243
        %v617 = vunpack.c.l.b16 %v253
        %v618 = vunpack.c.l.b16 %v267
        %v619 = vunpack.c.l.b16 %v277
        %v620 = vunpack.c.l.b16 %v291
        %v621 = vunpack.c.l.b16 %v301
        %v622 = vunpack.c.l.b16 %v315
        %v623 = vunpack.c.l.b16 %v325
        %v624 = vunpack.c.l.b16 %v339
        %v625 = vunpack.c.l.b16 %v349
        %v626 = vunpack.c.l.b16 %v363
        %v627 = vunpack.c.l.b16 %v373
        %v628 = vunpack.c.l.b16 %v387
        %v629 = vunpack.c.l.b16 %v397
        %v630 = vunpack.c.l.b16 %v411
        %v631 = vunpack.c.l.b16 %v421
        %v632 = vunpack.c.l.b16 %v435
        %v633 = vunpack.c.l.b16 %v445
        %v634 = vunpack.c.l.b16 %v459
        %v635 = vunpack.c.l.b16 %v469
        %v636 = vunpack.c.l.b16 %v483
        %v637 = vunpack.c.l.b16 %v493
        %v638 = vunpack.c.l.b16 %v507
        %v639 = vunpack.c.l.b16 %v517
        %v640 = vunpack.c.l.b16 %v531
        %v641 = vunpack.c.l.b16 %v541
        %v642 = vunpack.c.l.b16 %v555
        %v643 = vunpack.c.l.b16 %v565
        %v644 = vunpack.c.l.b16 %v579
        %v645 = vunpack.c.l.b16 %v589
        %v646 = vunpack.c.l.b16 %v603
        %v647 = vunpack.c.l.b16 %v613
        %v648 = vpack.c.b16 %v617, %v616
        %v649 = vpack.c.b16 %v619, %v618
        %v650 = vpack.c.b16 %v621, %v620
        %v651 = vpack.c.b16 %v623, %v622
        %v652 = vpack.c.b16 %v625, %v624
        %v653 = vpack.c.b16 %v627, %v626
        %v654 = vpack.c.b16 %v629, %v628
        %v655 = vpack.c.b16 %v631, %v630
        %v656 = vpack.c.b16 %v633, %v632
        %v657 = vpack.c.b16 %v635, %v634
        %v658 = vpack.c.b16 %v637, %v636
        %v659 = vpack.c.b16 %v639, %v638
        %v660 = vpack.c.b16 %v641, %v640
        %v661 = vpack.c.b16 %v643, %v642
        %v662 = vpack.c.b16 %v645, %v644
        %v663 = vpack.c.b16 %v647, %v646
        %vm664 = vcmask 31744
        %v666 = vsel %vm664, %v648, 0
        %v669 = vsel %vm664, %v649, 0
        %v672 = vsel %vm664, %v650, 0
        %v675 = vsel %vm664, %v651, 0
        %v678 = vsel %vm664, %v652, 0
        %v681 = vsel %vm664, %v653, 0
        %v684 = vsel %vm664, %v654, 0
        %v687 = vsel %vm664, %v655, 0
        %v690 = vsel %vm664, %v656, 0
        %v693 = vsel %vm664, %v657, 0
        %v696 = vsel %vm664, %v658, 0
        %v699 = vsel %vm664, %v659, 0
        %v702 = vsel %vm664, %v660, 0
        %v705 = vsel %vm664, %v661, 0
        %v708 = vsel %vm664, %v662, 0
        %v711 = vsel %vm664, %v663, 0
        %vm713 = vcmask 1041408
        %v715 = vsel %vm713, %v615, 0
        %717 = vmatprep.subr.bf16.mxu0 0
        %718 = vmatpush1.bf16.msra.mxu0 %v715
        %719 = vmatprep.subr.bf16.mxu0 0
        %720 = vmatpush1.bf16.msra.mxu0 0
        %721 = vmatprep.subr.bf16.mxu0 0
        %722 = vmatpush1.bf16.msra.mxu0 0
        %723 = vmatprep.subr.bf16.mxu0 0
        %724 = vmatpush1.bf16.msra.mxu0 0
        %725 = vmatprep.subr.bf16.mxu0 0
        %726 = vmatpush1.bf16.msra.mxu0 0
        %727 = vmatprep.subr.bf16.mxu0 0
        %728 = vmatpush1.bf16.msra.mxu0 0
        %729 = vmatprep.subr.bf16.mxu0 0
        %730 = vmatpush1.bf16.msra.mxu0 0
        %731 = vmatprep.subr.bf16.mxu0 0
        %732 = vmatpush1.bf16.msra.mxu0 0
        %733 = vmatprep.subr.bf16.mxu0 0
        %734 = vmatpush1.bf16.msra.mxu0 0
        %735 = vmatprep.subr.bf16.mxu0 0
        %736 = vmatpush1.bf16.msra.mxu0 0
        %737 = vmatprep.subr.bf16.mxu0 0
        %738 = vmatpush1.bf16.msra.mxu0 0
        %739 = vmatprep.subr.bf16.mxu0 0
        %740 = vmatpush1.bf16.msra.mxu0 0
        %741 = vmatprep.subr.bf16.mxu0 0
        %742 = vmatpush1.bf16.msra.mxu0 0
        %743 = vmatprep.subr.bf16.mxu0 0
        %744 = vmatpush1.bf16.msra.mxu0 0
        %745 = vmatprep.subr.bf16.mxu0 0
        %746 = vmatpush1.bf16.msra.mxu0 0
        %747 = vmatprep.subr.bf16.mxu0 0
        %748 = vmatpush1.bf16.msra.mxu0 0
        %749 = vmatprep.mubr.bf16.mxu0 0
        %750 = vmatmul.mubr.bf16.gmra.mrb[0].mxu0 %v666
        %v751 = vpop.f32.mrb[0].mxu0
        %v752 = vadd.f32 0.0, %v751
        %v753 = vpop.f32.mrb[0].mxu0
        %v754 = vpop.f32.mrb[0].mxu0
        %v755 = vadd.f32 0.0, %v754
        %v756 = vpop.f32.mrb[0].mxu0
        %757 = vmatprep.mubr.bf16.mxu0 0
        %758 = vmatmul.mubr.bf16.gmra.mrb[0].mxu0 %v669
        %v759 = vpop.f32.mrb[0].mxu0
        %v760 = vadd.f32 0.0, %v759
        %v761 = vpop.f32.mrb[0].mxu0
        %v762 = vpop.f32.mrb[0].mxu0
        %v763 = vadd.f32 0.0, %v762
        %v764 = vpop.f32.mrb[0].mxu0
        %765 = vmatprep.mubr.bf16.mxu0 0
        %766 = vmatmul.mubr.bf16.gmra.mrb[0].mxu0 %v672
        %v767 = vpop.f32.mrb[0].mxu0
        %v768 = vadd.f32 0.0, %v767
        %v769 = vpop.f32.mrb[0].mxu0
        %v770 = vpop.f32.mrb[0].mxu0
        %v771 = vadd.f32 0.0, %v770
        %v772 = vpop.f32.mrb[0].mxu0
        %773 = vmatprep.mubr.bf16.mxu0 0
        %774 = vmatmul.mubr.bf16.gmra.mrb[0].mxu0 %v675
        %v775 = vpop.f32.mrb[0].mxu0
        %v776 = vadd.f32 0.0, %v775
        %v777 = vpop.f32.mrb[0].mxu0
        %v778 = vpop.f32.mrb[0].mxu0
        %v779 = vadd.f32 0.0, %v778
        %v780 = vpop.f32.mrb[0].mxu0
        %781 = vmatprep.mubr.bf16.mxu0 0
        %782 = vmatmul.mubr.bf16.gmra.mrb[0].mxu0 %v678
        %v783 = vpop.f32.mrb[0].mxu0
        %v784 = vadd.f32 0.0, %v783
        %v785 = vpop.f32.mrb[0].mxu0
        %v786 = vpop.f32.mrb[0].mxu0
        %v787 = vadd.f32 0.0, %v786
        %v788 = vpop.f32.mrb[0].mxu0
        %789 = vmatprep.mubr.bf16.mxu0 0
        %790 = vmatmul.mubr.bf16.gmra.mrb[0].mxu0 %v681
        %v791 = vpop.f32.mrb[0].mxu0
        %v792 = vadd.f32 0.0, %v791
        %v793 = vpop.f32.mrb[0].mxu0
        %v794 = vpop.f32.mrb[0].mxu0
        %v795 = vadd.f32 0.0, %v794
        %v796 = vpop.f32.mrb[0].mxu0
        %797 = vmatprep.mubr.bf16.mxu0 0
        %798 = vmatmul.mubr.bf16.gmra.mrb[0].mxu0 %v684
        %v799 = vpop.f32.mrb[0].mxu0
        %v800 = vadd.f32 0.0, %v799
        %v801 = vpop.f32.mrb[0].mxu0
        %v802 = vpop.f32.mrb[0].mxu0
        %v803 = vadd.f32 0.0, %v802
        %v804 = vpop.f32.mrb[0].mxu0
        %805 = vmatprep.mubr.bf16.mxu0 0
        %806 = vmatmul.mubr.bf16.gmra.mrb[0].mxu0 %v687
        %v807 = vpop.f32.mrb[0].mxu0
        %v808 = vadd.f32 0.0, %v807
        %v809 = vpop.f32.mrb[0].mxu0
        %v810 = vpop.f32.mrb[0].mxu0
        %v811 = vadd.f32 0.0, %v810
        %v812 = vpop.f32.mrb[0].mxu0
        %813 = vmatprep.mubr.bf16.mxu0 0
        %814 = vmatmul.mubr.bf16.gmra.mrb[0].mxu0 %v690
        %v815 = vpop.f32.mrb[0].mxu0
        %v816 = vadd.f32 0.0, %v815
        %v817 = vpop.f32.mrb[0].mxu0
        %v818 = vpop.f32.mrb[0].mxu0
        %v819 = vadd.f32 0.0, %v818
        %v820 = vpop.f32.mrb[0].mxu0
        %821 = vmatprep.mubr.bf16.mxu0 0
        %822 = vmatmul.mubr.bf16.gmra.mrb[0].mxu0 %v693
        %v823 = vpop.f32.mrb[0].mxu0
        %v824 = vadd.f32 0.0, %v823
        %v825 = vpop.f32.mrb[0].mxu0
        %v826 = vpop.f32.mrb[0].mxu0
        %v827 = vadd.f32 0.0, %v826
        %v828 = vpop.f32.mrb[0].mxu0
        %829 = vmatprep.mubr.bf16.mxu0 0
        %830 = vmatmul.mubr.bf16.gmra.mrb[0].mxu0 %v696
        %v831 = vpop.f32.mrb[0].mxu0
        %v832 = vadd.f32 0.0, %v831
        %v833 = vpop.f32.mrb[0].mxu0
        %v834 = vpop.f32.mrb[0].mxu0
        %v835 = vadd.f32 0.0, %v834
        %v836 = vpop.f32.mrb[0].mxu0
        %837 = vmatprep.mubr.bf16.mxu0 0
        %838 = vmatmul.mubr.bf16.gmra.mrb[0].mxu0 %v699
        %v839 = vpop.f32.mrb[0].mxu0
        %v840 = vadd.f32 0.0, %v839
        %v841 = vpop.f32.mrb[0].mxu0
        %v842 = vpop.f32.mrb[0].mxu0
        %v843 = vadd.f32 0.0, %v842
        %v844 = vpop.f32.mrb[0].mxu0
        %845 = vmatprep.mubr.bf16.mxu0 0
        %846 = vmatmul.mubr.bf16.gmra.mrb[0].mxu0 %v702
        %v847 = vpop.f32.mrb[0].mxu0
        %v848 = vadd.f32 0.0, %v847
        %v849 = vpop.f32.mrb[0].mxu0
        %v850 = vpop.f32.mrb[0].mxu0
        %v851 = vadd.f32 0.0, %v850
        %v852 = vpop.f32.mrb[0].mxu0
        %853 = vmatprep.mubr.bf16.mxu0 0
        %854 = vmatmul.mubr.bf16.gmra.mrb[0].mxu0 %v705
        %v855 = vpop.f32.mrb[0].mxu0
        %v856 = vadd.f32 0.0, %v855
        %v857 = vpop.f32.mrb[0].mxu0
        %v858 = vpop.f32.mrb[0].mxu0
        %v859 = vadd.f32 0.0, %v858
        %v860 = vpop.f32.mrb[0].mxu0
        %861 = vmatprep.mubr.bf16.mxu0 0
        %862 = vmatmul.mubr.bf16.gmra.mrb[0].mxu0 %v708
        %v863 = vpop.f32.mrb[0].mxu0
        %v864 = vadd.f32 0.0, %v863
        %v865 = vpop.f32.mrb[0].mxu0
        %v866 = vpop.f32.mrb[0].mxu0
        %v867 = vadd.f32 0.0, %v866
        %v868 = vpop.f32.mrb[0].mxu0
        %869 = vmatprep.mubr.bf16.mxu0 0
        %870 = vmatmul.mubr.bf16.gmra.mrb[0].mxu0 %v711
        %v871 = vpop.f32.mrb[0].mxu0
        %v872 = vadd.f32 0.0, %v871
        %v873 = vpop.f32.mrb[0].mxu0
        %v874 = vpop.f32.mrb[0].mxu0
        %v875 = vadd.f32 0.0, %v874
        %v876 = vpop.f32.mrb[0].mxu0
        %877 = vdwg.mxu0
        %v910 = vunpack.c.l.b16 %v178
        %v911 = vunpack.c.l.b16 %v179
        %v912 = vunpack.c.l.b16 %v180
        %v913 = vunpack.c.l.b16 %v181
        %v914 = vunpack.c.l.b16 %v182
        %v915 = vunpack.c.l.b16 %v183
        %v916 = vunpack.c.l.b16 %v184
        %v917 = vunpack.c.l.b16 %v185
        %v918 = vunpack.c.l.b16 %v186
        %v919 = vunpack.c.l.b16 %v187
        %v920 = vunpack.c.l.b16 %v188
        %v921 = vunpack.c.l.b16 %v189
        %v922 = vunpack.c.l.b16 %v190
        %v923 = vunpack.c.l.b16 %v191
        %v924 = vunpack.c.l.b16 %v192
        %v925 = vunpack.c.l.b16 %v193
        %v926 = vunpack.c.l.b16 %v194
        %v927 = vunpack.c.l.b16 %v195
        %v928 = vunpack.c.l.b16 %v196
        %v929 = vunpack.c.l.b16 %v197
        %v930 = vunpack.c.l.b16 %v198
        %v931 = vunpack.c.l.b16 %v199
        %v932 = vunpack.c.l.b16 %v200
        %v933 = vunpack.c.l.b16 %v201
        %v934 = vunpack.c.l.b16 %v202
        %v935 = vunpack.c.l.b16 %v203
        %v936 = vunpack.c.l.b16 %v204
        %v937 = vunpack.c.l.b16 %v205
        %v938 = vunpack.c.l.b16 %v206
        %v939 = vunpack.c.l.b16 %v207
        %v940 = vunpack.c.l.b16 %v208
        %v941 = vunpack.c.l.b16 %v209
        %v942 = vpack.c.b16 %v911, %v910
        %v943 = vpack.c.b16 %v913, %v912
        %v944 = vpack.c.b16 %v915, %v914
        %v945 = vpack.c.b16 %v917, %v916
        %v946 = vpack.c.b16 %v919, %v918
        %v947 = vpack.c.b16 %v921, %v920
        %v948 = vpack.c.b16 %v923, %v922
        %v949 = vpack.c.b16 %v925, %v924
        %v950 = vpack.c.b16 %v927, %v926
        %v951 = vpack.c.b16 %v929, %v928
        %v952 = vpack.c.b16 %v931, %v930
        %v953 = vpack.c.b16 %v933, %v932
        %v954 = vpack.c.b16 %v935, %v934
        %v955 = vpack.c.b16 %v937, %v936
        %v956 = vpack.c.b16 %v939, %v938
        %v957 = vpack.c.b16 %v941, %v940
        %v959 = vsel %vm664, %v942, 0
        %v962 = vsel %vm664, %v943, 0
        %v965 = vsel %vm664, %v944, 0
        %v968 = vsel %vm664, %v945, 0
        %v971 = vsel %vm664, %v946, 0
        %v974 = vsel %vm664, %v947, 0
        %v977 = vsel %vm664, %v948, 0
        %v980 = vsel %vm664, %v949, 0
        %v983 = vsel %vm664, %v950, 0
        %v986 = vsel %vm664, %v951, 0
        %v989 = vsel %vm664, %v952, 0
        %v992 = vsel %vm664, %v953, 0
        %v995 = vsel %vm664, %v954, 0
        %v998 = vsel %vm664, %v955, 0
        %v1001 = vsel %vm664, %v956, 0
        %v1004 = vsel %vm664, %v957, 0
        %v1007 = vsel %vm713, %v210, 0
        %1009 = vmatprep.subr.bf16.mxu0 0
        %1010 = vmatpush1.bf16.msra.mxu0 %v1007
        %1011 = vmatprep.subr.bf16.mxu0 0
        %1012 = vmatpush1.bf16.msra.mxu0 0
        %1013 = vmatprep.subr.bf16.mxu0 0
        %1014 = vmatpush1.bf16.msra.mxu0 0
        %1015 = vmatprep.subr.bf16.mxu0 0
        %1016 = vmatpush1.bf16.msra.mxu0 0
        %1017 = vmatprep.subr.bf16.mxu0 0
        %1018 = vmatpush1.bf16.msra.mxu0 0
        %1019 = vmatprep.subr.bf16.mxu0 0
        %1020 = vmatpush1.bf16.msra.mxu0 0
        %1021 = vmatprep.subr.bf16.mxu0 0
        %1022 = vmatpush1.bf16.msra.mxu0 0
        %1023 = vmatprep.subr.bf16.mxu0 0
        %1024 = vmatpush1.bf16.msra.mxu0 0
        %1025 = vmatprep.subr.bf16.mxu0 0
        %1026 = vmatpush1.bf16.msra.mxu0 0
        %1027 = vmatprep.subr.bf16.mxu0 0
        %1028 = vmatpush1.bf16.msra.mxu0 0
        %1029 = vmatprep.subr.bf16.mxu0 0
        %1030 = vmatpush1.bf16.msra.mxu0 0
        %1031 = vmatprep.subr.bf16.mxu0 0
        %1032 = vmatpush1.bf16.msra.mxu0 0
        %1033 = vmatprep.subr.bf16.mxu0 0
        %1034 = vmatpush1.bf16.msra.mxu0 0
        %1035 = vmatprep.subr.bf16.mxu0 0
        %1036 = vmatpush1.bf16.msra.mxu0 0
        %1037 = vmatprep.subr.bf16.mxu0 0
        %1038 = vmatpush1.bf16.msra.mxu0 0
        %1039 = vmatprep.subr.bf16.mxu0 0
        %1040 = vmatpush1.bf16.msra.mxu0 0
        %1041 = vmatprep.mubr.bf16.mxu0 0
        %1042 = vmatmul.mubr.bf16.gmra.mrb[0].mxu0 %v959
        %v1043 = vpop.f32.mrb[0].mxu0
        %v1044 = vadd.f32 %v752, %v1043
        %v1045 = vpop.f32.mrb[0].mxu0
        %v1046 = vpop.f32.mrb[0].mxu0
        %v1047 = vadd.f32 %v755, %v1046
        %v1048 = vpop.f32.mrb[0].mxu0
        %1049 = vmatprep.mubr.bf16.mxu0 0
        %1050 = vmatmul.mubr.bf16.gmra.mrb[0].mxu0 %v962
        %v1051 = vpop.f32.mrb[0].mxu0
        %v1052 = vadd.f32 %v760, %v1051
        %v1053 = vpop.f32.mrb[0].mxu0
        %v1054 = vpop.f32.mrb[0].mxu0
        %v1055 = vadd.f32 %v763, %v1054
        %v1056 = vpop.f32.mrb[0].mxu0
        %1057 = vmatprep.mubr.bf16.mxu0 0
        %1058 = vmatmul.mubr.bf16.gmra.mrb[0].mxu0 %v965
        %v1059 = vpop.f32.mrb[0].mxu0
        %v1060 = vadd.f32 %v768, %v1059
        %v1061 = vpop.f32.mrb[0].mxu0
        %v1062 = vpop.f32.mrb[0].mxu0
        %v1063 = vadd.f32 %v771, %v1062
        %v1064 = vpop.f32.mrb[0].mxu0
        %1065 = vmatprep.mubr.bf16.mxu0 0
        %1066 = vmatmul.mubr.bf16.gmra.mrb[0].mxu0 %v968
        %v1067 = vpop.f32.mrb[0].mxu0
        %v1068 = vadd.f32 %v776, %v1067
        %v1069 = vpop.f32.mrb[0].mxu0
        %v1070 = vpop.f32.mrb[0].mxu0
        %v1071 = vadd.f32 %v779, %v1070
        %v1072 = vpop.f32.mrb[0].mxu0
        %1073 = vmatprep.mubr.bf16.mxu0 0
        %1074 = vmatmul.mubr.bf16.gmra.mrb[0].mxu0 %v971
        %v1075 = vpop.f32.mrb[0].mxu0
        %v1076 = vadd.f32 %v784, %v1075
        %v1077 = vpop.f32.mrb[0].mxu0
        %v1078 = vpop.f32.mrb[0].mxu0
        %v1079 = vadd.f32 %v787, %v1078
        %v1080 = vpop.f32.mrb[0].mxu0
        %1081 = vmatprep.mubr.bf16.mxu0 0
        %1082 = vmatmul.mubr.bf16.gmra.mrb[0].mxu0 %v974
        %v1083 = vpop.f32.mrb[0].mxu0
        %v1084 = vadd.f32 %v792, %v1083
        %v1085 = vpop.f32.mrb[0].mxu0
        %v1086 = vpop.f32.mrb[0].mxu0
        %v1087 = vadd.f32 %v795, %v1086
        %v1088 = vpop.f32.mrb[0].mxu0
        %1089 = vmatprep.mubr.bf16.mxu0 0
        %1090 = vmatmul.mubr.bf16.gmra.mrb[0].mxu0 %v977
        %v1091 = vpop.f32.mrb[0].mxu0
        %v1092 = vadd.f32 %v800, %v1091
        %v1093 = vpop.f32.mrb[0].mxu0
        %v1094 = vpop.f32.mrb[0].mxu0
        %v1095 = vadd.f32 %v803, %v1094
        %v1096 = vpop.f32.mrb[0].mxu0
        %1097 = vmatprep.mubr.bf16.mxu0 0
        %1098 = vmatmul.mubr.bf16.gmra.mrb[0].mxu0 %v980
        %v1099 = vpop.f32.mrb[0].mxu0
        %v1100 = vadd.f32 %v808, %v1099
        %v1101 = vpop.f32.mrb[0].mxu0
        %v1102 = vpop.f32.mrb[0].mxu0
        %v1103 = vadd.f32 %v811, %v1102
        %v1104 = vpop.f32.mrb[0].mxu0
        %1105 = vmatprep.mubr.bf16.mxu0 0
        %1106 = vmatmul.mubr.bf16.gmra.mrb[0].mxu0 %v983
        %v1107 = vpop.f32.mrb[0].mxu0
        %v1108 = vadd.f32 %v816, %v1107
        %v1109 = vpop.f32.mrb[0].mxu0
        %v1110 = vpop.f32.mrb[0].mxu0
        %v1111 = vadd.f32 %v819, %v1110
        %v1112 = vpop.f32.mrb[0].mxu0
        %1113 = vmatprep.mubr.bf16.mxu0 0
        %1114 = vmatmul.mubr.bf16.gmra.mrb[0].mxu0 %v986
        %v1115 = vpop.f32.mrb[0].mxu0
        %v1116 = vadd.f32 %v824, %v1115
        %v1117 = vpop.f32.mrb[0].mxu0
        %v1118 = vpop.f32.mrb[0].mxu0
        %v1119 = vadd.f32 %v827, %v1118
        %v1120 = vpop.f32.mrb[0].mxu0
        %1121 = vmatprep.mubr.bf16.mxu0 0
        %1122 = vmatmul.mubr.bf16.gmra.mrb[0].mxu0 %v989
        %v1123 = vpop.f32.mrb[0].mxu0
        %v1124 = vadd.f32 %v832, %v1123
        %v1125 = vpop.f32.mrb[0].mxu0
        %v1126 = vpop.f32.mrb[0].mxu0
        %v1127 = vadd.f32 %v835, %v1126
        %v1128 = vpop.f32.mrb[0].mxu0
        %1129 = vmatprep.mubr.bf16.mxu0 0
        %1130 = vmatmul.mubr.bf16.gmra.mrb[0].mxu0 %v992
        %v1131 = vpop.f32.mrb[0].mxu0
        %v1132 = vadd.f32 %v840, %v1131
        %v1133 = vpop.f32.mrb[0].mxu0
        %v1134 = vpop.f32.mrb[0].mxu0
        %v1135 = vadd.f32 %v843, %v1134
        %v1136 = vpop.f32.mrb[0].mxu0
        %1137 = vmatprep.mubr.bf16.mxu0 0
        %1138 = vmatmul.mubr.bf16.gmra.mrb[0].mxu0 %v995
        %v1139 = vpop.f32.mrb[0].mxu0
        %v1140 = vadd.f32 %v848, %v1139
        %v1141 = vpop.f32.mrb[0].mxu0
        %v1142 = vpop.f32.mrb[0].mxu0
        %v1143 = vadd.f32 %v851, %v1142
        %v1144 = vpop.f32.mrb[0].mxu0
        %1145 = vmatprep.mubr.bf16.mxu0 0
        %1146 = vmatmul.mubr.bf16.gmra.mrb[0].mxu0 %v998
        %v1147 = vpop.f32.mrb[0].mxu0
        %v1148 = vadd.f32 %v856, %v1147
        %v1149 = vpop.f32.mrb[0].mxu0
        %v1150 = vpop.f32.mrb[0].mxu0
        %v1151 = vadd.f32 %v859, %v1150
        %v1152 = vpop.f32.mrb[0].mxu0
        %1153 = vmatprep.mubr.bf16.mxu0 0
        %1154 = vmatmul.mubr.bf16.gmra.mrb[0].mxu0 %v1001
        %v1155 = vpop.f32.mrb[0].mxu0
        %v1156 = vadd.f32 %v864, %v1155
        %v1157 = vpop.f32.mrb[0].mxu0
        %v1158 = vpop.f32.mrb[0].mxu0
        %v1159 = vadd.f32 %v867, %v1158
        %v1160 = vpop.f32.mrb[0].mxu0
        %1161 = vmatprep.mubr.bf16.mxu0 0
        %1162 = vmatmul.mubr.bf16.gmra.mrb[0].mxu0 %v1004
        %v1163 = vpop.f32.mrb[0].mxu0
        %v1164 = vadd.f32 %v872, %v1163
        %v1165 = vpop.f32.mrb[0].mxu0
        %v1166 = vpop.f32.mrb[0].mxu0
        %v1167 = vadd.f32 %v875, %v1166
        %v1168 = vpop.f32.mrb[0].mxu0
        %1169 = vdwg.mxu0
        %v1170 = vld [vmem:[%s152] sm:$0xe]
        %v1171 = vld [vmem:[%s152 + $0xc] sm:$0xe]
        %v1172 = vld [vmem:[%s152 + $0x18] sm:$0xe]
        %v1173 = vld [vmem:[%s152 + $0x24] sm:$0xe]
        %v1174 = vld [vmem:[%s152 + $0x30] sm:$0xe]
        %v1175 = vld [vmem:[%s152 + $0x3c] sm:$0xe]
        %v1176 = vld [vmem:[%s152 + $0x48] sm:$0xe]
        %v1177 = vld [vmem:[%s152 + $0x54] sm:$0xe]
        %v1178 = vld [vmem:[%s152 + $0x60] sm:$0xe]
        %v1179 = vld [vmem:[%s152 + $0x6c] sm:$0xe]
        %v1180 = vld [vmem:[%s152 + $0x78] sm:$0xe]
        %v1181 = vld [vmem:[%s152 + $0x84] sm:$0xe]
        %v1182 = vld [vmem:[%s152 + $0x90] sm:$0xe]
        %v1183 = vld [vmem:[%s152 + $0x9c] sm:$0xe]
        %v1184 = vld [vmem:[%s152 + $0xa8] sm:$0xe]
        %v1185 = vld [vmem:[%s152 + $0xb4] sm:$0xe]
        %vm1218 = vcmask 1042432
        %vm1219 = vcmask 1046532
        %vm1220 = vmor %vm1218, %vm1219
        %v1221 = vrot.slane %v1170, 5
        %v1222 = vrot.slane %v1221, 4
        %v1223 = vrot.slane %v179, 5
        %v1224 = vsel %vm1220, %v1222, %v1223
        %v1225 = vrot.slane %v1223, 4
        %v1226 = vrot.slane %v211, 5
        %v1227 = vsel %vm1220, %v1225, %v1226
        %v1228 = vrot.slane %v1171, 5
        %v1229 = vrot.slane %v1228, 4
        %v1230 = vrot.slane %v181, 5
        %v1231 = vsel %vm1220, %v1229, %v1230
        %v1232 = vrot.slane %v1230, 4
        %v1233 = vrot.slane %v212, 5
        %v1234 = vsel %vm1220, %v1232, %v1233
        %v1235 = vrot.slane %v1172, 5
        %v1236 = vrot.slane %v1235, 4
        %v1237 = vrot.slane %v183, 5
        %v1238 = vsel %vm1220, %v1236, %v1237
        %v1239 = vrot.slane %v1237, 4
        %v1240 = vrot.slane %v213, 5
        %v1241 = vsel %vm1220, %v1239, %v1240
        %v1242 = vrot.slane %v1173, 5
        %v1243 = vrot.slane %v1242, 4
        %v1244 = vrot.slane %v185, 5
        %v1245 = vsel %vm1220, %v1243, %v1244
        %v1246 = vrot.slane %v1244, 4
        %v1247 = vrot.slane %v214, 5
        %v1248 = vsel %vm1220, %v1246, %v1247
        %v1249 = vrot.slane %v1174, 5
        %v1250 = vrot.slane %v1249, 4
        %v1251 = vrot.slane %v187, 5
        %v1252 = vsel %vm1220, %v1250, %v1251
        %v1253 = vrot.slane %v1251, 4
        %v1254 = vrot.slane %v215, 5
        %v1255 = vsel %vm1220, %v1253, %v1254
        %v1256 = vrot.slane %v1175, 5
        %v1257 = vrot.slane %v1256, 4
        %v1258 = vrot.slane %v189, 5
        %v1259 = vsel %vm1220, %v1257, %v1258
        %v1260 = vrot.slane %v1258, 4
        %v1261 = vrot.slane %v216, 5
        %v1262 = vsel %vm1220, %v1260, %v1261
        %v1263 = vrot.slane %v1176, 5
        %v1264 = vrot.slane %v1263, 4
        %v1265 = vrot.slane %v191, 5
        %v1266 = vsel %vm1220, %v1264, %v1265
        %v1267 = vrot.slane %v1265, 4
        %v1268 = vrot.slane %v217, 5
        %v1269 = vsel %vm1220, %v1267, %v1268
        %v1270 = vrot.slane %v1177, 5
        %v1271 = vrot.slane %v1270, 4
        %v1272 = vrot.slane %v193, 5
        %v1273 = vsel %vm1220, %v1271, %v1272
        %v1274 = vrot.slane %v1272, 4
        %v1275 = vrot.slane %v218, 5
        %v1276 = vsel %vm1220, %v1274, %v1275
        %v1277 = vrot.slane %v1178, 5
        %v1278 = vrot.slane %v1277, 4
        %v1279 = vrot.slane %v195, 5
        %v1280 = vsel %vm1220, %v1278, %v1279
        %v1281 = vrot.slane %v1279, 4
        %v1282 = vrot.slane %v219, 5
        %v1283 = vsel %vm1220, %v1281, %v1282
        %v1284 = vrot.slane %v1179, 5
        %v1285 = vrot.slane %v1284, 4
        %v1286 = vrot.slane %v197, 5
        %v1287 = vsel %vm1220, %v1285, %v1286
        %v1288 = vrot.slane %v1286, 4
        %v1289 = vrot.slane %v220, 5
        %v1290 = vsel %vm1220, %v1288, %v1289
        %v1291 = vrot.slane %v1180, 5
        %v1292 = vrot.slane %v1291, 4
        %v1293 = vrot.slane %v199, 5
        %v1294 = vsel %vm1220, %v1292, %v1293
        %v1295 = vrot.slane %v1293, 4
        %v1296 = vrot.slane %v221, 5
        %v1297 = vsel %vm1220, %v1295, %v1296
        %v1298 = vrot.slane %v1181, 5
        %v1299 = vrot.slane %v1298, 4
        %v1300 = vrot.slane %v201, 5
        %v1301 = vsel %vm1220, %v1299, %v1300
        %v1302 = vrot.slane %v1300, 4
        %v1303 = vrot.slane %v222, 5
        %v1304 = vsel %vm1220, %v1302, %v1303
        %v1305 = vrot.slane %v1182, 5
        %v1306 = vrot.slane %v1305, 4
        %v1307 = vrot.slane %v203, 5
        %v1308 = vsel %vm1220, %v1306, %v1307
        %v1309 = vrot.slane %v1307, 4
        %v1310 = vrot.slane %v223, 5
        %v1311 = vsel %vm1220, %v1309, %v1310
        %v1312 = vrot.slane %v1183, 5
        %v1313 = vrot.slane %v1312, 4
        %v1314 = vrot.slane %v205, 5
        %v1315 = vsel %vm1220, %v1313, %v1314
        %v1316 = vrot.slane %v1314, 4
        %v1317 = vrot.slane %v224, 5
        %v1318 = vsel %vm1220, %v1316, %v1317
        %v1319 = vrot.slane %v1184, 5
        %v1320 = vrot.slane %v1319, 4
        %v1321 = vrot.slane %v207, 5
        %v1322 = vsel %vm1220, %v1320, %v1321
        %v1323 = vrot.slane %v1321, 4
        %v1324 = vrot.slane %v225, 5
        %v1325 = vsel %vm1220, %v1323, %v1324
        %v1326 = vrot.slane %v1185, 5
        %v1327 = vrot.slane %v1326, 4
        %v1328 = vrot.slane %v209, 5
        %v1329 = vsel %vm1220, %v1327, %v1328
        %v1330 = vrot.slane %v1328, 4
        %v1331 = vrot.slane %v226, 5
        %v1332 = vsel %vm1220, %v1330, %v1331
        %s1333 = scalar_lea.vmem [#allocation5], 4
        %v1334 = vld [vmem:[%s1333] sm:$0x3]
        %v1335 = vunpack.c.l.b16 %v1224
        %v1336 = vunpack.c.l.b16 %v1227
        %v1337 = vunpack.c.l.b16 %v1231
        %v1338 = vunpack.c.l.b16 %v1234
        %v1339 = vunpack.c.l.b16 %v1238
        %v1340 = vunpack.c.l.b16 %v1241
        %v1341 = vunpack.c.l.b16 %v1245
        %v1342 = vunpack.c.l.b16 %v1248
        %v1343 = vunpack.c.l.b16 %v1252
        %v1344 = vunpack.c.l.b16 %v1255
        %v1345 = vunpack.c.l.b16 %v1259
        %v1346 = vunpack.c.l.b16 %v1262
        %v1347 = vunpack.c.l.b16 %v1266
        %v1348 = vunpack.c.l.b16 %v1269
        %v1349 = vunpack.c.l.b16 %v1273
        %v1350 = vunpack.c.l.b16 %v1276
        %v1351 = vunpack.c.l.b16 %v1280
        %v1352 = vunpack.c.l.b16 %v1283
        %v1353 = vunpack.c.l.b16 %v1287
        %v1354 = vunpack.c.l.b16 %v1290
        %v1355 = vunpack.c.l.b16 %v1294
        %v1356 = vunpack.c.l.b16 %v1297
        %v1357 = vunpack.c.l.b16 %v1301
        %v1358 = vunpack.c.l.b16 %v1304
        %v1359 = vunpack.c.l.b16 %v1308
        %v1360 = vunpack.c.l.b16 %v1311
        %v1361 = vunpack.c.l.b16 %v1315
        %v1362 = vunpack.c.l.b16 %v1318
        %v1363 = vunpack.c.l.b16 %v1322
        %v1364 = vunpack.c.l.b16 %v1325
        %v1365 = vunpack.c.l.b16 %v1329
        %v1366 = vunpack.c.l.b16 %v1332
        %v1367 = vpack.c.b16 %v1336, %v1335
        %v1368 = vpack.c.b16 %v1338, %v1337
        %v1369 = vpack.c.b16 %v1340, %v1339
        %v1370 = vpack.c.b16 %v1342, %v1341
        %v1371 = vpack.c.b16 %v1344, %v1343
        %v1372 = vpack.c.b16 %v1346, %v1345
        %v1373 = vpack.c.b16 %v1348, %v1347
        %v1374 = vpack.c.b16 %v1350, %v1349
        %v1375 = vpack.c.b16 %v1352, %v1351
        %v1376 = vpack.c.b16 %v1354, %v1353
        %v1377 = vpack.c.b16 %v1356, %v1355
        %v1378 = vpack.c.b16 %v1358, %v1357
        %v1379 = vpack.c.b16 %v1360, %v1359
        %v1380 = vpack.c.b16 %v1362, %v1361
        %v1381 = vpack.c.b16 %v1364, %v1363
        %v1382 = vpack.c.b16 %v1366, %v1365
        %v1384 = vsel %vm664, %v1367, 0
        %v1387 = vsel %vm664, %v1368, 0
        %v1390 = vsel %vm664, %v1369, 0
        %v1393 = vsel %vm664, %v1370, 0
        %v1396 = vsel %vm664, %v1371, 0
        %v1399 = vsel %vm664, %v1372, 0
        %v1402 = vsel %vm664, %v1373, 0
        %v1405 = vsel %vm664, %v1374, 0
        %v1408 = vsel %vm664, %v1375, 0
        %v1411 = vsel %vm664, %v1376, 0
        %v1414 = vsel %vm664, %v1377, 0
        %v1417 = vsel %vm664, %v1378, 0
        %v1420 = vsel %vm664, %v1379, 0
        %v1423 = vsel %vm664, %v1380, 0
        %v1426 = vsel %vm664, %v1381, 0
        %v1429 = vsel %vm664, %v1382, 0
        %v1432 = vsel %vm713, %v1334, 0
        %1434 = vmatprep.subr.bf16.mxu0 0
        %1435 = vmatpush1.bf16.msra.mxu0 %v1432
        %1436 = vmatprep.subr.bf16.mxu0 0
        %1437 = vmatpush1.bf16.msra.mxu0 0
        %1438 = vmatprep.subr.bf16.mxu0 0
        %1439 = vmatpush1.bf16.msra.mxu0 0
        %1440 = vmatprep.subr.bf16.mxu0 0
        %1441 = vmatpush1.bf16.msra.mxu0 0
        %1442 = vmatprep.subr.bf16.mxu0 0
        %1443 = vmatpush1.bf16.msra.mxu0 0
        %1444 = vmatprep.subr.bf16.mxu0 0
        %1445 = vmatpush1.bf16.msra.mxu0 0
        %1446 = vmatprep.subr.bf16.mxu0 0
        %1447 = vmatpush1.bf16.msra.mxu0 0
        %1448 = vmatprep.subr.bf16.mxu0 0
        %1449 = vmatpush1.bf16.msra.mxu0 0
        %1450 = vmatprep.subr.bf16.mxu0 0
        %1451 = vmatpush1.bf16.msra.mxu0 0
        %1452 = vmatprep.subr.bf16.mxu0 0
        %1453 = vmatpush1.bf16.msra.mxu0 0
        %1454 = vmatprep.subr.bf16.mxu0 0
        %1455 = vmatpush1.bf16.msra.mxu0 0
        %1456 = vmatprep.subr.bf16.mxu0 0
        %1457 = vmatpush1.bf16.msra.mxu0 0
        %1458 = vmatprep.subr.bf16.mxu0 0
        %1459 = vmatpush1.bf16.msra.mxu0 0
        %1460 = vmatprep.subr.bf16.mxu0 0
        %1461 = vmatpush1.bf16.msra.mxu0 0
        %1462 = vmatprep.subr.bf16.mxu0 0
        %1463 = vmatpush1.bf16.msra.mxu0 0
        %1464 = vmatprep.subr.bf16.mxu0 0
        %1465 = vmatpush1.bf16.msra.mxu0 0
        %1466 = vmatprep.mubr.bf16.mxu0 0
        %1467 = vmatmul.mubr.bf16.gmra.mrb[0].mxu0 %v1384
        %v1468 = vpop.f32.mrb[0].mxu0
        %v1469 = vadd.f32 0.0, %v1468
        %v1470 = vpop.f32.mrb[0].mxu0
        %v1471 = vpop.f32.mrb[0].mxu0
        %v1472 = vadd.f32 0.0, %v1471
        %v1473 = vpop.f32.mrb[0].mxu0
        %1474 = vmatprep.mubr.bf16.mxu0 0
        %1475 = vmatmul.mubr.bf16.gmra.mrb[0].mxu0 %v1387
        %v1476 = vpop.f32.mrb[0].mxu0
        %v1477 = vadd.f32 0.0, %v1476
        %v1478 = vpop.f32.mrb[0].mxu0
        %v1479 = vpop.f32.mrb[0].mxu0
        %v1480 = vadd.f32 0.0, %v1479
        %v1481 = vpop.f32.mrb[0].mxu0
        %1482 = vmatprep.mubr.bf16.mxu0 0
        %1483 = vmatmul.mubr.bf16.gmra.mrb[0].mxu0 %v1390
        %v1484 = vpop.f32.mrb[0].mxu0
        %v1485 = vadd.f32 0.0, %v1484
        %v1486 = vpop.f32.mrb[0].mxu0
        %v1487 = vpop.f32.mrb[0].mxu0
        %v1488 = vadd.f32 0.0, %v1487
        %v1489 = vpop.f32.mrb[0].mxu0
        %1490 = vmatprep.mubr.bf16.mxu0 0
        %1491 = vmatmul.mubr.bf16.gmra.mrb[0].mxu0 %v1393
        %v1492 = vpop.f32.mrb[0].mxu0
        %v1493 = vadd.f32 0.0, %v1492
        %v1494 = vpop.f32.mrb[0].mxu0
        %v1495 = vpop.f32.mrb[0].mxu0
        %v1496 = vadd.f32 0.0, %v1495
        %v1497 = vpop.f32.mrb[0].mxu0
        %1498 = vmatprep.mubr.bf16.mxu0 0
        %1499 = vmatmul.mubr.bf16.gmra.mrb[0].mxu0 %v1396
        %v1500 = vpop.f32.mrb[0].mxu0
        %v1501 = vadd.f32 0.0, %v1500
        %v1502 = vpop.f32.mrb[0].mxu0
        %v1503 = vpop.f32.mrb[0].mxu0
        %v1504 = vadd.f32 0.0, %v1503
        %v1505 = vpop.f32.mrb[0].mxu0
        %1506 = vmatprep.mubr.bf16.mxu0 0
        %1507 = vmatmul.mubr.bf16.gmra.mrb[0].mxu0 %v1399
        %v1508 = vpop.f32.mrb[0].mxu0
        %v1509 = vadd.f32 0.0, %v1508
        %v1510 = vpop.f32.mrb[0].mxu0
        %v1511 = vpop.f32.mrb[0].mxu0
        %v1512 = vadd.f32 0.0, %v1511
        %v1513 = vpop.f32.mrb[0].mxu0
        %1514 = vmatprep.mubr.bf16.mxu0 0
        %1515 = vmatmul.mubr.bf16.gmra.mrb[0].mxu0 %v1402
        %v1516 = vpop.f32.mrb[0].mxu0
        %v1517 = vadd.f32 0.0, %v1516
        %v1518 = vpop.f32.mrb[0].mxu0
        %v1519 = vpop.f32.mrb[0].mxu0
        %v1520 = vadd.f32 0.0, %v1519
        %v1521 = vpop.f32.mrb[0].mxu0
        %1522 = vmatprep.mubr.bf16.mxu0 0
        %1523 = vmatmul.mubr.bf16.gmra.mrb[0].mxu0 %v1405
        %v1524 = vpop.f32.mrb[0].mxu0
        %v1525 = vadd.f32 0.0, %v1524
        %v1526 = vpop.f32.mrb[0].mxu0
        %v1527 = vpop.f32.mrb[0].mxu0
        %v1528 = vadd.f32 0.0, %v1527
        %v1529 = vpop.f32.mrb[0].mxu0
        %1530 = vmatprep.mubr.bf16.mxu0 0
        %1531 = vmatmul.mubr.bf16.gmra.mrb[0].mxu0 %v1408
        %v1532 = vpop.f32.mrb[0].mxu0
        %v1533 = vadd.f32 0.0, %v1532
        %v1534 = vpop.f32.mrb[0].mxu0
        %v1535 = vpop.f32.mrb[0].mxu0
        %v1536 = vadd.f32 0.0, %v1535
        %v1537 = vpop.f32.mrb[0].mxu0
        %1538 = vmatprep.mubr.bf16.mxu0 0
        %1539 = vmatmul.mubr.bf16.gmra.mrb[0].mxu0 %v1411
        %v1540 = vpop.f32.mrb[0].mxu0
        %v1541 = vadd.f32 0.0, %v1540
        %v1542 = vpop.f32.mrb[0].mxu0
        %v1543 = vpop.f32.mrb[0].mxu0
        %v1544 = vadd.f32 0.0, %v1543
        %v1545 = vpop.f32.mrb[0].mxu0
        %1546 = vmatprep.mubr.bf16.mxu0 0
        %1547 = vmatmul.mubr.bf16.gmra.mrb[0].mxu0 %v1414
        %v1548 = vpop.f32.mrb[0].mxu0
        %v1549 = vadd.f32 0.0, %v1548
        %v1550 = vpop.f32.mrb[0].mxu0
        %v1551 = vpop.f32.mrb[0].mxu0
        %v1552 = vadd.f32 0.0, %v1551
        %v1553 = vpop.f32.mrb[0].mxu0
        %1554 = vmatprep.mubr.bf16.mxu0 0
        %1555 = vmatmul.mubr.bf16.gmra.mrb[0].mxu0 %v1417
        %v1556 = vpop.f32.mrb[0].mxu0
        %v1557 = vadd.f32 0.0, %v1556
        %v1558 = vpop.f32.mrb[0].mxu0
        %v1559 = vpop.f32.mrb[0].mxu0
        %v1560 = vadd.f32 0.0, %v1559
        %v1561 = vpop.f32.mrb[0].mxu0
        %1562 = vmatprep.mubr.bf16.mxu0 0
        %1563 = vmatmul.mubr.bf16.gmra.mrb[0].mxu0 %v1420
        %v1564 = vpop.f32.mrb[0].mxu0
        %v1565 = vadd.f32 0.0, %v1564
        %v1566 = vpop.f32.mrb[0].mxu0
        %v1567 = vpop.f32.mrb[0].mxu0
        %v1568 = vadd.f32 0.0, %v1567
        %v1569 = vpop.f32.mrb[0].mxu0
        %1570 = vmatprep.mubr.bf16.mxu0 0
        %1571 = vmatmul.mubr.bf16.gmra.mrb[0].mxu0 %v1423
        %v1572 = vpop.f32.mrb[0].mxu0
        %v1573 = vadd.f32 0.0, %v1572
        %v1574 = vpop.f32.mrb[0].mxu0
        %v1575 = vpop.f32.mrb[0].mxu0
        %v1576 = vadd.f32 0.0, %v1575
        %v1577 = vpop.f32.mrb[0].mxu0
        %1578 = vmatprep.mubr.bf16.mxu0 0
        %1579 = vmatmul.mubr.bf16.gmra.mrb[0].mxu0 %v1426
        %v1580 = vpop.f32.mrb[0].mxu0
        %v1581 = vadd.f32 0.0, %v1580
        %v1582 = vpop.f32.mrb[0].mxu0
        %v1583 = vpop.f32.mrb[0].mxu0
        %v1584 = vadd.f32 0.0, %v1583
        %v1585 = vpop.f32.mrb[0].mxu0
        %1586 = vmatprep.mubr.bf16.mxu0 0
        %1587 = vmatmul.mubr.bf16.gmra.mrb[0].mxu0 %v1429
        %v1588 = vpop.f32.mrb[0].mxu0
        %v1589 = vadd.f32 0.0, %v1588
        %v1590 = vpop.f32.mrb[0].mxu0
        %v1591 = vpop.f32.mrb[0].mxu0
        %v1592 = vadd.f32 0.0, %v1591
        %v1593 = vpop.f32.mrb[0].mxu0
        %1594 = vdwg.mxu0
        %v1595 = vadd.f32 %v1044, %v1469
        %v1596 = vadd.f32 %v1047, %v1472
        %v1597 = vadd.f32 %v1052, %v1477
        %v1598 = vadd.f32 %v1055, %v1480
        %v1599 = vadd.f32 %v1060, %v1485
        %v1600 = vadd.f32 %v1063, %v1488
        %v1601 = vadd.f32 %v1068, %v1493
        %v1602 = vadd.f32 %v1071, %v1496
        %v1603 = vadd.f32 %v1076, %v1501
        %v1604 = vadd.f32 %v1079, %v1504
        %v1605 = vadd.f32 %v1084, %v1509
        %v1606 = vadd.f32 %v1087, %v1512
        %v1607 = vadd.f32 %v1092, %v1517
        %v1608 = vadd.f32 %v1095, %v1520
        %v1609 = vadd.f32 %v1100, %v1525
        %v1610 = vadd.f32 %v1103, %v1528
        %v1611 = vadd.f32 %v1108, %v1533
        %v1612 = vadd.f32 %v1111, %v1536
        %v1613 = vadd.f32 %v1116, %v1541
        %v1614 = vadd.f32 %v1119, %v1544
        %v1615 = vadd.f32 %v1124, %v1549
        %v1616 = vadd.f32 %v1127, %v1552
        %v1617 = vadd.f32 %v1132, %v1557
        %v1618 = vadd.f32 %v1135, %v1560
        %v1619 = vadd.f32 %v1140, %v1565
        %v1620 = vadd.f32 %v1143, %v1568
        %v1621 = vadd.f32 %v1148, %v1573
        %v1622 = vadd.f32 %v1151, %v1576
        %v1623 = vadd.f32 %v1156, %v1581
        %v1624 = vadd.f32 %v1159, %v1584
        %v1625 = vadd.f32 %v1164, %v1589
        %v1626 = vadd.f32 %v1167, %v1592
        %s1627 = scalar_lea.vmem %s152, 12 [#allocation2]
        %v1628 = vld [vmem:[%s1627] sm:$0xf]
        %v1629 = vld [vmem:[%s1627 + $0x4] sm:$0xf]
        %v1630 = vld [vmem:[%s1627 + $0xc] sm:$0xf]
        %v1631 = vld [vmem:[%s1627 + $0x10] sm:$0xf]
        %v1632 = vld [vmem:[%s1627 + $0x18] sm:$0xf]
        %v1633 = vld [vmem:[%s1627 + $0x1c] sm:$0xf]
        %v1634 = vld [vmem:[%s1627 + $0x24] sm:$0xf]
        %v1635 = vld [vmem:[%s1627 + $0x28] sm:$0xf]
        %v1636 = vld [vmem:[%s1627 + $0x30] sm:$0xf]
        %v1637 = vld [vmem:[%s1627 + $0x34] sm:$0xf]
        %v1638 = vld [vmem:[%s1627 + $0x3c] sm:$0xf]
        %v1639 = vld [vmem:[%s1627 + $0x40] sm:$0xf]
        %v1640 = vld [vmem:[%s1627 + $0x48] sm:$0xf]
        %v1641 = vld [vmem:[%s1627 + $0x4c] sm:$0xf]
        %v1642 = vld [vmem:[%s1627 + $0x54] sm:$0xf]
        %v1643 = vld [vmem:[%s1627 + $0x58] sm:$0xf]
        %v1644 = vld [vmem:[%s1627 + $0x60] sm:$0xf]
        %v1645 = vld [vmem:[%s1627 + $0x64] sm:$0xf]
        %v1646 = vld [vmem:[%s1627 + $0x6c] sm:$0xf]
        %v1647 = vld [vmem:[%s1627 + $0x70] sm:$0xf]
        %v1648 = vld [vmem:[%s1627 + $0x78] sm:$0xf]
        %v1649 = vld [vmem:[%s1627 + $0x7c] sm:$0xf]
        %v1650 = vld [vmem:[%s1627 + $0x84] sm:$0xf]
        %v1651 = vld [vmem:[%s1627 + $0x88] sm:$0xf]
        %v1652 = vld [vmem:[%s1627 + $0x90] sm:$0xf]
        %v1653 = vld [vmem:[%s1627 + $0x94] sm:$0xf]
        %v1654 = vld [vmem:[%s1627 + $0x9c] sm:$0xf]
        %v1655 = vld [vmem:[%s1627 + $0xa0] sm:$0xf]
        %v1656 = vld [vmem:[%s1627 + $0xa8] sm:$0xf]
        %v1657 = vld [vmem:[%s1627 + $0xac] sm:$0xf]
        %v1658 = vld [vmem:[%s1627 + $0xb4] sm:$0xf]
        %v1659 = vld [vmem:[%s1627 + $0xb8] sm:$0xf]
        %s1660 = scalar_lea.vmem [#allocation5], 6
        %v1661 = vld [vmem:[%s1660] sm:$0x3]
        %v1694 = vunpack.c.l.b16 %v1628
        %v1695 = vunpack.c.l.b16 %v1629
        %v1696 = vunpack.c.l.b16 %v1630
        %v1697 = vunpack.c.l.b16 %v1631
        %v1698 = vunpack.c.l.b16 %v1632
        %v1699 = vunpack.c.l.b16 %v1633
        %v1700 = vunpack.c.l.b16 %v1634
        %v1701 = vunpack.c.l.b16 %v1635
        %v1702 = vunpack.c.l.b16 %v1636
        %v1703 = vunpack.c.l.b16 %v1637
        %v1704 = vunpack.c.l.b16 %v1638
        %v1705 = vunpack.c.l.b16 %v1639
        %v1706 = vunpack.c.l.b16 %v1640
        %v1707 = vunpack.c.l.b16 %v1641
        %v1708 = vunpack.c.l.b16 %v1642
        %v1709 = vunpack.c.l.b16 %v1643
        %v1710 = vunpack.c.l.b16 %v1644
        %v1711 = vunpack.c.l.b16 %v1645
        %v1712 = vunpack.c.l.b16 %v1646
        %v1713 = vunpack.c.l.b16 %v1647
        %v1714 = vunpack.c.l.b16 %v1648
        %v1715 = vunpack.c.l.b16 %v1649
        %v1716 = vunpack.c.l.b16 %v1650
        %v1717 = vunpack.c.l.b16 %v1651
        %v1718 = vunpack.c.l.b16 %v1652
        %v1719 = vunpack.c.l.b16 %v1653
        %v1720 = vunpack.c.l.b16 %v1654
        %v1721 = vunpack.c.l.b16 %v1655
        %v1722 = vunpack.c.l.b16 %v1656
        %v1723 = vunpack.c.l.b16 %v1657
        %v1724 = vunpack.c.l.b16 %v1658
        %v1725 = vunpack.c.l.b16 %v1659
        %v1726 = vpack.c.b16 %v1695, %v1694
        %v1727 = vpack.c.b16 %v1697, %v1696
        %v1728 = vpack.c.b16 %v1699, %v1698
        %v1729 = vpack.c.b16 %v1701, %v1700
        %v1730 = vpack.c.b16 %v1703, %v1702
        %v1731 = vpack.c.b16 %v1705, %v1704
        %v1732 = vpack.c.b16 %v1707, %v1706
        %v1733 = vpack.c.b16 %v1709, %v1708
        %v1734 = vpack.c.b16 %v1711, %v1710
        %v1735 = vpack.c.b16 %v1713, %v1712
        %v1736 = vpack.c.b16 %v1715, %v1714
        %v1737 = vpack.c.b16 %v1717, %v1716
        %v1738 = vpack.c.b16 %v1719, %v1718
        %v1739 = vpack.c.b16 %v1721, %v1720
        %v1740 = vpack.c.b16 %v1723, %v1722
        %v1741 = vpack.c.b16 %v1725, %v1724
        %v1743 = vsel %vm664, %v1726, 0
        %v1746 = vsel %vm664, %v1727, 0
        %v1749 = vsel %vm664, %v1728, 0
        %v1752 = vsel %vm664, %v1729, 0
        %v1755 = vsel %vm664, %v1730, 0
        %v1758 = vsel %vm664, %v1731, 0
        %v1761 = vsel %vm664, %v1732, 0
        %v1764 = vsel %vm664, %v1733, 0
        %v1767 = vsel %vm664, %v1734, 0
        %v1770 = vsel %vm664, %v1735, 0
        %v1773 = vsel %vm664, %v1736, 0
        %v1776 = vsel %vm664, %v1737, 0
        %v1779 = vsel %vm664, %v1738, 0
        %v1782 = vsel %vm664, %v1739, 0
        %v1785 = vsel %vm664, %v1740, 0
        %v1788 = vsel %vm664, %v1741, 0
        %v1791 = vsel %vm713, %v1661, 0
        %1793 = vmatprep.subr.bf16.mxu0 0
        %1794 = vmatpush1.bf16.msra.mxu0 %v1791
        %1795 = vmatprep.subr.bf16.mxu0 0
        %1796 = vmatpush1.bf16.msra.mxu0 0
        %1797 = vmatprep.subr.bf16.mxu0 0
        %1798 = vmatpush1.bf16.msra.mxu0 0
        %1799 = vmatprep.subr.bf16.mxu0 0
        %1800 = vmatpush1.bf16.msra.mxu0 0
        %1801 = vmatprep.subr.bf16.mxu0 0
        %1802 = vmatpush1.bf16.msra.mxu0 0
        %1803 = vmatprep.subr.bf16.mxu0 0
        %1804 = vmatpush1.bf16.msra.mxu0 0
        %1805 = vmatprep.subr.bf16.mxu0 0
        %1806 = vmatpush1.bf16.msra.mxu0 0
        %1807 = vmatprep.subr.bf16.mxu0 0
        %1808 = vmatpush1.bf16.msra.mxu0 0
        %1809 = vmatprep.subr.bf16.mxu0 0
        %1810 = vmatpush1.bf16.msra.mxu0 0
        %1811 = vmatprep.subr.bf16.mxu0 0
        %1812 = vmatpush1.bf16.msra.mxu0 0
        %1813 = vmatprep.subr.bf16.mxu0 0
        %1814 = vmatpush1.bf16.msra.mxu0 0
        %1815 = vmatprep.subr.bf16.mxu0 0
        %1816 = vmatpush1.bf16.msra.mxu0 0
        %1817 = vmatprep.subr.bf16.mxu0 0
        %1818 = vmatpush1.bf16.msra.mxu0 0
        %1819 = vmatprep.subr.bf16.mxu0 0
        %1820 = vmatpush1.bf16.msra.mxu0 0
        %1821 = vmatprep.subr.bf16.mxu0 0
        %1822 = vmatpush1.bf16.msra.mxu0 0
        %1823 = vmatprep.subr.bf16.mxu0 0
        %1824 = vmatpush1.bf16.msra.mxu0 0
        %1825 = vmatprep.mubr.bf16.mxu0 0
        %1826 = vmatmul.mubr.bf16.gmra.mrb[0].mxu0 %v1743
        %v1827 = vpop.f32.mrb[0].mxu0
        %v1828 = vadd.f32 0.0, %v1827
        %v1829 = vpop.f32.mrb[0].mxu0
        %v1830 = vpop.f32.mrb[0].mxu0
        %v1831 = vadd.f32 0.0, %v1830
        %v1832 = vpop.f32.mrb[0].mxu0
        %1833 = vmatprep.mubr.bf16.mxu0 0
        %1834 = vmatmul.mubr.bf16.gmra.mrb[0].mxu0 %v1746
        %v1835 = vpop.f32.mrb[0].mxu0
        %v1836 = vadd.f32 0.0, %v1835
        %v1837 = vpop.f32.mrb[0].mxu0
        %v1838 = vpop.f32.mrb[0].mxu0
        %v1839 = vadd.f32 0.0, %v1838
        %v1840 = vpop.f32.mrb[0].mxu0
        %1841 = vmatprep.mubr.bf16.mxu0 0
        %1842 = vmatmul.mubr.bf16.gmra.mrb[0].mxu0 %v1749
        %v1843 = vpop.f32.mrb[0].mxu0
        %v1844 = vadd.f32 0.0, %v1843
        %v1845 = vpop.f32.mrb[0].mxu0
        %v1846 = vpop.f32.mrb[0].mxu0
        %v1847 = vadd.f32 0.0, %v1846
        %v1848 = vpop.f32.mrb[0].mxu0
        %1849 = vmatprep.mubr.bf16.mxu0 0
        %1850 = vmatmul.mubr.bf16.gmra.mrb[0].mxu0 %v1752
        %v1851 = vpop.f32.mrb[0].mxu0
        %v1852 = vadd.f32 0.0, %v1851
        %v1853 = vpop.f32.mrb[0].mxu0
        %v1854 = vpop.f32.mrb[0].mxu0
        %v1855 = vadd.f32 0.0, %v1854
        %v1856 = vpop.f32.mrb[0].mxu0
        %1857 = vmatprep.mubr.bf16.mxu0 0
        %1858 = vmatmul.mubr.bf16.gmra.mrb[0].mxu0 %v1755
        %v1859 = vpop.f32.mrb[0].mxu0
        %v1860 = vadd.f32 0.0, %v1859
        %v1861 = vpop.f32.mrb[0].mxu0
        %v1862 = vpop.f32.mrb[0].mxu0
        %v1863 = vadd.f32 0.0, %v1862
        %v1864 = vpop.f32.mrb[0].mxu0
        %1865 = vmatprep.mubr.bf16.mxu0 0
        %1866 = vmatmul.mubr.bf16.gmra.mrb[0].mxu0 %v1758
        %v1867 = vpop.f32.mrb[0].mxu0
        %v1868 = vadd.f32 0.0, %v1867
        %v1869 = vpop.f32.mrb[0].mxu0
        %v1870 = vpop.f32.mrb[0].mxu0
        %v1871 = vadd.f32 0.0, %v1870
        %v1872 = vpop.f32.mrb[0].mxu0
        %1873 = vmatprep.mubr.bf16.mxu0 0
        %1874 = vmatmul.mubr.bf16.gmra.mrb[0].mxu0 %v1761
        %v1875 = vpop.f32.mrb[0].mxu0
        %v1876 = vadd.f32 0.0, %v1875
        %v1877 = vpop.f32.mrb[0].mxu0
        %v1878 = vpop.f32.mrb[0].mxu0
        %v1879 = vadd.f32 0.0, %v1878
        %v1880 = vpop.f32.mrb[0].mxu0
        %1881 = vmatprep.mubr.bf16.mxu0 0
        %1882 = vmatmul.mubr.bf16.gmra.mrb[0].mxu0 %v1764
        %v1883 = vpop.f32.mrb[0].mxu0
        %v1884 = vadd.f32 0.0, %v1883
        %v1885 = vpop.f32.mrb[0].mxu0
        %v1886 = vpop.f32.mrb[0].mxu0
        %v1887 = vadd.f32 0.0, %v1886
        %v1888 = vpop.f32.mrb[0].mxu0
        %1889 = vmatprep.mubr.bf16.mxu0 0
        %1890 = vmatmul.mubr.bf16.gmra.mrb[0].mxu0 %v1767
        %v1891 = vpop.f32.mrb[0].mxu0
        %v1892 = vadd.f32 0.0, %v1891
        %v1893 = vpop.f32.mrb[0].mxu0
        %v1894 = vpop.f32.mrb[0].mxu0
        %v1895 = vadd.f32 0.0, %v1894
        %v1896 = vpop.f32.mrb[0].mxu0
        %1897 = vmatprep.mubr.bf16.mxu0 0
        %1898 = vmatmul.mubr.bf16.gmra.mrb[0].mxu0 %v1770
        %v1899 = vpop.f32.mrb[0].mxu0
        %v1900 = vadd.f32 0.0, %v1899
        %v1901 = vpop.f32.mrb[0].mxu0
        %v1902 = vpop.f32.mrb[0].mxu0
        %v1903 = vadd.f32 0.0, %v1902
        %v1904 = vpop.f32.mrb[0].mxu0
        %1905 = vmatprep.mubr.bf16.mxu0 0
        %1906 = vmatmul.mubr.bf16.gmra.mrb[0].mxu0 %v1773
        %v1907 = vpop.f32.mrb[0].mxu0
        %v1908 = vadd.f32 0.0, %v1907
        %v1909 = vpop.f32.mrb[0].mxu0
        %v1910 = vpop.f32.mrb[0].mxu0
        %v1911 = vadd.f32 0.0, %v1910
        %v1912 = vpop.f32.mrb[0].mxu0
        %1913 = vmatprep.mubr.bf16.mxu0 0
        %1914 = vmatmul.mubr.bf16.gmra.mrb[0].mxu0 %v1776
        %v1915 = vpop.f32.mrb[0].mxu0
        %v1916 = vadd.f32 0.0, %v1915
        %v1917 = vpop.f32.mrb[0].mxu0
        %v1918 = vpop.f32.mrb[0].mxu0
        %v1919 = vadd.f32 0.0, %v1918
        %v1920 = vpop.f32.mrb[0].mxu0
        %1921 = vmatprep.mubr.bf16.mxu0 0
        %1922 = vmatmul.mubr.bf16.gmra.mrb[0].mxu0 %v1779
        %v1923 = vpop.f32.mrb[0].mxu0
        %v1924 = vadd.f32 0.0, %v1923
        %v1925 = vpop.f32.mrb[0].mxu0
        %v1926 = vpop.f32.mrb[0].mxu0
        %v1927 = vadd.f32 0.0, %v1926
        %v1928 = vpop.f32.mrb[0].mxu0
        %1929 = vmatprep.mubr.bf16.mxu0 0
        %1930 = vmatmul.mubr.bf16.gmra.mrb[0].mxu0 %v1782
        %v1931 = vpop.f32.mrb[0].mxu0
        %v1932 = vadd.f32 0.0, %v1931
        %v1933 = vpop.f32.mrb[0].mxu0
        %v1934 = vpop.f32.mrb[0].mxu0
        %v1935 = vadd.f32 0.0, %v1934
        %v1936 = vpop.f32.mrb[0].mxu0
        %1937 = vmatprep.mubr.bf16.mxu0 0
        %1938 = vmatmul.mubr.bf16.gmra.mrb[0].mxu0 %v1785
        %v1939 = vpop.f32.mrb[0].mxu0
        %v1940 = vadd.f32 0.0, %v1939
        %v1941 = vpop.f32.mrb[0].mxu0
        %v1942 = vpop.f32.mrb[0].mxu0
        %v1943 = vadd.f32 0.0, %v1942
        %v1944 = vpop.f32.mrb[0].mxu0
        %1945 = vmatprep.mubr.bf16.mxu0 0
        %1946 = vmatmul.mubr.bf16.gmra.mrb[0].mxu0 %v1788
        %v1947 = vpop.f32.mrb[0].mxu0
        %v1948 = vadd.f32 0.0, %v1947
        %v1949 = vpop.f32.mrb[0].mxu0
        %v1950 = vpop.f32.mrb[0].mxu0
        %v1951 = vadd.f32 0.0, %v1950
        %v1952 = vpop.f32.mrb[0].mxu0
        %1953 = vdwg.mxu0
        %v1954 = vadd.f32 %v1595, %v1828
        %v1955 = vadd.f32 %v1596, %v1831
        %v1956 = vadd.f32 %v1597, %v1836
        %v1957 = vadd.f32 %v1598, %v1839
        %v1958 = vadd.f32 %v1599, %v1844
        %v1959 = vadd.f32 %v1600, %v1847
        %v1960 = vadd.f32 %v1601, %v1852
        %v1961 = vadd.f32 %v1602, %v1855
        %v1962 = vadd.f32 %v1603, %v1860
        %v1963 = vadd.f32 %v1604, %v1863
        %v1964 = vadd.f32 %v1605, %v1868
        %v1965 = vadd.f32 %v1606, %v1871
        %v1966 = vadd.f32 %v1607, %v1876
        %v1967 = vadd.f32 %v1608, %v1879
        %v1968 = vadd.f32 %v1609, %v1884
        %v1969 = vadd.f32 %v1610, %v1887
        %v1970 = vadd.f32 %v1611, %v1892
        %v1971 = vadd.f32 %v1612, %v1895
        %v1972 = vadd.f32 %v1613, %v1900
        %v1973 = vadd.f32 %v1614, %v1903
        %v1974 = vadd.f32 %v1615, %v1908
        %v1975 = vadd.f32 %v1616, %v1911
        %v1976 = vadd.f32 %v1617, %v1916
        %v1977 = vadd.f32 %v1618, %v1919
        %v1978 = vadd.f32 %v1619, %v1924
        %v1979 = vadd.f32 %v1620, %v1927
        %v1980 = vadd.f32 %v1621, %v1932
        %v1981 = vadd.f32 %v1622, %v1935
        %v1982 = vadd.f32 %v1623, %v1940
        %v1983 = vadd.f32 %v1624, %v1943
        %v1984 = vadd.f32 %v1625, %v1948
        %v1985 = vadd.f32 %v1626, %v1951
        %v1986 = vld [vmem:[%s1627] sm:$0xf]
        %v1987 = vld [vmem:[%s1627 + $0x4] sm:$0xf]
        %v1988 = vld [vmem:[%s1627 + $0x8] sm:$0x1]
        %v1989 = vld [vmem:[%s1627 + $0xc] sm:$0xf]
        %v1990 = vld [vmem:[%s1627 + $0x10] sm:$0xf]
        %v1991 = vld [vmem:[%s1627 + $0x14] sm:$0x1]
        %v1992 = vld [vmem:[%s1627 + $0x18] sm:$0xf]
        %v1993 = vld [vmem:[%s1627 + $0x1c] sm:$0xf]
        %v1994 = vld [vmem:[%s1627 + $0x20] sm:$0x1]
        %v1995 = vld [vmem:[%s1627 + $0x24] sm:$0xf]
        %v1996 = vld [vmem:[%s1627 + $0x28] sm:$0xf]
        %v1997 = vld [vmem:[%s1627 + $0x2c] sm:$0x1]
        %v1998 = vld [vmem:[%s1627 + $0x30] sm:$0xf]
        %v1999 = vld [vmem:[%s1627 + $0x34] sm:$0xf]
        %v2000 = vld [vmem:[%s1627 + $0x38] sm:$0x1]
        %v2001 = vld [vmem:[%s1627 + $0x3c] sm:$0xf]
        %v2002 = vld [vmem:[%s1627 + $0x40] sm:$0xf]
        %v2003 = vld [vmem:[%s1627 + $0x44] sm:$0x1]
        %v2004 = vld [vmem:[%s1627 + $0x48] sm:$0xf]
        %v2005 = vld [vmem:[%s1627 + $0x4c] sm:$0xf]
        %v2006 = vld [vmem:[%s1627 + $0x50] sm:$0x1]
        %v2007 = vld [vmem:[%s1627 + $0x54] sm:$0xf]
        %v2008 = vld [vmem:[%s1627 + $0x58] sm:$0xf]
        %v2009 = vld [vmem:[%s1627 + $0x5c] sm:$0x1]
        %v2010 = vld [vmem:[%s1627 + $0x60] sm:$0xf]
        %v2011 = vld [vmem:[%s1627 + $0x64] sm:$0xf]
        %v2012 = vld [vmem:[%s1627 + $0x68] sm:$0x1]
        %v2013 = vld [vmem:[%s1627 + $0x6c] sm:$0xf]
        %v2014 = vld [vmem:[%s1627 + $0x70] sm:$0xf]
        %v2015 = vld [vmem:[%s1627 + $0x74] sm:$0x1]
        %v2016 = vld [vmem:[%s1627 + $0x78] sm:$0xf]
        %v2017 = vld [vmem:[%s1627 + $0x7c] sm:$0xf]
        %v2018 = vld [vmem:[%s1627 + $0x80] sm:$0x1]
        %v2019 = vld [vmem:[%s1627 + $0x84] sm:$0xf]
        %v2020 = vld [vmem:[%s1627 + $0x88] sm:$0xf]
        %v2021 = vld [vmem:[%s1627 + $0x8c] sm:$0x1]
        %v2022 = vld [vmem:[%s1627 + $0x90] sm:$0xf]
        %v2023 = vld [vmem:[%s1627 + $0x94] sm:$0xf]
        %v2024 = vld [vmem:[%s1627 + $0x98] sm:$0x1]
        %v2025 = vld [vmem:[%s1627 + $0x9c] sm:$0xf]
        %v2026 = vld [vmem:[%s1627 + $0xa0] sm:$0xf]
        %v2027 = vld [vmem:[%s1627 + $0xa4] sm:$0x1]
        %v2028 = vld [vmem:[%s1627 + $0xa8] sm:$0xf]
        %v2029 = vld [vmem:[%s1627 + $0xac] sm:$0xf]
        %v2030 = vld [vmem:[%s1627 + $0xb0] sm:$0x1]
        %v2031 = vld [vmem:[%s1627 + $0xb4] sm:$0xf]
        %v2032 = vld [vmem:[%s1627 + $0xb8] sm:$0xf]
        %v2033 = vld [vmem:[%s1627 + $0xbc] sm:$0x1]
        %v2035 = vshrl.u32 %v1986, 16
        %v2037 = vrot.slane %v2035, 4
        %v2038 = vshll.u32 %v1986, 16
        %v2040 = vrot.slane %v2038, 5
        %v2041 = vor.u32 %v2037, %v2040
        %v2042 = vrot.slane %v2041, 4
        %v2044 = vshll.u32 %v1987, 16
        %v2046 = vrot.slane %v2044, 5
        %v2047 = vsel %vm229, %v2042, %v2046
        %v2048 = vshrl.u32 %v1987, 16
        %v2050 = vrot.slane %v2048, 4
        %v2051 = vor.u32 %v2050, %v2046
        %v2052 = vrot.slane %v2051, 4
        %v2054 = vshll.u32 %v1988, 16
        %v2056 = vrot.slane %v2054, 5
        %v2057 = vsel %vm229, %v2052, %v2056
        %v2059 = vshrl.u32 %v1989, 16
        %v2061 = vrot.slane %v2059, 4
        %v2062 = vshll.u32 %v1989, 16
        %v2064 = vrot.slane %v2062, 5
        %v2065 = vor.u32 %v2061, %v2064
        %v2066 = vrot.slane %v2065, 4
        %v2068 = vshll.u32 %v1990, 16
        %v2070 = vrot.slane %v2068, 5
        %v2071 = vsel %vm229, %v2066, %v2070
        %v2072 = vshrl.u32 %v1990, 16
        %v2074 = vrot.slane %v2072, 4
        %v2075 = vor.u32 %v2074, %v2070
        %v2076 = vrot.slane %v2075, 4
        %v2078 = vshll.u32 %v1991, 16
        %v2080 = vrot.slane %v2078, 5
        %v2081 = vsel %vm229, %v2076, %v2080
        %v2083 = vshrl.u32 %v1992, 16
        %v2085 = vrot.slane %v2083, 4
        %v2086 = vshll.u32 %v1992, 16
        %v2088 = vrot.slane %v2086, 5
        %v2089 = vor.u32 %v2085, %v2088
        %v2090 = vrot.slane %v2089, 4
        %v2092 = vshll.u32 %v1993, 16
        %v2094 = vrot.slane %v2092, 5
        %v2095 = vsel %vm229, %v2090, %v2094
        %v2096 = vshrl.u32 %v1993, 16
        %v2098 = vrot.slane %v2096, 4
        %v2099 = vor.u32 %v2098, %v2094
        %v2100 = vrot.slane %v2099, 4
        %v2102 = vshll.u32 %v1994, 16
        %v2104 = vrot.slane %v2102, 5
        %v2105 = vsel %vm229, %v2100, %v2104
        %v2107 = vshrl.u32 %v1995, 16
        %v2109 = vrot.slane %v2107, 4
        %v2110 = vshll.u32 %v1995, 16
        %v2112 = vrot.slane %v2110, 5
        %v2113 = vor.u32 %v2109, %v2112
        %v2114 = vrot.slane %v2113, 4
        %v2116 = vshll.u32 %v1996, 16
        %v2118 = vrot.slane %v2116, 5
        %v2119 = vsel %vm229, %v2114, %v2118
        %v2120 = vshrl.u32 %v1996, 16
        %v2122 = vrot.slane %v2120, 4
        %v2123 = vor.u32 %v2122, %v2118
        %v2124 = vrot.slane %v2123, 4
        %v2126 = vshll.u32 %v1997, 16
        %v2128 = vrot.slane %v2126, 5
        %v2129 = vsel %vm229, %v2124, %v2128
        %v2131 = vshrl.u32 %v1998, 16
        %v2133 = vrot.slane %v2131, 4
        %v2134 = vshll.u32 %v1998, 16
        %v2136 = vrot.slane %v2134, 5
        %v2137 = vor.u32 %v2133, %v2136
        %v2138 = vrot.slane %v2137, 4
        %v2140 = vshll.u32 %v1999, 16
        %v2142 = vrot.slane %v2140, 5
        %v2143 = vsel %vm229, %v2138, %v2142
        %v2144 = vshrl.u32 %v1999, 16
        %v2146 = vrot.slane %v2144, 4
        %v2147 = vor.u32 %v2146, %v2142
        %v2148 = vrot.slane %v2147, 4
        %v2150 = vshll.u32 %v2000, 16
        %v2152 = vrot.slane %v2150, 5
        %v2153 = vsel %vm229, %v2148, %v2152
        %v2155 = vshrl.u32 %v2001, 16
        %v2157 = vrot.slane %v2155, 4
        %v2158 = vshll.u32 %v2001, 16
        %v2160 = vrot.slane %v2158, 5
        %v2161 = vor.u32 %v2157, %v2160
        %v2162 = vrot.slane %v2161, 4
        %v2164 = vshll.u32 %v2002, 16
        %v2166 = vrot.slane %v2164, 5
        %v2167 = vsel %vm229, %v2162, %v2166
        %v2168 = vshrl.u32 %v2002, 16
        %v2170 = vrot.slane %v2168, 4
        %v2171 = vor.u32 %v2170, %v2166
        %v2172 = vrot.slane %v2171, 4
        %v2174 = vshll.u32 %v2003, 16
        %v2176 = vrot.slane %v2174, 5
        %v2177 = vsel %vm229, %v2172, %v2176
        %v2179 = vshrl.u32 %v2004, 16
        %v2181 = vrot.slane %v2179, 4
        %v2182 = vshll.u32 %v2004, 16
        %v2184 = vrot.slane %v2182, 5
        %v2185 = vor.u32 %v2181, %v2184
        %v2186 = vrot.slane %v2185, 4
        %v2188 = vshll.u32 %v2005, 16
        %v2190 = vrot.slane %v2188, 5
        %v2191 = vsel %vm229, %v2186, %v2190
        %v2192 = vshrl.u32 %v2005, 16
        %v2194 = vrot.slane %v2192, 4
        %v2195 = vor.u32 %v2194, %v2190
        %v2196 = vrot.slane %v2195, 4
        %v2198 = vshll.u32 %v2006, 16
        %v2200 = vrot.slane %v2198, 5
        %v2201 = vsel %vm229, %v2196, %v2200
        %v2203 = vshrl.u32 %v2007, 16
        %v2205 = vrot.slane %v2203, 4
        %v2206 = vshll.u32 %v2007, 16
        %v2208 = vrot.slane %v2206, 5
        %v2209 = vor.u32 %v2205, %v2208
        %v2210 = vrot.slane %v2209, 4
        %v2212 = vshll.u32 %v2008, 16
        %v2214 = vrot.slane %v2212, 5
        %v2215 = vsel %vm229, %v2210, %v2214
        %v2216 = vshrl.u32 %v2008, 16
        %v2218 = vrot.slane %v2216, 4
        %v2219 = vor.u32 %v2218, %v2214
        %v2220 = vrot.slane %v2219, 4
        %v2222 = vshll.u32 %v2009, 16
        %v2224 = vrot.slane %v2222, 5
        %v2225 = vsel %vm229, %v2220, %v2224
        %v2227 = vshrl.u32 %v2010, 16
        %v2229 = vrot.slane %v2227, 4
        %v2230 = vshll.u32 %v2010, 16
        %v2232 = vrot.slane %v2230, 5
        %v2233 = vor.u32 %v2229, %v2232
        %v2234 = vrot.slane %v2233, 4
        %v2236 = vshll.u32 %v2011, 16
        %v2238 = vrot.slane %v2236, 5
        %v2239 = vsel %vm229, %v2234, %v2238
        %v2240 = vshrl.u32 %v2011, 16
        %v2242 = vrot.slane %v2240, 4
        %v2243 = vor.u32 %v2242, %v2238
        %v2244 = vrot.slane %v2243, 4
        %v2246 = vshll.u32 %v2012, 16
        %v2248 = vrot.slane %v2246, 5
        %v2249 = vsel %vm229, %v2244, %v2248
        %v2251 = vshrl.u32 %v2013, 16
        %v2253 = vrot.slane %v2251, 4
        %v2254 = vshll.u32 %v2013, 16
        %v2256 = vrot.slane %v2254, 5
        %v2257 = vor.u32 %v2253, %v2256
        %v2258 = vrot.slane %v2257, 4
        %v2260 = vshll.u32 %v2014, 16
        %v2262 = vrot.slane %v2260, 5
        %v2263 = vsel %vm229, %v2258, %v2262
        %v2264 = vshrl.u32 %v2014, 16
        %v2266 = vrot.slane %v2264, 4
        %v2267 = vor.u32 %v2266, %v2262
        %v2268 = vrot.slane %v2267, 4
        %v2270 = vshll.u32 %v2015, 16
        %v2272 = vrot.slane %v2270, 5
        %v2273 = vsel %vm229, %v2268, %v2272
        %v2275 = vshrl.u32 %v2016, 16
        %v2277 = vrot.slane %v2275, 4
        %v2278 = vshll.u32 %v2016, 16
        %v2280 = vrot.slane %v2278, 5
        %v2281 = vor.u32 %v2277, %v2280
        %v2282 = vrot.slane %v2281, 4
        %v2284 = vshll.u32 %v2017, 16
        %v2286 = vrot.slane %v2284, 5
        %v2287 = vsel %vm229, %v2282, %v2286
        %v2288 = vshrl.u32 %v2017, 16
        %v2290 = vrot.slane %v2288, 4
        %v2291 = vor.u32 %v2290, %v2286
        %v2292 = vrot.slane %v2291, 4
        %v2294 = vshll.u32 %v2018, 16
        %v2296 = vrot.slane %v2294, 5
        %v2297 = vsel %vm229, %v2292, %v2296
        %v2299 = vshrl.u32 %v2019, 16
        %v2301 = vrot.slane %v2299, 4
        %v2302 = vshll.u32 %v2019, 16
        %v2304 = vrot.slane %v2302, 5
        %v2305 = vor.u32 %v2301, %v2304
        %v2306 = vrot.slane %v2305, 4
        %v2308 = vshll.u32 %v2020, 16
        %v2310 = vrot.slane %v2308, 5
        %v2311 = vsel %vm229, %v2306, %v2310
        %v2312 = vshrl.u32 %v2020, 16
        %v2314 = vrot.slane %v2312, 4
        %v2315 = vor.u32 %v2314, %v2310
        %v2316 = vrot.slane %v2315, 4
        %v2318 = vshll.u32 %v2021, 16
        %v2320 = vrot.slane %v2318, 5
        %v2321 = vsel %vm229, %v2316, %v2320
        %v2323 = vshrl.u32 %v2022, 16
        %v2325 = vrot.slane %v2323, 4
        %v2326 = vshll.u32 %v2022, 16
        %v2328 = vrot.slane %v2326, 5
        %v2329 = vor.u32 %v2325, %v2328
        %v2330 = vrot.slane %v2329, 4
        %v2332 = vshll.u32 %v2023, 16
        %v2334 = vrot.slane %v2332, 5
        %v2335 = vsel %vm229, %v2330, %v2334
        %v2336 = vshrl.u32 %v2023, 16
        %v2338 = vrot.slane %v2336, 4
        %v2339 = vor.u32 %v2338, %v2334
        %v2340 = vrot.slane %v2339, 4
        %v2342 = vshll.u32 %v2024, 16
        %v2344 = vrot.slane %v2342, 5
        %v2345 = vsel %vm229, %v2340, %v2344
        %v2347 = vshrl.u32 %v2025, 16
        %v2349 = vrot.slane %v2347, 4
        %v2350 = vshll.u32 %v2025, 16
        %v2352 = vrot.slane %v2350, 5
        %v2353 = vor.u32 %v2349, %v2352
        %v2354 = vrot.slane %v2353, 4
        %v2356 = vshll.u32 %v2026, 16
        %v2358 = vrot.slane %v2356, 5
        %v2359 = vsel %vm229, %v2354, %v2358
        %v2360 = vshrl.u32 %v2026, 16
        %v2362 = vrot.slane %v2360, 4
        %v2363 = vor.u32 %v2362, %v2358
        %v2364 = vrot.slane %v2363, 4
        %v2366 = vshll.u32 %v2027, 16
        %v2368 = vrot.slane %v2366, 5
        %v2369 = vsel %vm229, %v2364, %v2368
        %v2371 = vshrl.u32 %v2028, 16
        %v2373 = vrot.slane %v2371, 4
        %v2374 = vshll.u32 %v2028, 16
        %v2376 = vrot.slane %v2374, 5
        %v2377 = vor.u32 %v2373, %v2376
        %v2378 = vrot.slane %v2377, 4
        %v2380 = vshll.u32 %v2029, 16
        %v2382 = vrot.slane %v2380, 5
        %v2383 = vsel %vm229, %v2378, %v2382
        %v2384 = vshrl.u32 %v2029, 16
        %v2386 = vrot.slane %v2384, 4
        %v2387 = vor.u32 %v2386, %v2382
        %v2388 = vrot.slane %v2387, 4
        %v2390 = vshll.u32 %v2030, 16
        %v2392 = vrot.slane %v2390, 5
        %v2393 = vsel %vm229, %v2388, %v2392
        %v2395 = vshrl.u32 %v2031, 16
        %v2397 = vrot.slane %v2395, 4
        %v2398 = vshll.u32 %v2031, 16
        %v2400 = vrot.slane %v2398, 5
        %v2401 = vor.u32 %v2397, %v2400
        %v2402 = vrot.slane %v2401, 4
        %v2404 = vshll.u32 %v2032, 16
        %v2406 = vrot.slane %v2404, 5
        %v2407 = vsel %vm229, %v2402, %v2406
        %v2408 = vshrl.u32 %v2032, 16
        %v2410 = vrot.slane %v2408, 4
        %v2411 = vor.u32 %v2410, %v2406
        %v2412 = vrot.slane %v2411, 4
        %v2414 = vshll.u32 %v2033, 16
        %v2416 = vrot.slane %v2414, 5
        %v2417 = vsel %vm229, %v2412, %v2416
        %s2418 = scalar_lea.vmem [#allocation5], 8
        %v2419 = vld [vmem:[%s2418] sm:$0x3]
        %v2420 = vunpack.c.l.b16 %v2047
        %v2421 = vunpack.c.l.b16 %v2057
        %v2422 = vunpack.c.l.b16 %v2071
        %v2423 = vunpack.c.l.b16 %v2081
        %v2424 = vunpack.c.l.b16 %v2095
        %v2425 = vunpack.c.l.b16 %v2105
        %v2426 = vunpack.c.l.b16 %v2119
        %v2427 = vunpack.c.l.b16 %v2129
        %v2428 = vunpack.c.l.b16 %v2143
        %v2429 = vunpack.c.l.b16 %v2153
        %v2430 = vunpack.c.l.b16 %v2167
        %v2431 = vunpack.c.l.b16 %v2177
        %v2432 = vunpack.c.l.b16 %v2191
        %v2433 = vunpack.c.l.b16 %v2201
        %v2434 = vunpack.c.l.b16 %v2215
        %v2435 = vunpack.c.l.b16 %v2225
        %v2436 = vunpack.c.l.b16 %v2239
        %v2437 = vunpack.c.l.b16 %v2249
        %v2438 = vunpack.c.l.b16 %v2263
        %v2439 = vunpack.c.l.b16 %v2273
        %v2440 = vunpack.c.l.b16 %v2287
        %v2441 = vunpack.c.l.b16 %v2297
        %v2442 = vunpack.c.l.b16 %v2311
        %v2443 = vunpack.c.l.b16 %v2321
        %v2444 = vunpack.c.l.b16 %v2335
        %v2445 = vunpack.c.l.b16 %v2345
        %v2446 = vunpack.c.l.b16 %v2359
        %v2447 = vunpack.c.l.b16 %v2369
        %v2448 = vunpack.c.l.b16 %v2383
        %v2449 = vunpack.c.l.b16 %v2393
        %v2450 = vunpack.c.l.b16 %v2407
        %v2451 = vunpack.c.l.b16 %v2417
        %v2452 = vpack.c.b16 %v2421, %v2420
        %v2453 = vpack.c.b16 %v2423, %v2422
        %v2454 = vpack.c.b16 %v2425, %v2424
        %v2455 = vpack.c.b16 %v2427, %v2426
        %v2456 = vpack.c.b16 %v2429, %v2428
        %v2457 = vpack.c.b16 %v2431, %v2430
        %v2458 = vpack.c.b16 %v2433, %v2432
        %v2459 = vpack.c.b16 %v2435, %v2434
        %v2460 = vpack.c.b16 %v2437, %v2436
        %v2461 = vpack.c.b16 %v2439, %v2438
        %v2462 = vpack.c.b16 %v2441, %v2440
        %v2463 = vpack.c.b16 %v2443, %v2442
        %v2464 = vpack.c.b16 %v2445, %v2444
        %v2465 = vpack.c.b16 %v2447, %v2446
        %v2466 = vpack.c.b16 %v2449, %v2448
        %v2467 = vpack.c.b16 %v2451, %v2450
        %v2469 = vsel %vm664, %v2452, 0
        %v2472 = vsel %vm664, %v2453, 0
        %v2475 = vsel %vm664, %v2454, 0
        %v2478 = vsel %vm664, %v2455, 0
        %v2481 = vsel %vm664, %v2456, 0
        %v2484 = vsel %vm664, %v2457, 0
        %v2487 = vsel %vm664, %v2458, 0
        %v2490 = vsel %vm664, %v2459, 0
        %v2493 = vsel %vm664, %v2460, 0
        %v2496 = vsel %vm664, %v2461, 0
        %v2499 = vsel %vm664, %v2462, 0
        %v2502 = vsel %vm664, %v2463, 0
        %v2505 = vsel %vm664, %v2464, 0
        %v2508 = vsel %vm664, %v2465, 0
        %v2511 = vsel %vm664, %v2466, 0
        %v2514 = vsel %vm664, %v2467, 0
        %v2517 = vsel %vm713, %v2419, 0
        %2519 = vmatprep.subr.bf16.mxu0 0
        %2520 = vmatpush1.bf16.msra.mxu0 %v2517
        %2521 = vmatprep.subr.bf16.mxu0 0
        %2522 = vmatpush1.bf16.msra.mxu0 0
        %2523 = vmatprep.subr.bf16.mxu0 0
        %2524 = vmatpush1.bf16.msra.mxu0 0
        %2525 = vmatprep.subr.bf16.mxu0 0
        %2526 = vmatpush1.bf16.msra.mxu0 0
        %2527 = vmatprep.subr.bf16.mxu0 0
        %2528 = vmatpush1.bf16.msra.mxu0 0
        %2529 = vmatprep.subr.bf16.mxu0 0
        %2530 = vmatpush1.bf16.msra.mxu0 0
        %2531 = vmatprep.subr.bf16.mxu0 0
        %2532 = vmatpush1.bf16.msra.mxu0 0
        %2533 = vmatprep.subr.bf16.mxu0 0
        %2534 = vmatpush1.bf16.msra.mxu0 0
        %2535 = vmatprep.subr.bf16.mxu0 0
        %2536 = vmatpush1.bf16.msra.mxu0 0
        %2537 = vmatprep.subr.bf16.mxu0 0
        %2538 = vmatpush1.bf16.msra.mxu0 0
        %2539 = vmatprep.subr.bf16.mxu0 0
        %2540 = vmatpush1.bf16.msra.mxu0 0
        %2541 = vmatprep.subr.bf16.mxu0 0
        %2542 = vmatpush1.bf16.msra.mxu0 0
        %2543 = vmatprep.subr.bf16.mxu0 0
        %2544 = vmatpush1.bf16.msra.mxu0 0
        %2545 = vmatprep.subr.bf16.mxu0 0
        %2546 = vmatpush1.bf16.msra.mxu0 0
        %2547 = vmatprep.subr.bf16.mxu0 0
        %2548 = vmatpush1.bf16.msra.mxu0 0
        %2549 = vmatprep.subr.bf16.mxu0 0
        %2550 = vmatpush1.bf16.msra.mxu0 0
        %2551 = vmatprep.mubr.bf16.mxu0 0
        %2552 = vmatmul.mubr.bf16.gmra.mrb[0].mxu0 %v2469
        %v2553 = vpop.f32.mrb[0].mxu0
        %v2554 = vadd.f32 0.0, %v2553
        %v2555 = vpop.f32.mrb[0].mxu0
        %v2556 = vpop.f32.mrb[0].mxu0
        %v2557 = vadd.f32 0.0, %v2556
        %v2558 = vpop.f32.mrb[0].mxu0
        %2559 = vmatprep.mubr.bf16.mxu0 0
        %2560 = vmatmul.mubr.bf16.gmra.mrb[0].mxu0 %v2472
        %v2561 = vpop.f32.mrb[0].mxu0
        %v2562 = vadd.f32 0.0, %v2561
        %v2563 = vpop.f32.mrb[0].mxu0
        %v2564 = vpop.f32.mrb[0].mxu0
        %v2565 = vadd.f32 0.0, %v2564
        %v2566 = vpop.f32.mrb[0].mxu0
        %2567 = vmatprep.mubr.bf16.mxu0 0
        %2568 = vmatmul.mubr.bf16.gmra.mrb[0].mxu0 %v2475
        %v2569 = vpop.f32.mrb[0].mxu0
        %v2570 = vadd.f32 0.0, %v2569
        %v2571 = vpop.f32.mrb[0].mxu0
        %v2572 = vpop.f32.mrb[0].mxu0
        %v2573 = vadd.f32 0.0, %v2572
        %v2574 = vpop.f32.mrb[0].mxu0
        %2575 = vmatprep.mubr.bf16.mxu0 0
        %2576 = vmatmul.mubr.bf16.gmra.mrb[0].mxu0 %v2478
        %v2577 = vpop.f32.mrb[0].mxu0
        %v2578 = vadd.f32 0.0, %v2577
        %v2579 = vpop.f32.mrb[0].mxu0
        %v2580 = vpop.f32.mrb[0].mxu0
        %v2581 = vadd.f32 0.0, %v2580
        %v2582 = vpop.f32.mrb[0].mxu0
        %2583 = vmatprep.mubr.bf16.mxu0 0
        %2584 = vmatmul.mubr.bf16.gmra.mrb[0].mxu0 %v2481
        %v2585 = vpop.f32.mrb[0].mxu0
        %v2586 = vadd.f32 0.0, %v2585
        %v2587 = vpop.f32.mrb[0].mxu0
        %v2588 = vpop.f32.mrb[0].mxu0
        %v2589 = vadd.f32 0.0, %v2588
        %v2590 = vpop.f32.mrb[0].mxu0
        %2591 = vmatprep.mubr.bf16.mxu0 0
        %2592 = vmatmul.mubr.bf16.gmra.mrb[0].mxu0 %v2484
        %v2593 = vpop.f32.mrb[0].mxu0
        %v2594 = vadd.f32 0.0, %v2593
        %v2595 = vpop.f32.mrb[0].mxu0
        %v2596 = vpop.f32.mrb[0].mxu0
        %v2597 = vadd.f32 0.0, %v2596
        %v2598 = vpop.f32.mrb[0].mxu0
        %2599 = vmatprep.mubr.bf16.mxu0 0
        %2600 = vmatmul.mubr.bf16.gmra.mrb[0].mxu0 %v2487
        %v2601 = vpop.f32.mrb[0].mxu0
        %v2602 = vadd.f32 0.0, %v2601
        %v2603 = vpop.f32.mrb[0].mxu0
        %v2604 = vpop.f32.mrb[0].mxu0
        %v2605 = vadd.f32 0.0, %v2604
        %v2606 = vpop.f32.mrb[0].mxu0
        %2607 = vmatprep.mubr.bf16.mxu0 0
        %2608 = vmatmul.mubr.bf16.gmra.mrb[0].mxu0 %v2490
        %v2609 = vpop.f32.mrb[0].mxu0
        %v2610 = vadd.f32 0.0, %v2609
        %v2611 = vpop.f32.mrb[0].mxu0
        %v2612 = vpop.f32.mrb[0].mxu0
        %v2613 = vadd.f32 0.0, %v2612
        %v2614 = vpop.f32.mrb[0].mxu0
        %2615 = vmatprep.mubr.bf16.mxu0 0
        %2616 = vmatmul.mubr.bf16.gmra.mrb[0].mxu0 %v2493
        %v2617 = vpop.f32.mrb[0].mxu0
        %v2618 = vadd.f32 0.0, %v2617
        %v2619 = vpop.f32.mrb[0].mxu0
        %v2620 = vpop.f32.mrb[0].mxu0
        %v2621 = vadd.f32 0.0, %v2620
        %v2622 = vpop.f32.mrb[0].mxu0
        %2623 = vmatprep.mubr.bf16.mxu0 0
        %2624 = vmatmul.mubr.bf16.gmra.mrb[0].mxu0 %v2496
        %v2625 = vpop.f32.mrb[0].mxu0
        %v2626 = vadd.f32 0.0, %v2625
        %v2627 = vpop.f32.mrb[0].mxu0
        %v2628 = vpop.f32.mrb[0].mxu0
        %v2629 = vadd.f32 0.0, %v2628
        %v2630 = vpop.f32.mrb[0].mxu0
        %2631 = vmatprep.mubr.bf16.mxu0 0
        %2632 = vmatmul.mubr.bf16.gmra.mrb[0].mxu0 %v2499
        %v2633 = vpop.f32.mrb[0].mxu0
        %v2634 = vadd.f32 0.0, %v2633
        %v2635 = vpop.f32.mrb[0].mxu0
        %v2636 = vpop.f32.mrb[0].mxu0
        %v2637 = vadd.f32 0.0, %v2636
        %v2638 = vpop.f32.mrb[0].mxu0
        %2639 = vmatprep.mubr.bf16.mxu0 0
        %2640 = vmatmul.mubr.bf16.gmra.mrb[0].mxu0 %v2502
        %v2641 = vpop.f32.mrb[0].mxu0
        %v2642 = vadd.f32 0.0, %v2641
        %v2643 = vpop.f32.mrb[0].mxu0
        %v2644 = vpop.f32.mrb[0].mxu0
        %v2645 = vadd.f32 0.0, %v2644
        %v2646 = vpop.f32.mrb[0].mxu0
        %2647 = vmatprep.mubr.bf16.mxu0 0
        %2648 = vmatmul.mubr.bf16.gmra.mrb[0].mxu0 %v2505
        %v2649 = vpop.f32.mrb[0].mxu0
        %v2650 = vadd.f32 0.0, %v2649
        %v2651 = vpop.f32.mrb[0].mxu0
        %v2652 = vpop.f32.mrb[0].mxu0
        %v2653 = vadd.f32 0.0, %v2652
        %v2654 = vpop.f32.mrb[0].mxu0
        %2655 = vmatprep.mubr.bf16.mxu0 0
        %2656 = vmatmul.mubr.bf16.gmra.mrb[0].mxu0 %v2508
        %v2657 = vpop.f32.mrb[0].mxu0
        %v2658 = vadd.f32 0.0, %v2657
        %v2659 = vpop.f32.mrb[0].mxu0
        %v2660 = vpop.f32.mrb[0].mxu0
        %v2661 = vadd.f32 0.0, %v2660
        %v2662 = vpop.f32.mrb[0].mxu0
        %2663 = vmatprep.mubr.bf16.mxu0 0
        %2664 = vmatmul.mubr.bf16.gmra.mrb[0].mxu0 %v2511
        %v2665 = vpop.f32.mrb[0].mxu0
        %v2666 = vadd.f32 0.0, %v2665
        %v2667 = vpop.f32.mrb[0].mxu0
        %v2668 = vpop.f32.mrb[0].mxu0
        %v2669 = vadd.f32 0.0, %v2668
        %v2670 = vpop.f32.mrb[0].mxu0
        %2671 = vmatprep.mubr.bf16.mxu0 0
        %2672 = vmatmul.mubr.bf16.gmra.mrb[0].mxu0 %v2514
        %v2673 = vpop.f32.mrb[0].mxu0
        %v2674 = vadd.f32 0.0, %v2673
        %v2675 = vpop.f32.mrb[0].mxu0
        %v2676 = vpop.f32.mrb[0].mxu0
        %v2677 = vadd.f32 0.0, %v2676
        %v2678 = vpop.f32.mrb[0].mxu0
        %2679 = vdwg.mxu0
        %v2680 = vadd.f32 %v1954, %v2554
        %v2681 = vadd.f32 %v1955, %v2557
        %v2682 = vadd.f32 %v1956, %v2562
        %v2683 = vadd.f32 %v1957, %v2565
        %v2684 = vadd.f32 %v1958, %v2570
        %v2685 = vadd.f32 %v1959, %v2573
        %v2686 = vadd.f32 %v1960, %v2578
        %v2687 = vadd.f32 %v1961, %v2581
        %v2688 = vadd.f32 %v1962, %v2586
        %v2689 = vadd.f32 %v1963, %v2589
        %v2690 = vadd.f32 %v1964, %v2594
        %v2691 = vadd.f32 %v1965, %v2597
        %v2692 = vadd.f32 %v1966, %v2602
        %v2693 = vadd.f32 %v1967, %v2605
        %v2694 = vadd.f32 %v1968, %v2610
        %v2695 = vadd.f32 %v1969, %v2613
        %v2696 = vadd.f32 %v1970, %v2618
        %v2697 = vadd.f32 %v1971, %v2621
        %v2698 = vadd.f32 %v1972, %v2626
        %v2699 = vadd.f32 %v1973, %v2629
        %v2700 = vadd.f32 %v1974, %v2634
        %v2701 = vadd.f32 %v1975, %v2637
        %v2702 = vadd.f32 %v1976, %v2642
        %v2703 = vadd.f32 %v1977, %v2645
        %v2704 = vadd.f32 %v1978, %v2650
        %v2705 = vadd.f32 %v1979, %v2653
        %v2706 = vadd.f32 %v1980, %v2658
        %v2707 = vadd.f32 %v1981, %v2661
        %v2708 = vadd.f32 %v1982, %v2666
        %v2709 = vadd.f32 %v1983, %v2669
        %v2710 = vadd.f32 %v1984, %v2674
        %v2711 = vadd.f32 %v1985, %v2677
        %v2712 = vld [vmem:[%s1627] sm:$0xe]
        %v2713 = vld [vmem:[%s1627 + $0xc] sm:$0xe]
        %v2714 = vld [vmem:[%s1627 + $0x18] sm:$0xe]
        %v2715 = vld [vmem:[%s1627 + $0x24] sm:$0xe]
        %v2716 = vld [vmem:[%s1627 + $0x30] sm:$0xe]
        %v2717 = vld [vmem:[%s1627 + $0x3c] sm:$0xe]
        %v2718 = vld [vmem:[%s1627 + $0x48] sm:$0xe]
        %v2719 = vld [vmem:[%s1627 + $0x54] sm:$0xe]
        %v2720 = vld [vmem:[%s1627 + $0x60] sm:$0xe]
        %v2721 = vld [vmem:[%s1627 + $0x6c] sm:$0xe]
        %v2722 = vld [vmem:[%s1627 + $0x78] sm:$0xe]
        %v2723 = vld [vmem:[%s1627 + $0x84] sm:$0xe]
        %v2724 = vld [vmem:[%s1627 + $0x90] sm:$0xe]
        %v2725 = vld [vmem:[%s1627 + $0x9c] sm:$0xe]
        %v2726 = vld [vmem:[%s1627 + $0xa8] sm:$0xe]
        %v2727 = vld [vmem:[%s1627 + $0xb4] sm:$0xe]
        %v2776 = vrot.slane %v2712, 5
        %v2777 = vrot.slane %v2776, 4
        %v2778 = vrot.slane %v1987, 5
        %v2779 = vsel %vm1220, %v2777, %v2778
        %v2780 = vrot.slane %v2778, 4
        %v2781 = vrot.slane %v1988, 5
        %v2782 = vsel %vm1220, %v2780, %v2781
        %v2783 = vrot.slane %v2713, 5
        %v2784 = vrot.slane %v2783, 4
        %v2785 = vrot.slane %v1990, 5
        %v2786 = vsel %vm1220, %v2784, %v2785
        %v2787 = vrot.slane %v2785, 4
        %v2788 = vrot.slane %v1991, 5
        %v2789 = vsel %vm1220, %v2787, %v2788
        %v2790 = vrot.slane %v2714, 5
        %v2791 = vrot.slane %v2790, 4
        %v2792 = vrot.slane %v1993, 5
        %v2793 = vsel %vm1220, %v2791, %v2792
        %v2794 = vrot.slane %v2792, 4
        %v2795 = vrot.slane %v1994, 5
        %v2796 = vsel %vm1220, %v2794, %v2795
        %v2797 = vrot.slane %v2715, 5
        %v2798 = vrot.slane %v2797, 4
        %v2799 = vrot.slane %v1996, 5
        %v2800 = vsel %vm1220, %v2798, %v2799
        %v2801 = vrot.slane %v2799, 4
        %v2802 = vrot.slane %v1997, 5
        %v2803 = vsel %vm1220, %v2801, %v2802
        %v2804 = vrot.slane %v2716, 5
        %v2805 = vrot.slane %v2804, 4
        %v2806 = vrot.slane %v1999, 5
        %v2807 = vsel %vm1220, %v2805, %v2806
        %v2808 = vrot.slane %v2806, 4
        %v2809 = vrot.slane %v2000, 5
        %v2810 = vsel %vm1220, %v2808, %v2809
        %v2811 = vrot.slane %v2717, 5
        %v2812 = vrot.slane %v2811, 4
        %v2813 = vrot.slane %v2002, 5
        %v2814 = vsel %vm1220, %v2812, %v2813
        %v2815 = vrot.slane %v2813, 4
        %v2816 = vrot.slane %v2003, 5
        %v2817 = vsel %vm1220, %v2815, %v2816
        %v2818 = vrot.slane %v2718, 5
        %v2819 = vrot.slane %v2818, 4
        %v2820 = vrot.slane %v2005, 5
        %v2821 = vsel %vm1220, %v2819, %v2820
        %v2822 = vrot.slane %v2820, 4
        %v2823 = vrot.slane %v2006, 5
        %v2824 = vsel %vm1220, %v2822, %v2823
        %v2825 = vrot.slane %v2719, 5
        %v2826 = vrot.slane %v2825, 4
        %v2827 = vrot.slane %v2008, 5
        %v2828 = vsel %vm1220, %v2826, %v2827
        %v2829 = vrot.slane %v2827, 4
        %v2830 = vrot.slane %v2009, 5
        %v2831 = vsel %vm1220, %v2829, %v2830
        %v2832 = vrot.slane %v2720, 5
        %v2833 = vrot.slane %v2832, 4
        %v2834 = vrot.slane %v2011, 5
        %v2835 = vsel %vm1220, %v2833, %v2834
        %v2836 = vrot.slane %v2834, 4
        %v2837 = vrot.slane %v2012, 5
        %v2838 = vsel %vm1220, %v2836, %v2837
        %v2839 = vrot.slane %v2721, 5
        %v2840 = vrot.slane %v2839, 4
        %v2841 = vrot.slane %v2014, 5
        %v2842 = vsel %vm1220, %v2840, %v2841
        %v2843 = vrot.slane %v2841, 4
        %v2844 = vrot.slane %v2015, 5
        %v2845 = vsel %vm1220, %v2843, %v2844
        %v2846 = vrot.slane %v2722, 5
        %v2847 = vrot.slane %v2846, 4
        %v2848 = vrot.slane %v2017, 5
        %v2849 = vsel %vm1220, %v2847, %v2848
        %v2850 = vrot.slane %v2848, 4
        %v2851 = vrot.slane %v2018, 5
        %v2852 = vsel %vm1220, %v2850, %v2851
        %v2853 = vrot.slane %v2723, 5
        %v2854 = vrot.slane %v2853, 4
        %v2855 = vrot.slane %v2020, 5
        %v2856 = vsel %vm1220, %v2854, %v2855
        %v2857 = vrot.slane %v2855, 4
        %v2858 = vrot.slane %v2021, 5
        %v2859 = vsel %vm1220, %v2857, %v2858
        %v2860 = vrot.slane %v2724, 5
        %v2861 = vrot.slane %v2860, 4
        %v2862 = vrot.slane %v2023, 5
        %v2863 = vsel %vm1220, %v2861, %v2862
        %v2864 = vrot.slane %v2862, 4
        %v2865 = vrot.slane %v2024, 5
        %v2866 = vsel %vm1220, %v2864, %v2865
        %v2867 = vrot.slane %v2725, 5
        %v2868 = vrot.slane %v2867, 4
        %v2869 = vrot.slane %v2026, 5
        %v2870 = vsel %vm1220, %v2868, %v2869
        %v2871 = vrot.slane %v2869, 4
        %v2872 = vrot.slane %v2027, 5
        %v2873 = vsel %vm1220, %v2871, %v2872
        %v2874 = vrot.slane %v2726, 5
        %v2875 = vrot.slane %v2874, 4
        %v2876 = vrot.slane %v2029, 5
        %v2877 = vsel %vm1220, %v2875, %v2876
        %v2878 = vrot.slane %v2876, 4
        %v2879 = vrot.slane %v2030, 5
        %v2880 = vsel %vm1220, %v2878, %v2879
        %v2881 = vrot.slane %v2727, 5
        %v2882 = vrot.slane %v2881, 4
        %v2883 = vrot.slane %v2032, 5
        %v2884 = vsel %vm1220, %v2882, %v2883
        %v2885 = vrot.slane %v2883, 4
        %v2886 = vrot.slane %v2033, 5
        %v2887 = vsel %vm1220, %v2885, %v2886
        %s2888 = scalar_lea.vmem [#allocation5], 10
        %v2889 = vld [vmem:[%s2888] sm:$0x3]
        %v2890 = vunpack.c.l.b16 %v2779
        %v2891 = vunpack.c.l.b16 %v2782
        %v2892 = vunpack.c.l.b16 %v2786
        %v2893 = vunpack.c.l.b16 %v2789
        %v2894 = vunpack.c.l.b16 %v2793
        %v2895 = vunpack.c.l.b16 %v2796
        %v2896 = vunpack.c.l.b16 %v2800
        %v2897 = vunpack.c.l.b16 %v2803
        %v2898 = vunpack.c.l.b16 %v2807
        %v2899 = vunpack.c.l.b16 %v2810
        %v2900 = vunpack.c.l.b16 %v2814
        %v2901 = vunpack.c.l.b16 %v2817
        %v2902 = vunpack.c.l.b16 %v2821
        %v2903 = vunpack.c.l.b16 %v2824
        %v2904 = vunpack.c.l.b16 %v2828
        %v2905 = vunpack.c.l.b16 %v2831
        %v2906 = vunpack.c.l.b16 %v2835
        %v2907 = vunpack.c.l.b16 %v2838
        %v2908 = vunpack.c.l.b16 %v2842
        %v2909 = vunpack.c.l.b16 %v2845
        %v2910 = vunpack.c.l.b16 %v2849
        %v2911 = vunpack.c.l.b16 %v2852
        %v2912 = vunpack.c.l.b16 %v2856
        %v2913 = vunpack.c.l.b16 %v2859
        %v2914 = vunpack.c.l.b16 %v2863
        %v2915 = vunpack.c.l.b16 %v2866
        %v2916 = vunpack.c.l.b16 %v2870
        %v2917 = vunpack.c.l.b16 %v2873
        %v2918 = vunpack.c.l.b16 %v2877
        %v2919 = vunpack.c.l.b16 %v2880
        %v2920 = vunpack.c.l.b16 %v2884
        %v2921 = vunpack.c.l.b16 %v2887
        %v2922 = vpack.c.b16 %v2891, %v2890
        %v2923 = vpack.c.b16 %v2893, %v2892
        %v2924 = vpack.c.b16 %v2895, %v2894
        %v2925 = vpack.c.b16 %v2897, %v2896
        %v2926 = vpack.c.b16 %v2899, %v2898
        %v2927 = vpack.c.b16 %v2901, %v2900
        %v2928 = vpack.c.b16 %v2903, %v2902
        %v2929 = vpack.c.b16 %v2905, %v2904
        %v2930 = vpack.c.b16 %v2907, %v2906
        %v2931 = vpack.c.b16 %v2909, %v2908
        %v2932 = vpack.c.b16 %v2911, %v2910
        %v2933 = vpack.c.b16 %v2913, %v2912
        %v2934 = vpack.c.b16 %v2915, %v2914
        %v2935 = vpack.c.b16 %v2917, %v2916
        %v2936 = vpack.c.b16 %v2919, %v2918
        %v2937 = vpack.c.b16 %v2921, %v2920
        %v2939 = vsel %vm664, %v2922, 0
        %v2942 = vsel %vm664, %v2923, 0
        %v2945 = vsel %vm664, %v2924, 0
        %v2948 = vsel %vm664, %v2925, 0
        %v2951 = vsel %vm664, %v2926, 0
        %v2954 = vsel %vm664, %v2927, 0
        %v2957 = vsel %vm664, %v2928, 0
        %v2960 = vsel %vm664, %v2929, 0
        %v2963 = vsel %vm664, %v2930, 0
        %v2966 = vsel %vm664, %v2931, 0
        %v2969 = vsel %vm664, %v2932, 0
        %v2972 = vsel %vm664, %v2933, 0
        %v2975 = vsel %vm664, %v2934, 0
        %v2978 = vsel %vm664, %v2935, 0
        %v2981 = vsel %vm664, %v2936, 0
        %v2984 = vsel %vm664, %v2937, 0
        %v2987 = vsel %vm713, %v2889, 0
        %2989 = vmatprep.subr.bf16.mxu0 0
        %2990 = vmatpush1.bf16.msra.mxu0 %v2987
        %2991 = vmatprep.subr.bf16.mxu0 0
        %2992 = vmatpush1.bf16.msra.mxu0 0
        %2993 = vmatprep.subr.bf16.mxu0 0
        %2994 = vmatpush1.bf16.msra.mxu0 0
        %2995 = vmatprep.subr.bf16.mxu0 0
        %2996 = vmatpush1.bf16.msra.mxu0 0
        %2997 = vmatprep.subr.bf16.mxu0 0
        %2998 = vmatpush1.bf16.msra.mxu0 0
        %2999 = vmatprep.subr.bf16.mxu0 0
        %3000 = vmatpush1.bf16.msra.mxu0 0
        %3001 = vmatprep.subr.bf16.mxu0 0
        %3002 = vmatpush1.bf16.msra.mxu0 0
        %3003 = vmatprep.subr.bf16.mxu0 0
        %3004 = vmatpush1.bf16.msra.mxu0 0
        %3005 = vmatprep.subr.bf16.mxu0 0
        %3006 = vmatpush1.bf16.msra.mxu0 0
        %3007 = vmatprep.subr.bf16.mxu0 0
        %3008 = vmatpush1.bf16.msra.mxu0 0
        %3009 = vmatprep.subr.bf16.mxu0 0
        %3010 = vmatpush1.bf16.msra.mxu0 0
        %3011 = vmatprep.subr.bf16.mxu0 0
        %3012 = vmatpush1.bf16.msra.mxu0 0
        %3013 = vmatprep.subr.bf16.mxu0 0
        %3014 = vmatpush1.bf16.msra.mxu0 0
        %3015 = vmatprep.subr.bf16.mxu0 0
        %3016 = vmatpush1.bf16.msra.mxu0 0
        %3017 = vmatprep.subr.bf16.mxu0 0
        %3018 = vmatpush1.bf16.msra.mxu0 0
        %3019 = vmatprep.subr.bf16.mxu0 0
        %3020 = vmatpush1.bf16.msra.mxu0 0
        %3021 = vmatprep.mubr.bf16.mxu0 0
        %3022 = vmatmul.mubr.bf16.gmra.mrb[0].mxu0 %v2939
        %v3023 = vpop.f32.mrb[0].mxu0
        %v3024 = vadd.f32 0.0, %v3023
        %v3025 = vpop.f32.mrb[0].mxu0
        %v3026 = vpop.f32.mrb[0].mxu0
        %v3027 = vadd.f32 0.0, %v3026
        %v3028 = vpop.f32.mrb[0].mxu0
        %3029 = vmatprep.mubr.bf16.mxu0 0
        %3030 = vmatmul.mubr.bf16.gmra.mrb[0].mxu0 %v2942
        %v3031 = vpop.f32.mrb[0].mxu0
        %v3032 = vadd.f32 0.0, %v3031
        %v3033 = vpop.f32.mrb[0].mxu0
        %v3034 = vpop.f32.mrb[0].mxu0
        %v3035 = vadd.f32 0.0, %v3034
        %v3036 = vpop.f32.mrb[0].mxu0
        %3037 = vmatprep.mubr.bf16.mxu0 0
        %3038 = vmatmul.mubr.bf16.gmra.mrb[0].mxu0 %v2945
        %v3039 = vpop.f32.mrb[0].mxu0
        %v3040 = vadd.f32 0.0, %v3039
        %v3041 = vpop.f32.mrb[0].mxu0
        %v3042 = vpop.f32.mrb[0].mxu0
        %v3043 = vadd.f32 0.0, %v3042
        %v3044 = vpop.f32.mrb[0].mxu0
        %3045 = vmatprep.mubr.bf16.mxu0 0
        %3046 = vmatmul.mubr.bf16.gmra.mrb[0].mxu0 %v2948
        %v3047 = vpop.f32.mrb[0].mxu0
        %v3048 = vadd.f32 0.0, %v3047
        %v3049 = vpop.f32.mrb[0].mxu0
        %v3050 = vpop.f32.mrb[0].mxu0
        %v3051 = vadd.f32 0.0, %v3050
        %v3052 = vpop.f32.mrb[0].mxu0
        %3053 = vmatprep.mubr.bf16.mxu0 0
        %3054 = vmatmul.mubr.bf16.gmra.mrb[0].mxu0 %v2951
        %v3055 = vpop.f32.mrb[0].mxu0
        %v3056 = vadd.f32 0.0, %v3055
        %v3057 = vpop.f32.mrb[0].mxu0
        %v3058 = vpop.f32.mrb[0].mxu0
        %v3059 = vadd.f32 0.0, %v3058
        %v3060 = vpop.f32.mrb[0].mxu0
        %3061 = vmatprep.mubr.bf16.mxu0 0
        %3062 = vmatmul.mubr.bf16.gmra.mrb[0].mxu0 %v2954
        %v3063 = vpop.f32.mrb[0].mxu0
        %v3064 = vadd.f32 0.0, %v3063
        %v3065 = vpop.f32.mrb[0].mxu0
        %v3066 = vpop.f32.mrb[0].mxu0
        %v3067 = vadd.f32 0.0, %v3066
        %v3068 = vpop.f32.mrb[0].mxu0
        %3069 = vmatprep.mubr.bf16.mxu0 0
        %3070 = vmatmul.mubr.bf16.gmra.mrb[0].mxu0 %v2957
        %v3071 = vpop.f32.mrb[0].mxu0
        %v3072 = vadd.f32 0.0, %v3071
        %v3073 = vpop.f32.mrb[0].mxu0
        %v3074 = vpop.f32.mrb[0].mxu0
        %v3075 = vadd.f32 0.0, %v3074
        %v3076 = vpop.f32.mrb[0].mxu0
        %3077 = vmatprep.mubr.bf16.mxu0 0
        %3078 = vmatmul.mubr.bf16.gmra.mrb[0].mxu0 %v2960
        %v3079 = vpop.f32.mrb[0].mxu0
        %v3080 = vadd.f32 0.0, %v3079
        %v3081 = vpop.f32.mrb[0].mxu0
        %v3082 = vpop.f32.mrb[0].mxu0
        %v3083 = vadd.f32 0.0, %v3082
        %v3084 = vpop.f32.mrb[0].mxu0
        %3085 = vmatprep.mubr.bf16.mxu0 0
        %3086 = vmatmul.mubr.bf16.gmra.mrb[0].mxu0 %v2963
        %v3087 = vpop.f32.mrb[0].mxu0
        %v3088 = vadd.f32 0.0, %v3087
        %v3089 = vpop.f32.mrb[0].mxu0
        %v3090 = vpop.f32.mrb[0].mxu0
        %v3091 = vadd.f32 0.0, %v3090
        %v3092 = vpop.f32.mrb[0].mxu0
        %3093 = vmatprep.mubr.bf16.mxu0 0
        %3094 = vmatmul.mubr.bf16.gmra.mrb[0].mxu0 %v2966
        %v3095 = vpop.f32.mrb[0].mxu0
        %v3096 = vadd.f32 0.0, %v3095
        %v3097 = vpop.f32.mrb[0].mxu0
        %v3098 = vpop.f32.mrb[0].mxu0
        %v3099 = vadd.f32 0.0, %v3098
        %v3100 = vpop.f32.mrb[0].mxu0
        %3101 = vmatprep.mubr.bf16.mxu0 0
        %3102 = vmatmul.mubr.bf16.gmra.mrb[0].mxu0 %v2969
        %v3103 = vpop.f32.mrb[0].mxu0
        %v3104 = vadd.f32 0.0, %v3103
        %v3105 = vpop.f32.mrb[0].mxu0
        %v3106 = vpop.f32.mrb[0].mxu0
        %v3107 = vadd.f32 0.0, %v3106
        %v3108 = vpop.f32.mrb[0].mxu0
        %3109 = vmatprep.mubr.bf16.mxu0 0
        %3110 = vmatmul.mubr.bf16.gmra.mrb[0].mxu0 %v2972
        %v3111 = vpop.f32.mrb[0].mxu0
        %v3112 = vadd.f32 0.0, %v3111
        %v3113 = vpop.f32.mrb[0].mxu0
        %v3114 = vpop.f32.mrb[0].mxu0
        %v3115 = vadd.f32 0.0, %v3114
        %v3116 = vpop.f32.mrb[0].mxu0
        %3117 = vmatprep.mubr.bf16.mxu0 0
        %3118 = vmatmul.mubr.bf16.gmra.mrb[0].mxu0 %v2975
        %v3119 = vpop.f32.mrb[0].mxu0
        %v3120 = vadd.f32 0.0, %v3119
        %v3121 = vpop.f32.mrb[0].mxu0
        %v3122 = vpop.f32.mrb[0].mxu0
        %v3123 = vadd.f32 0.0, %v3122
        %v3124 = vpop.f32.mrb[0].mxu0
        %3125 = vmatprep.mubr.bf16.mxu0 0
        %3126 = vmatmul.mubr.bf16.gmra.mrb[0].mxu0 %v2978
        %v3127 = vpop.f32.mrb[0].mxu0
        %v3128 = vadd.f32 0.0, %v3127
        %v3129 = vpop.f32.mrb[0].mxu0
        %v3130 = vpop.f32.mrb[0].mxu0
        %v3131 = vadd.f32 0.0, %v3130
        %v3132 = vpop.f32.mrb[0].mxu0
        %3133 = vmatprep.mubr.bf16.mxu0 0
        %3134 = vmatmul.mubr.bf16.gmra.mrb[0].mxu0 %v2981
        %v3135 = vpop.f32.mrb[0].mxu0
        %v3136 = vadd.f32 0.0, %v3135
        %v3137 = vpop.f32.mrb[0].mxu0
        %v3138 = vpop.f32.mrb[0].mxu0
        %v3139 = vadd.f32 0.0, %v3138
        %v3140 = vpop.f32.mrb[0].mxu0
        %3141 = vmatprep.mubr.bf16.mxu0 0
        %3142 = vmatmul.mubr.bf16.gmra.mrb[0].mxu0 %v2984
        %v3143 = vpop.f32.mrb[0].mxu0
        %v3144 = vadd.f32 0.0, %v3143
        %v3145 = vpop.f32.mrb[0].mxu0
        %v3146 = vpop.f32.mrb[0].mxu0
        %v3147 = vadd.f32 0.0, %v3146
        %v3148 = vpop.f32.mrb[0].mxu0
        %3149 = vdwg.mxu0
        %v3150 = vadd.f32 %v2680, %v3024
        %v3151 = vadd.f32 %v2681, %v3027
        %v3152 = vadd.f32 %v2682, %v3032
        %v3153 = vadd.f32 %v2683, %v3035
        %v3154 = vadd.f32 %v2684, %v3040
        %v3155 = vadd.f32 %v2685, %v3043
        %v3156 = vadd.f32 %v2686, %v3048
        %v3157 = vadd.f32 %v2687, %v3051
        %v3158 = vadd.f32 %v2688, %v3056
        %v3159 = vadd.f32 %v2689, %v3059
        %v3160 = vadd.f32 %v2690, %v3064
        %v3161 = vadd.f32 %v2691, %v3067
        %v3162 = vadd.f32 %v2692, %v3072
        %v3163 = vadd.f32 %v2693, %v3075
        %v3164 = vadd.f32 %v2694, %v3080
        %v3165 = vadd.f32 %v2695, %v3083
        %v3166 = vadd.f32 %v2696, %v3088
        %v3167 = vadd.f32 %v2697, %v3091
        %v3168 = vadd.f32 %v2698, %v3096
        %v3169 = vadd.f32 %v2699, %v3099
        %v3170 = vadd.f32 %v2700, %v3104
        %v3171 = vadd.f32 %v2701, %v3107
        %v3172 = vadd.f32 %v2702, %v3112
        %v3173 = vadd.f32 %v2703, %v3115
        %v3174 = vadd.f32 %v2704, %v3120
        %v3175 = vadd.f32 %v2705, %v3123
        %v3176 = vadd.f32 %v2706, %v3128
        %v3177 = vadd.f32 %v2707, %v3131
        %v3178 = vadd.f32 %v2708, %v3136
        %v3179 = vadd.f32 %v2709, %v3139
        %v3180 = vadd.f32 %v2710, %v3144
        %v3181 = vadd.f32 %v2711, %v3147
        %s3182 = scalar_lea.vmem %s152, 24 [#allocation2]
        %v3183 = vld [vmem:[%s3182] sm:$0xf]
        %v3184 = vld [vmem:[%s3182 + $0x4] sm:$0xf]
        %v3185 = vld [vmem:[%s3182 + $0xc] sm:$0xf]
        %v3186 = vld [vmem:[%s3182 + $0x10] sm:$0xf]
        %v3187 = vld [vmem:[%s3182 + $0x18] sm:$0xf]
        %v3188 = vld [vmem:[%s3182 + $0x1c] sm:$0xf]
        %v3189 = vld [vmem:[%s3182 + $0x24] sm:$0xf]
        %v3190 = vld [vmem:[%s3182 + $0x28] sm:$0xf]
        %v3191 = vld [vmem:[%s3182 + $0x30] sm:$0xf]
        %v3192 = vld [vmem:[%s3182 + $0x34] sm:$0xf]
        %v3193 = vld [vmem:[%s3182 + $0x3c] sm:$0xf]
        %v3194 = vld [vmem:[%s3182 + $0x40] sm:$0xf]
        %v3195 = vld [vmem:[%s3182 + $0x48] sm:$0xf]
        %v3196 = vld [vmem:[%s3182 + $0x4c] sm:$0xf]
        %v3197 = vld [vmem:[%s3182 + $0x54] sm:$0xf]
        %v3198 = vld [vmem:[%s3182 + $0x58] sm:$0xf]
        %v3199 = vld [vmem:[%s3182 + $0x60] sm:$0xf]
        %v3200 = vld [vmem:[%s3182 + $0x64] sm:$0xf]
        %v3201 = vld [vmem:[%s3182 + $0x6c] sm:$0xf]
        %v3202 = vld [vmem:[%s3182 + $0x70] sm:$0xf]
        %v3203 = vld [vmem:[%s3182 + $0x78] sm:$0xf]
        %v3204 = vld [vmem:[%s3182 + $0x7c] sm:$0xf]
        %v3205 = vld [vmem:[%s3182 + $0x84] sm:$0xf]
        %v3206 = vld [vmem:[%s3182 + $0x88] sm:$0xf]
        %v3207 = vld [vmem:[%s3182 + $0x90] sm:$0xf]
        %v3208 = vld [vmem:[%s3182 + $0x94] sm:$0xf]
        %v3209 = vld [vmem:[%s3182 + $0x9c] sm:$0xf]
        %v3210 = vld [vmem:[%s3182 + $0xa0] sm:$0xf]
        %v3211 = vld [vmem:[%s3182 + $0xa8] sm:$0xf]
        %v3212 = vld [vmem:[%s3182 + $0xac] sm:$0xf]
        %v3213 = vld [vmem:[%s3182 + $0xb4] sm:$0xf]
        %v3214 = vld [vmem:[%s3182 + $0xb8] sm:$0xf]
        %s3215 = scalar_lea.vmem [#allocation5], 12
        %v3216 = vld [vmem:[%s3215] sm:$0x3]
        %v3249 = vunpack.c.l.b16 %v3183
        %v3250 = vunpack.c.l.b16 %v3184
        %v3251 = vunpack.c.l.b16 %v3185
        %v3252 = vunpack.c.l.b16 %v3186
        %v3253 = vunpack.c.l.b16 %v3187
        %v3254 = vunpack.c.l.b16 %v3188
        %v3255 = vunpack.c.l.b16 %v3189
        %v3256 = vunpack.c.l.b16 %v3190
        %v3257 = vunpack.c.l.b16 %v3191
        %v3258 = vunpack.c.l.b16 %v3192
        %v3259 = vunpack.c.l.b16 %v3193
        %v3260 = vunpack.c.l.b16 %v3194
        %v3261 = vunpack.c.l.b16 %v3195
        %v3262 = vunpack.c.l.b16 %v3196
        %v3263 = vunpack.c.l.b16 %v3197
        %v3264 = vunpack.c.l.b16 %v3198
        %v3265 = vunpack.c.l.b16 %v3199
        %v3266 = vunpack.c.l.b16 %v3200
        %v3267 = vunpack.c.l.b16 %v3201
        %v3268 = vunpack.c.l.b16 %v3202
        %v3269 = vunpack.c.l.b16 %v3203
        %v3270 = vunpack.c.l.b16 %v3204
        %v3271 = vunpack.c.l.b16 %v3205
        %v3272 = vunpack.c.l.b16 %v3206
        %v3273 = vunpack.c.l.b16 %v3207
        %v3274 = vunpack.c.l.b16 %v3208
        %v3275 = vunpack.c.l.b16 %v3209
        %v3276 = vunpack.c.l.b16 %v3210
        %v3277 = vunpack.c.l.b16 %v3211
        %v3278 = vunpack.c.l.b16 %v3212
        %v3279 = vunpack.c.l.b16 %v3213
        %v3280 = vunpack.c.l.b16 %v3214
        %v3281 = vpack.c.b16 %v3250, %v3249
        %v3282 = vpack.c.b16 %v3252, %v3251
        %v3283 = vpack.c.b16 %v3254, %v3253
        %v3284 = vpack.c.b16 %v3256, %v3255
        %v3285 = vpack.c.b16 %v3258, %v3257
        %v3286 = vpack.c.b16 %v3260, %v3259
        %v3287 = vpack.c.b16 %v3262, %v3261
        %v3288 = vpack.c.b16 %v3264, %v3263
        %v3289 = vpack.c.b16 %v3266, %v3265
        %v3290 = vpack.c.b16 %v3268, %v3267
        %v3291 = vpack.c.b16 %v3270, %v3269
        %v3292 = vpack.c.b16 %v3272, %v3271
        %v3293 = vpack.c.b16 %v3274, %v3273
        %v3294 = vpack.c.b16 %v3276, %v3275
        %v3295 = vpack.c.b16 %v3278, %v3277
        %v3296 = vpack.c.b16 %v3280, %v3279
        %v3298 = vsel %vm664, %v3281, 0
        %v3301 = vsel %vm664, %v3282, 0
        %v3304 = vsel %vm664, %v3283, 0
        %v3307 = vsel %vm664, %v3284, 0
        %v3310 = vsel %vm664, %v3285, 0
        %v3313 = vsel %vm664, %v3286, 0
        %v3316 = vsel %vm664, %v3287, 0
        %v3319 = vsel %vm664, %v3288, 0
        %v3322 = vsel %vm664, %v3289, 0
        %v3325 = vsel %vm664, %v3290, 0
        %v3328 = vsel %vm664, %v3291, 0
        %v3331 = vsel %vm664, %v3292, 0
        %v3334 = vsel %vm664, %v3293, 0
        %v3337 = vsel %vm664, %v3294, 0
        %v3340 = vsel %vm664, %v3295, 0
        %v3343 = vsel %vm664, %v3296, 0
        %v3346 = vsel %vm713, %v3216, 0
        %3348 = vmatprep.subr.bf16.mxu0 0
        %3349 = vmatpush1.bf16.msra.mxu0 %v3346
        %3350 = vmatprep.subr.bf16.mxu0 0
        %3351 = vmatpush1.bf16.msra.mxu0 0
        %3352 = vmatprep.subr.bf16.mxu0 0
        %3353 = vmatpush1.bf16.msra.mxu0 0
        %3354 = vmatprep.subr.bf16.mxu0 0
        %3355 = vmatpush1.bf16.msra.mxu0 0
        %3356 = vmatprep.subr.bf16.mxu0 0
        %3357 = vmatpush1.bf16.msra.mxu0 0
        %3358 = vmatprep.subr.bf16.mxu0 0
        %3359 = vmatpush1.bf16.msra.mxu0 0
        %3360 = vmatprep.subr.bf16.mxu0 0
        %3361 = vmatpush1.bf16.msra.mxu0 0
        %3362 = vmatprep.subr.bf16.mxu0 0
        %3363 = vmatpush1.bf16.msra.mxu0 0
        %3364 = vmatprep.subr.bf16.mxu0 0
        %3365 = vmatpush1.bf16.msra.mxu0 0
        %3366 = vmatprep.subr.bf16.mxu0 0
        %3367 = vmatpush1.bf16.msra.mxu0 0
        %3368 = vmatprep.subr.bf16.mxu0 0
        %3369 = vmatpush1.bf16.msra.mxu0 0
        %3370 = vmatprep.subr.bf16.mxu0 0
        %3371 = vmatpush1.bf16.msra.mxu0 0
        %3372 = vmatprep.subr.bf16.mxu0 0
        %3373 = vmatpush1.bf16.msra.mxu0 0
        %3374 = vmatprep.subr.bf16.mxu0 0
        %3375 = vmatpush1.bf16.msra.mxu0 0
        %3376 = vmatprep.subr.bf16.mxu0 0
        %3377 = vmatpush1.bf16.msra.mxu0 0
        %3378 = vmatprep.subr.bf16.mxu0 0
        %3379 = vmatpush1.bf16.msra.mxu0 0
        %3380 = vmatprep.mubr.bf16.mxu0 0
        %3381 = vmatmul.mubr.bf16.gmra.mrb[0].mxu0 %v3298
        %v3382 = vpop.f32.mrb[0].mxu0
        %v3383 = vadd.f32 0.0, %v3382
        %v3384 = vpop.f32.mrb[0].mxu0
        %v3385 = vpop.f32.mrb[0].mxu0
        %v3386 = vadd.f32 0.0, %v3385
        %v3387 = vpop.f32.mrb[0].mxu0
        %3388 = vmatprep.mubr.bf16.mxu0 0
        %3389 = vmatmul.mubr.bf16.gmra.mrb[0].mxu0 %v3301
        %v3390 = vpop.f32.mrb[0].mxu0
        %v3391 = vadd.f32 0.0, %v3390
        %v3392 = vpop.f32.mrb[0].mxu0
        %v3393 = vpop.f32.mrb[0].mxu0
        %v3394 = vadd.f32 0.0, %v3393
        %v3395 = vpop.f32.mrb[0].mxu0
        %3396 = vmatprep.mubr.bf16.mxu0 0
        %3397 = vmatmul.mubr.bf16.gmra.mrb[0].mxu0 %v3304
        %v3398 = vpop.f32.mrb[0].mxu0
        %v3399 = vadd.f32 0.0, %v3398
        %v3400 = vpop.f32.mrb[0].mxu0
        %v3401 = vpop.f32.mrb[0].mxu0
        %v3402 = vadd.f32 0.0, %v3401
        %v3403 = vpop.f32.mrb[0].mxu0
        %3404 = vmatprep.mubr.bf16.mxu0 0
        %3405 = vmatmul.mubr.bf16.gmra.mrb[0].mxu0 %v3307
        %v3406 = vpop.f32.mrb[0].mxu0
        %v3407 = vadd.f32 0.0, %v3406
        %v3408 = vpop.f32.mrb[0].mxu0
        %v3409 = vpop.f32.mrb[0].mxu0
        %v3410 = vadd.f32 0.0, %v3409
        %v3411 = vpop.f32.mrb[0].mxu0
        %3412 = vmatprep.mubr.bf16.mxu0 0
        %3413 = vmatmul.mubr.bf16.gmra.mrb[0].mxu0 %v3310
        %v3414 = vpop.f32.mrb[0].mxu0
        %v3415 = vadd.f32 0.0, %v3414
        %v3416 = vpop.f32.mrb[0].mxu0
        %v3417 = vpop.f32.mrb[0].mxu0
        %v3418 = vadd.f32 0.0, %v3417
        %v3419 = vpop.f32.mrb[0].mxu0
        %3420 = vmatprep.mubr.bf16.mxu0 0
        %3421 = vmatmul.mubr.bf16.gmra.mrb[0].mxu0 %v3313
        %v3422 = vpop.f32.mrb[0].mxu0
        %v3423 = vadd.f32 0.0, %v3422
        %v3424 = vpop.f32.mrb[0].mxu0
        %v3425 = vpop.f32.mrb[0].mxu0
        %v3426 = vadd.f32 0.0, %v3425
        %v3427 = vpop.f32.mrb[0].mxu0
        %3428 = vmatprep.mubr.bf16.mxu0 0
        %3429 = vmatmul.mubr.bf16.gmra.mrb[0].mxu0 %v3316
        %v3430 = vpop.f32.mrb[0].mxu0
        %v3431 = vadd.f32 0.0, %v3430
        %v3432 = vpop.f32.mrb[0].mxu0
        %v3433 = vpop.f32.mrb[0].mxu0
        %v3434 = vadd.f32 0.0, %v3433
        %v3435 = vpop.f32.mrb[0].mxu0
        %3436 = vmatprep.mubr.bf16.mxu0 0
        %3437 = vmatmul.mubr.bf16.gmra.mrb[0].mxu0 %v3319
        %v3438 = vpop.f32.mrb[0].mxu0
        %v3439 = vadd.f32 0.0, %v3438
        %v3440 = vpop.f32.mrb[0].mxu0
        %v3441 = vpop.f32.mrb[0].mxu0
        %v3442 = vadd.f32 0.0, %v3441
        %v3443 = vpop.f32.mrb[0].mxu0
        %3444 = vmatprep.mubr.bf16.mxu0 0
        %3445 = vmatmul.mubr.bf16.gmra.mrb[0].mxu0 %v3322
        %v3446 = vpop.f32.mrb[0].mxu0
        %v3447 = vadd.f32 0.0, %v3446
        %v3448 = vpop.f32.mrb[0].mxu0
        %v3449 = vpop.f32.mrb[0].mxu0
        %v3450 = vadd.f32 0.0, %v3449
        %v3451 = vpop.f32.mrb[0].mxu0
        %3452 = vmatprep.mubr.bf16.mxu0 0
        %3453 = vmatmul.mubr.bf16.gmra.mrb[0].mxu0 %v3325
        %v3454 = vpop.f32.mrb[0].mxu0
        %v3455 = vadd.f32 0.0, %v3454
        %v3456 = vpop.f32.mrb[0].mxu0
        %v3457 = vpop.f32.mrb[0].mxu0
        %v3458 = vadd.f32 0.0, %v3457
        %v3459 = vpop.f32.mrb[0].mxu0
        %3460 = vmatprep.mubr.bf16.mxu0 0
        %3461 = vmatmul.mubr.bf16.gmra.mrb[0].mxu0 %v3328
        %v3462 = vpop.f32.mrb[0].mxu0
        %v3463 = vadd.f32 0.0, %v3462
        %v3464 = vpop.f32.mrb[0].mxu0
        %v3465 = vpop.f32.mrb[0].mxu0
        %v3466 = vadd.f32 0.0, %v3465
        %v3467 = vpop.f32.mrb[0].mxu0
        %3468 = vmatprep.mubr.bf16.mxu0 0
        %3469 = vmatmul.mubr.bf16.gmra.mrb[0].mxu0 %v3331
        %v3470 = vpop.f32.mrb[0].mxu0
        %v3471 = vadd.f32 0.0, %v3470
        %v3472 = vpop.f32.mrb[0].mxu0
        %v3473 = vpop.f32.mrb[0].mxu0
        %v3474 = vadd.f32 0.0, %v3473
        %v3475 = vpop.f32.mrb[0].mxu0
        %3476 = vmatprep.mubr.bf16.mxu0 0
        %3477 = vmatmul.mubr.bf16.gmra.mrb[0].mxu0 %v3334
        %v3478 = vpop.f32.mrb[0].mxu0
        %v3479 = vadd.f32 0.0, %v3478
        %v3480 = vpop.f32.mrb[0].mxu0
        %v3481 = vpop.f32.mrb[0].mxu0
        %v3482 = vadd.f32 0.0, %v3481
        %v3483 = vpop.f32.mrb[0].mxu0
        %3484 = vmatprep.mubr.bf16.mxu0 0
        %3485 = vmatmul.mubr.bf16.gmra.mrb[0].mxu0 %v3337
        %v3486 = vpop.f32.mrb[0].mxu0
        %v3487 = vadd.f32 0.0, %v3486
        %v3488 = vpop.f32.mrb[0].mxu0
        %v3489 = vpop.f32.mrb[0].mxu0
        %v3490 = vadd.f32 0.0, %v3489
        %v3491 = vpop.f32.mrb[0].mxu0
        %3492 = vmatprep.mubr.bf16.mxu0 0
        %3493 = vmatmul.mubr.bf16.gmra.mrb[0].mxu0 %v3340
        %v3494 = vpop.f32.mrb[0].mxu0
        %v3495 = vadd.f32 0.0, %v3494
        %v3496 = vpop.f32.mrb[0].mxu0
        %v3497 = vpop.f32.mrb[0].mxu0
        %v3498 = vadd.f32 0.0, %v3497
        %v3499 = vpop.f32.mrb[0].mxu0
        %3500 = vmatprep.mubr.bf16.mxu0 0
        %3501 = vmatmul.mubr.bf16.gmra.mrb[0].mxu0 %v3343
        %v3502 = vpop.f32.mrb[0].mxu0
        %v3503 = vadd.f32 0.0, %v3502
        %v3504 = vpop.f32.mrb[0].mxu0
        %v3505 = vpop.f32.mrb[0].mxu0
        %v3506 = vadd.f32 0.0, %v3505
        %v3507 = vpop.f32.mrb[0].mxu0
        %3508 = vdwg.mxu0
        %v3509 = vadd.f32 %v3150, %v3383
        %v3510 = vadd.f32 %v3151, %v3386
        %v3511 = vadd.f32 %v3152, %v3391
        %v3512 = vadd.f32 %v3153, %v3394
        %v3513 = vadd.f32 %v3154, %v3399
        %v3514 = vadd.f32 %v3155, %v3402
        %v3515 = vadd.f32 %v3156, %v3407
        %v3516 = vadd.f32 %v3157, %v3410
        %v3517 = vadd.f32 %v3158, %v3415
        %v3518 = vadd.f32 %v3159, %v3418
        %v3519 = vadd.f32 %v3160, %v3423
        %v3520 = vadd.f32 %v3161, %v3426
        %v3521 = vadd.f32 %v3162, %v3431
        %v3522 = vadd.f32 %v3163, %v3434
        %v3523 = vadd.f32 %v3164, %v3439
        %v3524 = vadd.f32 %v3165, %v3442
        %v3525 = vadd.f32 %v3166, %v3447
        %v3526 = vadd.f32 %v3167, %v3450
        %v3527 = vadd.f32 %v3168, %v3455
        %v3528 = vadd.f32 %v3169, %v3458
        %v3529 = vadd.f32 %v3170, %v3463
        %v3530 = vadd.f32 %v3171, %v3466
        %v3531 = vadd.f32 %v3172, %v3471
        %v3532 = vadd.f32 %v3173, %v3474
        %v3533 = vadd.f32 %v3174, %v3479
        %v3534 = vadd.f32 %v3175, %v3482
        %v3535 = vadd.f32 %v3176, %v3487
        %v3536 = vadd.f32 %v3177, %v3490
        %v3537 = vadd.f32 %v3178, %v3495
        %v3538 = vadd.f32 %v3179, %v3498
        %v3539 = vadd.f32 %v3180, %v3503
        %v3540 = vadd.f32 %v3181, %v3506
        %v3541 = vld [vmem:[%s3182] sm:$0xf]
        %v3542 = vld [vmem:[%s3182 + $0x4] sm:$0xf]
        %v3543 = vld [vmem:[%s3182 + $0x8] sm:$0x1]
        %v3544 = vld [vmem:[%s3182 + $0xc] sm:$0xf]
        %v3545 = vld [vmem:[%s3182 + $0x10] sm:$0xf]
        %v3546 = vld [vmem:[%s3182 + $0x14] sm:$0x1]
        %v3547 = vld [vmem:[%s3182 + $0x18] sm:$0xf]
        %v3548 = vld [vmem:[%s3182 + $0x1c] sm:$0xf]
        %v3549 = vld [vmem:[%s3182 + $0x20] sm:$0x1]
        %v3550 = vld [vmem:[%s3182 + $0x24] sm:$0xf]
        %v3551 = vld [vmem:[%s3182 + $0x28] sm:$0xf]
        %v3552 = vld [vmem:[%s3182 + $0x2c] sm:$0x1]
        %v3553 = vld [vmem:[%s3182 + $0x30] sm:$0xf]
        %v3554 = vld [vmem:[%s3182 + $0x34] sm:$0xf]
        %v3555 = vld [vmem:[%s3182 + $0x38] sm:$0x1]
        %v3556 = vld [vmem:[%s3182 + $0x3c] sm:$0xf]
        %v3557 = vld [vmem:[%s3182 + $0x40] sm:$0xf]
        %v3558 = vld [vmem:[%s3182 + $0x44] sm:$0x1]
        %v3559 = vld [vmem:[%s3182 + $0x48] sm:$0xf]
        %v3560 = vld [vmem:[%s3182 + $0x4c] sm:$0xf]
        %v3561 = vld [vmem:[%s3182 + $0x50] sm:$0x1]
        %v3562 = vld [vmem:[%s3182 + $0x54] sm:$0xf]
        %v3563 = vld [vmem:[%s3182 + $0x58] sm:$0xf]
        %v3564 = vld [vmem:[%s3182 + $0x5c] sm:$0x1]
        %v3565 = vld [vmem:[%s3182 + $0x60] sm:$0xf]
        %v3566 = vld [vmem:[%s3182 + $0x64] sm:$0xf]
        %v3567 = vld [vmem:[%s3182 + $0x68] sm:$0x1]
        %v3568 = vld [vmem:[%s3182 + $0x6c] sm:$0xf]
        %v3569 = vld [vmem:[%s3182 + $0x70] sm:$0xf]
        %v3570 = vld [vmem:[%s3182 + $0x74] sm:$0x1]
        %v3571 = vld [vmem:[%s3182 + $0x78] sm:$0xf]
        %v3572 = vld [vmem:[%s3182 + $0x7c] sm:$0xf]
        %v3573 = vld [vmem:[%s3182 + $0x80] sm:$0x1]
        %v3574 = vld [vmem:[%s3182 + $0x84] sm:$0xf]
        %v3575 = vld [vmem:[%s3182 + $0x88] sm:$0xf]
        %v3576 = vld [vmem:[%s3182 + $0x8c] sm:$0x1]
        %v3577 = vld [vmem:[%s3182 + $0x90] sm:$0xf]
        %v3578 = vld [vmem:[%s3182 + $0x94] sm:$0xf]
        %v3579 = vld [vmem:[%s3182 + $0x98] sm:$0x1]
        %v3580 = vld [vmem:[%s3182 + $0x9c] sm:$0xf]
        %v3581 = vld [vmem:[%s3182 + $0xa0] sm:$0xf]
        %v3582 = vld [vmem:[%s3182 + $0xa4] sm:$0x1]
        %v3583 = vld [vmem:[%s3182 + $0xa8] sm:$0xf]
        %v3584 = vld [vmem:[%s3182 + $0xac] sm:$0xf]
        %v3585 = vld [vmem:[%s3182 + $0xb0] sm:$0x1]
        %v3586 = vld [vmem:[%s3182 + $0xb4] sm:$0xf]
        %v3587 = vld [vmem:[%s3182 + $0xb8] sm:$0xf]
        %v3588 = vld [vmem:[%s3182 + $0xbc] sm:$0x1]
        %v3590 = vshrl.u32 %v3541, 16
        %v3592 = vrot.slane %v3590, 4
        %v3593 = vshll.u32 %v3541, 16
        %v3595 = vrot.slane %v3593, 5
        %v3596 = vor.u32 %v3592, %v3595
        %v3597 = vrot.slane %v3596, 4
        %v3599 = vshll.u32 %v3542, 16
        %v3601 = vrot.slane %v3599, 5
        %v3602 = vsel %vm229, %v3597, %v3601
        %v3603 = vshrl.u32 %v3542, 16
        %v3605 = vrot.slane %v3603, 4
        %v3606 = vor.u32 %v3605, %v3601
        %v3607 = vrot.slane %v3606, 4
        %v3609 = vshll.u32 %v3543, 16
        %v3611 = vrot.slane %v3609, 5
        %v3612 = vsel %vm229, %v3607, %v3611
        %v3614 = vshrl.u32 %v3544, 16
        %v3616 = vrot.slane %v3614, 4
        %v3617 = vshll.u32 %v3544, 16
        %v3619 = vrot.slane %v3617, 5
        %v3620 = vor.u32 %v3616, %v3619
        %v3621 = vrot.slane %v3620, 4
        %v3623 = vshll.u32 %v3545, 16
        %v3625 = vrot.slane %v3623, 5
        %v3626 = vsel %vm229, %v3621, %v3625
        %v3627 = vshrl.u32 %v3545, 16
        %v3629 = vrot.slane %v3627, 4
        %v3630 = vor.u32 %v3629, %v3625
        %v3631 = vrot.slane %v3630, 4
        %v3633 = vshll.u32 %v3546, 16
        %v3635 = vrot.slane %v3633, 5
        %v3636 = vsel %vm229, %v3631, %v3635
        %v3638 = vshrl.u32 %v3547, 16
        %v3640 = vrot.slane %v3638, 4
        %v3641 = vshll.u32 %v3547, 16
        %v3643 = vrot.slane %v3641, 5
        %v3644 = vor.u32 %v3640, %v3643
        %v3645 = vrot.slane %v3644, 4
        %v3647 = vshll.u32 %v3548, 16
        %v3649 = vrot.slane %v3647, 5
        %v3650 = vsel %vm229, %v3645, %v3649
        %v3651 = vshrl.u32 %v3548, 16
        %v3653 = vrot.slane %v3651, 4
        %v3654 = vor.u32 %v3653, %v3649
        %v3655 = vrot.slane %v3654, 4
        %v3657 = vshll.u32 %v3549, 16
        %v3659 = vrot.slane %v3657, 5
        %v3660 = vsel %vm229, %v3655, %v3659
        %v3662 = vshrl.u32 %v3550, 16
        %v3664 = vrot.slane %v3662, 4
        %v3665 = vshll.u32 %v3550, 16
        %v3667 = vrot.slane %v3665, 5
        %v3668 = vor.u32 %v3664, %v3667
        %v3669 = vrot.slane %v3668, 4
        %v3671 = vshll.u32 %v3551, 16
        %v3673 = vrot.slane %v3671, 5
        %v3674 = vsel %vm229, %v3669, %v3673
        %v3675 = vshrl.u32 %v3551, 16
        %v3677 = vrot.slane %v3675, 4
        %v3678 = vor.u32 %v3677, %v3673
        %v3679 = vrot.slane %v3678, 4
        %v3681 = vshll.u32 %v3552, 16
        %v3683 = vrot.slane %v3681, 5
        %v3684 = vsel %vm229, %v3679, %v3683
        %v3686 = vshrl.u32 %v3553, 16
        %v3688 = vrot.slane %v3686, 4
        %v3689 = vshll.u32 %v3553, 16
        %v3691 = vrot.slane %v3689, 5
        %v3692 = vor.u32 %v3688, %v3691
        %v3693 = vrot.slane %v3692, 4
        %v3695 = vshll.u32 %v3554, 16
        %v3697 = vrot.slane %v3695, 5
        %v3698 = vsel %vm229, %v3693, %v3697
        %v3699 = vshrl.u32 %v3554, 16
        %v3701 = vrot.slane %v3699, 4
        %v3702 = vor.u32 %v3701, %v3697
        %v3703 = vrot.slane %v3702, 4
        %v3705 = vshll.u32 %v3555, 16
        %v3707 = vrot.slane %v3705, 5
        %v3708 = vsel %vm229, %v3703, %v3707
        %v3710 = vshrl.u32 %v3556, 16
        %v3712 = vrot.slane %v3710, 4
        %v3713 = vshll.u32 %v3556, 16
        %v3715 = vrot.slane %v3713, 5
        %v3716 = vor.u32 %v3712, %v3715
        %v3717 = vrot.slane %v3716, 4
        %v3719 = vshll.u32 %v3557, 16
        %v3721 = vrot.slane %v3719, 5
        %v3722 = vsel %vm229, %v3717, %v3721
        %v3723 = vshrl.u32 %v3557, 16
        %v3725 = vrot.slane %v3723, 4
        %v3726 = vor.u32 %v3725, %v3721
        %v3727 = vrot.slane %v3726, 4
        %v3729 = vshll.u32 %v3558, 16
        %v3731 = vrot.slane %v3729, 5
        %v3732 = vsel %vm229, %v3727, %v3731
        %v3734 = vshrl.u32 %v3559, 16
        %v3736 = vrot.slane %v3734, 4
        %v3737 = vshll.u32 %v3559, 16
        %v3739 = vrot.slane %v3737, 5
        %v3740 = vor.u32 %v3736, %v3739
        %v3741 = vrot.slane %v3740, 4
        %v3743 = vshll.u32 %v3560, 16
        %v3745 = vrot.slane %v3743, 5
        %v3746 = vsel %vm229, %v3741, %v3745
        %v3747 = vshrl.u32 %v3560, 16
        %v3749 = vrot.slane %v3747, 4
        %v3750 = vor.u32 %v3749, %v3745
        %v3751 = vrot.slane %v3750, 4
        %v3753 = vshll.u32 %v3561, 16
        %v3755 = vrot.slane %v3753, 5
        %v3756 = vsel %vm229, %v3751, %v3755
        %v3758 = vshrl.u32 %v3562, 16
        %v3760 = vrot.slane %v3758, 4
        %v3761 = vshll.u32 %v3562, 16
        %v3763 = vrot.slane %v3761, 5
        %v3764 = vor.u32 %v3760, %v3763
        %v3765 = vrot.slane %v3764, 4
        %v3767 = vshll.u32 %v3563, 16
        %v3769 = vrot.slane %v3767, 5
        %v3770 = vsel %vm229, %v3765, %v3769
        %v3771 = vshrl.u32 %v3563, 16
        %v3773 = vrot.slane %v3771, 4
        %v3774 = vor.u32 %v3773, %v3769
        %v3775 = vrot.slane %v3774, 4
        %v3777 = vshll.u32 %v3564, 16
        %v3779 = vrot.slane %v3777, 5
        %v3780 = vsel %vm229, %v3775, %v3779
        %v3782 = vshrl.u32 %v3565, 16
        %v3784 = vrot.slane %v3782, 4
        %v3785 = vshll.u32 %v3565, 16
        %v3787 = vrot.slane %v3785, 5
        %v3788 = vor.u32 %v3784, %v3787
        %v3789 = vrot.slane %v3788, 4
        %v3791 = vshll.u32 %v3566, 16
        %v3793 = vrot.slane %v3791, 5
        %v3794 = vsel %vm229, %v3789, %v3793
        %v3795 = vshrl.u32 %v3566, 16
        %v3797 = vrot.slane %v3795, 4
        %v3798 = vor.u32 %v3797, %v3793
        %v3799 = vrot.slane %v3798, 4
        %v3801 = vshll.u32 %v3567, 16
        %v3803 = vrot.slane %v3801, 5
        %v3804 = vsel %vm229, %v3799, %v3803
        %v3806 = vshrl.u32 %v3568, 16
        %v3808 = vrot.slane %v3806, 4
        %v3809 = vshll.u32 %v3568, 16
        %v3811 = vrot.slane %v3809, 5
        %v3812 = vor.u32 %v3808, %v3811
        %v3813 = vrot.slane %v3812, 4
        %v3815 = vshll.u32 %v3569, 16
        %v3817 = vrot.slane %v3815, 5
        %v3818 = vsel %vm229, %v3813, %v3817
        %v3819 = vshrl.u32 %v3569, 16
        %v3821 = vrot.slane %v3819, 4
        %v3822 = vor.u32 %v3821, %v3817
        %v3823 = vrot.slane %v3822, 4
        %v3825 = vshll.u32 %v3570, 16
        %v3827 = vrot.slane %v3825, 5
        %v3828 = vsel %vm229, %v3823, %v3827
        %v3830 = vshrl.u32 %v3571, 16
        %v3832 = vrot.slane %v3830, 4
        %v3833 = vshll.u32 %v3571, 16
        %v3835 = vrot.slane %v3833, 5
        %v3836 = vor.u32 %v3832, %v3835
        %v3837 = vrot.slane %v3836, 4
        %v3839 = vshll.u32 %v3572, 16
        %v3841 = vrot.slane %v3839, 5
        %v3842 = vsel %vm229, %v3837, %v3841
        %v3843 = vshrl.u32 %v3572, 16
        %v3845 = vrot.slane %v3843, 4
        %v3846 = vor.u32 %v3845, %v3841
        %v3847 = vrot.slane %v3846, 4
        %v3849 = vshll.u32 %v3573, 16
        %v3851 = vrot.slane %v3849, 5
        %v3852 = vsel %vm229, %v3847, %v3851
        %v3854 = vshrl.u32 %v3574, 16
        %v3856 = vrot.slane %v3854, 4
        %v3857 = vshll.u32 %v3574, 16
        %v3859 = vrot.slane %v3857, 5
        %v3860 = vor.u32 %v3856, %v3859
        %v3861 = vrot.slane %v3860, 4
        %v3863 = vshll.u32 %v3575, 16
        %v3865 = vrot.slane %v3863, 5
        %v3866 = vsel %vm229, %v3861, %v3865
        %v3867 = vshrl.u32 %v3575, 16
        %v3869 = vrot.slane %v3867, 4
        %v3870 = vor.u32 %v3869, %v3865
        %v3871 = vrot.slane %v3870, 4
        %v3873 = vshll.u32 %v3576, 16
        %v3875 = vrot.slane %v3873, 5
        %v3876 = vsel %vm229, %v3871, %v3875
        %v3878 = vshrl.u32 %v3577, 16
        %v3880 = vrot.slane %v3878, 4
        %v3881 = vshll.u32 %v3577, 16
        %v3883 = vrot.slane %v3881, 5
        %v3884 = vor.u32 %v3880, %v3883
        %v3885 = vrot.slane %v3884, 4
        %v3887 = vshll.u32 %v3578, 16
        %v3889 = vrot.slane %v3887, 5
        %v3890 = vsel %vm229, %v3885, %v3889
        %v3891 = vshrl.u32 %v3578, 16
        %v3893 = vrot.slane %v3891, 4
        %v3894 = vor.u32 %v3893, %v3889
        %v3895 = vrot.slane %v3894, 4
        %v3897 = vshll.u32 %v3579, 16
        %v3899 = vrot.slane %v3897, 5
        %v3900 = vsel %vm229, %v3895, %v3899
        %v3902 = vshrl.u32 %v3580, 16
        %v3904 = vrot.slane %v3902, 4
        %v3905 = vshll.u32 %v3580, 16
        %v3907 = vrot.slane %v3905, 5
        %v3908 = vor.u32 %v3904, %v3907
        %v3909 = vrot.slane %v3908, 4
        %v3911 = vshll.u32 %v3581, 16
        %v3913 = vrot.slane %v3911, 5
        %v3914 = vsel %vm229, %v3909, %v3913
        %v3915 = vshrl.u32 %v3581, 16
        %v3917 = vrot.slane %v3915, 4
        %v3918 = vor.u32 %v3917, %v3913
        %v3919 = vrot.slane %v3918, 4
        %v3921 = vshll.u32 %v3582, 16
        %v3923 = vrot.slane %v3921, 5
        %v3924 = vsel %vm229, %v3919, %v3923
        %v3926 = vshrl.u32 %v3583, 16
        %v3928 = vrot.slane %v3926, 4
        %v3929 = vshll.u32 %v3583, 16
        %v3931 = vrot.slane %v3929, 5
        %v3932 = vor.u32 %v3928, %v3931
        %v3933 = vrot.slane %v3932, 4
        %v3935 = vshll.u32 %v3584, 16
        %v3937 = vrot.slane %v3935, 5
        %v3938 = vsel %vm229, %v3933, %v3937
        %v3939 = vshrl.u32 %v3584, 16
        %v3941 = vrot.slane %v3939, 4
        %v3942 = vor.u32 %v3941, %v3937
        %v3943 = vrot.slane %v3942, 4
        %v3945 = vshll.u32 %v3585, 16
        %v3947 = vrot.slane %v3945, 5
        %v3948 = vsel %vm229, %v3943, %v3947
        %v3950 = vshrl.u32 %v3586, 16
        %v3952 = vrot.slane %v3950, 4
        %v3953 = vshll.u32 %v3586, 16
        %v3955 = vrot.slane %v3953, 5
        %v3956 = vor.u32 %v3952, %v3955
        %v3957 = vrot.slane %v3956, 4
        %v3959 = vshll.u32 %v3587, 16
        %v3961 = vrot.slane %v3959, 5
        %v3962 = vsel %vm229, %v3957, %v3961
        %v3963 = vshrl.u32 %v3587, 16
        %v3965 = vrot.slane %v3963, 4
        %v3966 = vor.u32 %v3965, %v3961
        %v3967 = vrot.slane %v3966, 4
        %v3969 = vshll.u32 %v3588, 16
        %v3971 = vrot.slane %v3969, 5
        %v3972 = vsel %vm229, %v3967, %v3971
        %s3973 = scalar_lea.vmem [#allocation5], 14
        %v3974 = vld [vmem:[%s3973] sm:$0x3]
        %v3975 = vunpack.c.l.b16 %v3602
        %v3976 = vunpack.c.l.b16 %v3612
        %v3977 = vunpack.c.l.b16 %v3626
        %v3978 = vunpack.c.l.b16 %v3636
        %v3979 = vunpack.c.l.b16 %v3650
        %v3980 = vunpack.c.l.b16 %v3660
        %v3981 = vunpack.c.l.b16 %v3674
        %v3982 = vunpack.c.l.b16 %v3684
        %v3983 = vunpack.c.l.b16 %v3698
        %v3984 = vunpack.c.l.b16 %v3708
        %v3985 = vunpack.c.l.b16 %v3722
        %v3986 = vunpack.c.l.b16 %v3732
        %v3987 = vunpack.c.l.b16 %v3746
        %v3988 = vunpack.c.l.b16 %v3756
        %v3989 = vunpack.c.l.b16 %v3770
        %v3990 = vunpack.c.l.b16 %v3780
        %v3991 = vunpack.c.l.b16 %v3794
        %v3992 = vunpack.c.l.b16 %v3804
        %v3993 = vunpack.c.l.b16 %v3818
        %v3994 = vunpack.c.l.b16 %v3828
        %v3995 = vunpack.c.l.b16 %v3842
        %v3996 = vunpack.c.l.b16 %v3852
        %v3997 = vunpack.c.l.b16 %v3866
        %v3998 = vunpack.c.l.b16 %v3876
        %v3999 = vunpack.c.l.b16 %v3890
        %v4000 = vunpack.c.l.b16 %v3900
        %v4001 = vunpack.c.l.b16 %v3914
        %v4002 = vunpack.c.l.b16 %v3924
        %v4003 = vunpack.c.l.b16 %v3938
        %v4004 = vunpack.c.l.b16 %v3948
        %v4005 = vunpack.c.l.b16 %v3962
        %v4006 = vunpack.c.l.b16 %v3972
        %v4007 = vpack.c.b16 %v3976, %v3975
        %v4008 = vpack.c.b16 %v3978, %v3977
        %v4009 = vpack.c.b16 %v3980, %v3979
        %v4010 = vpack.c.b16 %v3982, %v3981
        %v4011 = vpack.c.b16 %v3984, %v3983
        %v4012 = vpack.c.b16 %v3986, %v3985
        %v4013 = vpack.c.b16 %v3988, %v3987
        %v4014 = vpack.c.b16 %v3990, %v3989
        %v4015 = vpack.c.b16 %v3992, %v3991
        %v4016 = vpack.c.b16 %v3994, %v3993
        %v4017 = vpack.c.b16 %v3996, %v3995
        %v4018 = vpack.c.b16 %v3998, %v3997
        %v4019 = vpack.c.b16 %v4000, %v3999
        %v4020 = vpack.c.b16 %v4002, %v4001
        %v4021 = vpack.c.b16 %v4004, %v4003
        %v4022 = vpack.c.b16 %v4006, %v4005
        %v4024 = vsel %vm664, %v4007, 0
        %v4027 = vsel %vm664, %v4008, 0
        %v4030 = vsel %vm664, %v4009, 0
        %v4033 = vsel %vm664, %v4010, 0
        %v4036 = vsel %vm664, %v4011, 0
        %v4039 = vsel %vm664, %v4012, 0
        %v4042 = vsel %vm664, %v4013, 0
        %v4045 = vsel %vm664, %v4014, 0
        %v4048 = vsel %vm664, %v4015, 0
        %v4051 = vsel %vm664, %v4016, 0
        %v4054 = vsel %vm664, %v4017, 0
        %v4057 = vsel %vm664, %v4018, 0
        %v4060 = vsel %vm664, %v4019, 0
        %v4063 = vsel %vm664, %v4020, 0
        %v4066 = vsel %vm664, %v4021, 0
        %v4069 = vsel %vm664, %v4022, 0
        %v4072 = vsel %vm713, %v3974, 0
        %4074 = vmatprep.subr.bf16.mxu0 0
        %4075 = vmatpush1.bf16.msra.mxu0 %v4072
        %4076 = vmatprep.subr.bf16.mxu0 0
        %4077 = vmatpush1.bf16.msra.mxu0 0
        %4078 = vmatprep.subr.bf16.mxu0 0
        %4079 = vmatpush1.bf16.msra.mxu0 0
        %4080 = vmatprep.subr.bf16.mxu0 0
        %4081 = vmatpush1.bf16.msra.mxu0 0
        %4082 = vmatprep.subr.bf16.mxu0 0
        %4083 = vmatpush1.bf16.msra.mxu0 0
        %4084 = vmatprep.subr.bf16.mxu0 0
        %4085 = vmatpush1.bf16.msra.mxu0 0
        %4086 = vmatprep.subr.bf16.mxu0 0
        %4087 = vmatpush1.bf16.msra.mxu0 0
        %4088 = vmatprep.subr.bf16.mxu0 0
        %4089 = vmatpush1.bf16.msra.mxu0 0
        %4090 = vmatprep.subr.bf16.mxu0 0
        %4091 = vmatpush1.bf16.msra.mxu0 0
        %4092 = vmatprep.subr.bf16.mxu0 0
        %4093 = vmatpush1.bf16.msra.mxu0 0
        %4094 = vmatprep.subr.bf16.mxu0 0
        %4095 = vmatpush1.bf16.msra.mxu0 0
        %4096 = vmatprep.subr.bf16.mxu0 0
        %4097 = vmatpush1.bf16.msra.mxu0 0
        %4098 = vmatprep.subr.bf16.mxu0 0
        %4099 = vmatpush1.bf16.msra.mxu0 0
        %4100 = vmatprep.subr.bf16.mxu0 0
        %4101 = vmatpush1.bf16.msra.mxu0 0
        %4102 = vmatprep.subr.bf16.mxu0 0
        %4103 = vmatpush1.bf16.msra.mxu0 0
        %4104 = vmatprep.subr.bf16.mxu0 0
        %4105 = vmatpush1.bf16.msra.mxu0 0
        %4106 = vmatprep.mubr.bf16.mxu0 0
        %4107 = vmatmul.mubr.bf16.gmra.mrb[0].mxu0 %v4024
        %v4108 = vpop.f32.mrb[0].mxu0
        %v4109 = vadd.f32 0.0, %v4108
        %v4110 = vpop.f32.mrb[0].mxu0
        %v4111 = vpop.f32.mrb[0].mxu0
        %v4112 = vadd.f32 0.0, %v4111
        %v4113 = vpop.f32.mrb[0].mxu0
        %4114 = vmatprep.mubr.bf16.mxu0 0
        %4115 = vmatmul.mubr.bf16.gmra.mrb[0].mxu0 %v4027
        %v4116 = vpop.f32.mrb[0].mxu0
        %v4117 = vadd.f32 0.0, %v4116
        %v4118 = vpop.f32.mrb[0].mxu0
        %v4119 = vpop.f32.mrb[0].mxu0
        %v4120 = vadd.f32 0.0, %v4119
        %v4121 = vpop.f32.mrb[0].mxu0
        %4122 = vmatprep.mubr.bf16.mxu0 0
        %4123 = vmatmul.mubr.bf16.gmra.mrb[0].mxu0 %v4030
        %v4124 = vpop.f32.mrb[0].mxu0
        %v4125 = vadd.f32 0.0, %v4124
        %v4126 = vpop.f32.mrb[0].mxu0
        %v4127 = vpop.f32.mrb[0].mxu0
        %v4128 = vadd.f32 0.0, %v4127
        %v4129 = vpop.f32.mrb[0].mxu0
        %4130 = vmatprep.mubr.bf16.mxu0 0
        %4131 = vmatmul.mubr.bf16.gmra.mrb[0].mxu0 %v4033
        %v4132 = vpop.f32.mrb[0].mxu0
        %v4133 = vadd.f32 0.0, %v4132
        %v4134 = vpop.f32.mrb[0].mxu0
        %v4135 = vpop.f32.mrb[0].mxu0
        %v4136 = vadd.f32 0.0, %v4135
        %v4137 = vpop.f32.mrb[0].mxu0
        %4138 = vmatprep.mubr.bf16.mxu0 0
        %4139 = vmatmul.mubr.bf16.gmra.mrb[0].mxu0 %v4036
        %v4140 = vpop.f32.mrb[0].mxu0
        %v4141 = vadd.f32 0.0, %v4140
        %v4142 = vpop.f32.mrb[0].mxu0
        %v4143 = vpop.f32.mrb[0].mxu0
        %v4144 = vadd.f32 0.0, %v4143
        %v4145 = vpop.f32.mrb[0].mxu0
        %4146 = vmatprep.mubr.bf16.mxu0 0
        %4147 = vmatmul.mubr.bf16.gmra.mrb[0].mxu0 %v4039
        %v4148 = vpop.f32.mrb[0].mxu0
        %v4149 = vadd.f32 0.0, %v4148
        %v4150 = vpop.f32.mrb[0].mxu0
        %v4151 = vpop.f32.mrb[0].mxu0
        %v4152 = vadd.f32 0.0, %v4151
        %v4153 = vpop.f32.mrb[0].mxu0
        %4154 = vmatprep.mubr.bf16.mxu0 0
        %4155 = vmatmul.mubr.bf16.gmra.mrb[0].mxu0 %v4042
        %v4156 = vpop.f32.mrb[0].mxu0
        %v4157 = vadd.f32 0.0, %v4156
        %v4158 = vpop.f32.mrb[0].mxu0
        %v4159 = vpop.f32.mrb[0].mxu0
        %v4160 = vadd.f32 0.0, %v4159
        %v4161 = vpop.f32.mrb[0].mxu0
        %4162 = vmatprep.mubr.bf16.mxu0 0
        %4163 = vmatmul.mubr.bf16.gmra.mrb[0].mxu0 %v4045
        %v4164 = vpop.f32.mrb[0].mxu0
        %v4165 = vadd.f32 0.0, %v4164
        %v4166 = vpop.f32.mrb[0].mxu0
        %v4167 = vpop.f32.mrb[0].mxu0
        %v4168 = vadd.f32 0.0, %v4167
        %v4169 = vpop.f32.mrb[0].mxu0
        %4170 = vmatprep.mubr.bf16.mxu0 0
        %4171 = vmatmul.mubr.bf16.gmra.mrb[0].mxu0 %v4048
        %v4172 = vpop.f32.mrb[0].mxu0
        %v4173 = vadd.f32 0.0, %v4172
        %v4174 = vpop.f32.mrb[0].mxu0
        %v4175 = vpop.f32.mrb[0].mxu0
        %v4176 = vadd.f32 0.0, %v4175
        %v4177 = vpop.f32.mrb[0].mxu0
        %4178 = vmatprep.mubr.bf16.mxu0 0
        %4179 = vmatmul.mubr.bf16.gmra.mrb[0].mxu0 %v4051
        %v4180 = vpop.f32.mrb[0].mxu0
        %v4181 = vadd.f32 0.0, %v4180
        %v4182 = vpop.f32.mrb[0].mxu0
        %v4183 = vpop.f32.mrb[0].mxu0
        %v4184 = vadd.f32 0.0, %v4183
        %v4185 = vpop.f32.mrb[0].mxu0
        %4186 = vmatprep.mubr.bf16.mxu0 0
        %4187 = vmatmul.mubr.bf16.gmra.mrb[0].mxu0 %v4054
        %v4188 = vpop.f32.mrb[0].mxu0
        %v4189 = vadd.f32 0.0, %v4188
        %v4190 = vpop.f32.mrb[0].mxu0
        %v4191 = vpop.f32.mrb[0].mxu0
        %v4192 = vadd.f32 0.0, %v4191
        %v4193 = vpop.f32.mrb[0].mxu0
        %4194 = vmatprep.mubr.bf16.mxu0 0
        %4195 = vmatmul.mubr.bf16.gmra.mrb[0].mxu0 %v4057
        %v4196 = vpop.f32.mrb[0].mxu0
        %v4197 = vadd.f32 0.0, %v4196
        %v4198 = vpop.f32.mrb[0].mxu0
        %v4199 = vpop.f32.mrb[0].mxu0
        %v4200 = vadd.f32 0.0, %v4199
        %v4201 = vpop.f32.mrb[0].mxu0
        %4202 = vmatprep.mubr.bf16.mxu0 0
        %4203 = vmatmul.mubr.bf16.gmra.mrb[0].mxu0 %v4060
        %v4204 = vpop.f32.mrb[0].mxu0
        %v4205 = vadd.f32 0.0, %v4204
        %v4206 = vpop.f32.mrb[0].mxu0
        %v4207 = vpop.f32.mrb[0].mxu0
        %v4208 = vadd.f32 0.0, %v4207
        %v4209 = vpop.f32.mrb[0].mxu0
        %4210 = vmatprep.mubr.bf16.mxu0 0
        %4211 = vmatmul.mubr.bf16.gmra.mrb[0].mxu0 %v4063
        %v4212 = vpop.f32.mrb[0].mxu0
        %v4213 = vadd.f32 0.0, %v4212
        %v4214 = vpop.f32.mrb[0].mxu0
        %v4215 = vpop.f32.mrb[0].mxu0
        %v4216 = vadd.f32 0.0, %v4215
        %v4217 = vpop.f32.mrb[0].mxu0
        %4218 = vmatprep.mubr.bf16.mxu0 0
        %4219 = vmatmul.mubr.bf16.gmra.mrb[0].mxu0 %v4066
        %v4220 = vpop.f32.mrb[0].mxu0
        %v4221 = vadd.f32 0.0, %v4220
        %v4222 = vpop.f32.mrb[0].mxu0
        %v4223 = vpop.f32.mrb[0].mxu0
        %v4224 = vadd.f32 0.0, %v4223
        %v4225 = vpop.f32.mrb[0].mxu0
        %4226 = vmatprep.mubr.bf16.mxu0 0
        %4227 = vmatmul.mubr.bf16.gmra.mrb[0].mxu0 %v4069
        %v4228 = vpop.f32.mrb[0].mxu0
        %v4229 = vadd.f32 0.0, %v4228
        %v4230 = vpop.f32.mrb[0].mxu0
        %v4231 = vpop.f32.mrb[0].mxu0
        %v4232 = vadd.f32 0.0, %v4231
        %v4233 = vpop.f32.mrb[0].mxu0
        %4234 = vdwg.mxu0
        %v4235 = vadd.f32 %v3509, %v4109
        %v4236 = vadd.f32 %v3510, %v4112
        %v4237 = vadd.f32 %v3511, %v4117
        %v4238 = vadd.f32 %v3512, %v4120
        %v4239 = vadd.f32 %v3513, %v4125
        %v4240 = vadd.f32 %v3514, %v4128
        %v4241 = vadd.f32 %v3515, %v4133
        %v4242 = vadd.f32 %v3516, %v4136
        %v4243 = vadd.f32 %v3517, %v4141
        %v4244 = vadd.f32 %v3518, %v4144
        %v4245 = vadd.f32 %v3519, %v4149
        %v4246 = vadd.f32 %v3520, %v4152
        %v4247 = vadd.f32 %v3521, %v4157
        %v4248 = vadd.f32 %v3522, %v4160
        %v4249 = vadd.f32 %v3523, %v4165
        %v4250 = vadd.f32 %v3524, %v4168
        %v4251 = vadd.f32 %v3525, %v4173
        %v4252 = vadd.f32 %v3526, %v4176
        %v4253 = vadd.f32 %v3527, %v4181
        %v4254 = vadd.f32 %v3528, %v4184
        %v4255 = vadd.f32 %v3529, %v4189
        %v4256 = vadd.f32 %v3530, %v4192
        %v4257 = vadd.f32 %v3531, %v4197
        %v4258 = vadd.f32 %v3532, %v4200
        %v4259 = vadd.f32 %v3533, %v4205
        %v4260 = vadd.f32 %v3534, %v4208
        %v4261 = vadd.f32 %v3535, %v4213
        %v4262 = vadd.f32 %v3536, %v4216
        %v4263 = vadd.f32 %v3537, %v4221
        %v4264 = vadd.f32 %v3538, %v4224
        %v4265 = vadd.f32 %v3539, %v4229
        %v4266 = vadd.f32 %v3540, %v4232
        %v4267 = vld [vmem:[%s3182] sm:$0xe]
        %v4268 = vld [vmem:[%s3182 + $0xc] sm:$0xe]
        %v4269 = vld [vmem:[%s3182 + $0x18] sm:$0xe]
        %v4270 = vld [vmem:[%s3182 + $0x24] sm:$0xe]
        %v4271 = vld [vmem:[%s3182 + $0x30] sm:$0xe]
        %v4272 = vld [vmem:[%s3182 + $0x3c] sm:$0xe]
        %v4273 = vld [vmem:[%s3182 + $0x48] sm:$0xe]
        %v4274 = vld [vmem:[%s3182 + $0x54] sm:$0xe]
        %v4275 = vld [vmem:[%s3182 + $0x60] sm:$0xe]
        %v4276 = vld [vmem:[%s3182 + $0x6c] sm:$0xe]
        %v4277 = vld [vmem:[%s3182 + $0x78] sm:$0xe]
        %v4278 = vld [vmem:[%s3182 + $0x84] sm:$0xe]
        %v4279 = vld [vmem:[%s3182 + $0x90] sm:$0xe]
        %v4280 = vld [vmem:[%s3182 + $0x9c] sm:$0xe]
        %v4281 = vld [vmem:[%s3182 + $0xa8] sm:$0xe]
        %v4282 = vld [vmem:[%s3182 + $0xb4] sm:$0xe]
        %v4331 = vrot.slane %v4267, 5
        %v4332 = vrot.slane %v4331, 4
        %v4333 = vrot.slane %v3542, 5
        %v4334 = vsel %vm1220, %v4332, %v4333
        %v4335 = vrot.slane %v4333, 4
        %v4336 = vrot.slane %v3543, 5
        %v4337 = vsel %vm1220, %v4335, %v4336
        %v4338 = vrot.slane %v4268, 5
        %v4339 = vrot.slane %v4338, 4
        %v4340 = vrot.slane %v3545, 5
        %v4341 = vsel %vm1220, %v4339, %v4340
        %v4342 = vrot.slane %v4340, 4
        %v4343 = vrot.slane %v3546, 5
        %v4344 = vsel %vm1220, %v4342, %v4343
        %v4345 = vrot.slane %v4269, 5
        %v4346 = vrot.slane %v4345, 4
        %v4347 = vrot.slane %v3548, 5
        %v4348 = vsel %vm1220, %v4346, %v4347
        %v4349 = vrot.slane %v4347, 4
        %v4350 = vrot.slane %v3549, 5
        %v4351 = vsel %vm1220, %v4349, %v4350
        %v4352 = vrot.slane %v4270, 5
        %v4353 = vrot.slane %v4352, 4
        %v4354 = vrot.slane %v3551, 5
        %v4355 = vsel %vm1220, %v4353, %v4354
        %v4356 = vrot.slane %v4354, 4
        %v4357 = vrot.slane %v3552, 5
        %v4358 = vsel %vm1220, %v4356, %v4357
        %v4359 = vrot.slane %v4271, 5
        %v4360 = vrot.slane %v4359, 4
        %v4361 = vrot.slane %v3554, 5
        %v4362 = vsel %vm1220, %v4360, %v4361
        %v4363 = vrot.slane %v4361, 4
        %v4364 = vrot.slane %v3555, 5
        %v4365 = vsel %vm1220, %v4363, %v4364
        %v4366 = vrot.slane %v4272, 5
        %v4367 = vrot.slane %v4366, 4
        %v4368 = vrot.slane %v3557, 5
        %v4369 = vsel %vm1220, %v4367, %v4368
        %v4370 = vrot.slane %v4368, 4
        %v4371 = vrot.slane %v3558, 5
        %v4372 = vsel %vm1220, %v4370, %v4371
        %v4373 = vrot.slane %v4273, 5
        %v4374 = vrot.slane %v4373, 4
        %v4375 = vrot.slane %v3560, 5
        %v4376 = vsel %vm1220, %v4374, %v4375
        %v4377 = vrot.slane %v4375, 4
        %v4378 = vrot.slane %v3561, 5
        %v4379 = vsel %vm1220, %v4377, %v4378
        %v4380 = vrot.slane %v4274, 5
        %v4381 = vrot.slane %v4380, 4
        %v4382 = vrot.slane %v3563, 5
        %v4383 = vsel %vm1220, %v4381, %v4382
        %v4384 = vrot.slane %v4382, 4
        %v4385 = vrot.slane %v3564, 5
        %v4386 = vsel %vm1220, %v4384, %v4385
        %v4387 = vrot.slane %v4275, 5
        %v4388 = vrot.slane %v4387, 4
        %v4389 = vrot.slane %v3566, 5
        %v4390 = vsel %vm1220, %v4388, %v4389
        %v4391 = vrot.slane %v4389, 4
        %v4392 = vrot.slane %v3567, 5
        %v4393 = vsel %vm1220, %v4391, %v4392
        %v4394 = vrot.slane %v4276, 5
        %v4395 = vrot.slane %v4394, 4
        %v4396 = vrot.slane %v3569, 5
        %v4397 = vsel %vm1220, %v4395, %v4396
        %v4398 = vrot.slane %v4396, 4
        %v4399 = vrot.slane %v3570, 5
        %v4400 = vsel %vm1220, %v4398, %v4399
        %v4401 = vrot.slane %v4277, 5
        %v4402 = vrot.slane %v4401, 4
        %v4403 = vrot.slane %v3572, 5
        %v4404 = vsel %vm1220, %v4402, %v4403
        %v4405 = vrot.slane %v4403, 4
        %v4406 = vrot.slane %v3573, 5
        %v4407 = vsel %vm1220, %v4405, %v4406
        %v4408 = vrot.slane %v4278, 5
        %v4409 = vrot.slane %v4408, 4
        %v4410 = vrot.slane %v3575, 5
        %v4411 = vsel %vm1220, %v4409, %v4410
        %v4412 = vrot.slane %v4410, 4
        %v4413 = vrot.slane %v3576, 5
        %v4414 = vsel %vm1220, %v4412, %v4413
        %v4415 = vrot.slane %v4279, 5
        %v4416 = vrot.slane %v4415, 4
        %v4417 = vrot.slane %v3578, 5
        %v4418 = vsel %vm1220, %v4416, %v4417
        %v4419 = vrot.slane %v4417, 4
        %v4420 = vrot.slane %v3579, 5
        %v4421 = vsel %vm1220, %v4419, %v4420
        %v4422 = vrot.slane %v4280, 5
        %v4423 = vrot.slane %v4422, 4
        %v4424 = vrot.slane %v3581, 5
        %v4425 = vsel %vm1220, %v4423, %v4424
        %v4426 = vrot.slane %v4424, 4
        %v4427 = vrot.slane %v3582, 5
        %v4428 = vsel %vm1220, %v4426, %v4427
        %v4429 = vrot.slane %v4281, 5
        %v4430 = vrot.slane %v4429, 4
        %v4431 = vrot.slane %v3584, 5
        %v4432 = vsel %vm1220, %v4430, %v4431
        %v4433 = vrot.slane %v4431, 4
        %v4434 = vrot.slane %v3585, 5
        %v4435 = vsel %vm1220, %v4433, %v4434
        %v4436 = vrot.slane %v4282, 5
        %v4437 = vrot.slane %v4436, 4
        %v4438 = vrot.slane %v3587, 5
        %v4439 = vsel %vm1220, %v4437, %v4438
        %v4440 = vrot.slane %v4438, 4
        %v4441 = vrot.slane %v3588, 5
        %v4442 = vsel %vm1220, %v4440, %v4441
        %s4443 = scalar_lea.vmem [#allocation5], 16
        %v4444 = vld [vmem:[%s4443] sm:$0x3]
        %v4445 = vunpack.c.l.b16 %v4334
        %v4446 = vunpack.c.l.b16 %v4337
        %v4447 = vunpack.c.l.b16 %v4341
        %v4448 = vunpack.c.l.b16 %v4344
        %v4449 = vunpack.c.l.b16 %v4348
        %v4450 = vunpack.c.l.b16 %v4351
        %v4451 = vunpack.c.l.b16 %v4355
        %v4452 = vunpack.c.l.b16 %v4358
        %v4453 = vunpack.c.l.b16 %v4362
        %v4454 = vunpack.c.l.b16 %v4365
        %v4455 = vunpack.c.l.b16 %v4369
        %v4456 = vunpack.c.l.b16 %v4372
        %v4457 = vunpack.c.l.b16 %v4376
        %v4458 = vunpack.c.l.b16 %v4379
        %v4459 = vunpack.c.l.b16 %v4383
        %v4460 = vunpack.c.l.b16 %v4386
        %v4461 = vunpack.c.l.b16 %v4390
        %v4462 = vunpack.c.l.b16 %v4393
        %v4463 = vunpack.c.l.b16 %v4397
        %v4464 = vunpack.c.l.b16 %v4400
        %v4465 = vunpack.c.l.b16 %v4404
        %v4466 = vunpack.c.l.b16 %v4407
        %v4467 = vunpack.c.l.b16 %v4411
        %v4468 = vunpack.c.l.b16 %v4414
        %v4469 = vunpack.c.l.b16 %v4418
        %v4470 = vunpack.c.l.b16 %v4421
        %v4471 = vunpack.c.l.b16 %v4425
        %v4472 = vunpack.c.l.b16 %v4428
        %v4473 = vunpack.c.l.b16 %v4432
        %v4474 = vunpack.c.l.b16 %v4435
        %v4475 = vunpack.c.l.b16 %v4439
        %v4476 = vunpack.c.l.b16 %v4442
        %v4477 = vpack.c.b16 %v4446, %v4445
        %v4478 = vpack.c.b16 %v4448, %v4447
        %v4479 = vpack.c.b16 %v4450, %v4449
        %v4480 = vpack.c.b16 %v4452, %v4451
        %v4481 = vpack.c.b16 %v4454, %v4453
        %v4482 = vpack.c.b16 %v4456, %v4455
        %v4483 = vpack.c.b16 %v4458, %v4457
        %v4484 = vpack.c.b16 %v4460, %v4459
        %v4485 = vpack.c.b16 %v4462, %v4461
        %v4486 = vpack.c.b16 %v4464, %v4463
        %v4487 = vpack.c.b16 %v4466, %v4465
        %v4488 = vpack.c.b16 %v4468, %v4467
        %v4489 = vpack.c.b16 %v4470, %v4469
        %v4490 = vpack.c.b16 %v4472, %v4471
        %v4491 = vpack.c.b16 %v4474, %v4473
        %v4492 = vpack.c.b16 %v4476, %v4475
        %v4494 = vsel %vm664, %v4477, 0
        %v4497 = vsel %vm664, %v4478, 0
        %v4500 = vsel %vm664, %v4479, 0
        %v4503 = vsel %vm664, %v4480, 0
        %v4506 = vsel %vm664, %v4481, 0
        %v4509 = vsel %vm664, %v4482, 0
        %v4512 = vsel %vm664, %v4483, 0
        %v4515 = vsel %vm664, %v4484, 0
        %v4518 = vsel %vm664, %v4485, 0
        %v4521 = vsel %vm664, %v4486, 0
        %v4524 = vsel %vm664, %v4487, 0
        %v4527 = vsel %vm664, %v4488, 0
        %v4530 = vsel %vm664, %v4489, 0
        %v4533 = vsel %vm664, %v4490, 0
        %v4536 = vsel %vm664, %v4491, 0
        %v4539 = vsel %vm664, %v4492, 0
        %v4542 = vsel %vm713, %v4444, 0
        %4544 = vmatprep.subr.bf16.mxu0 0
        %4545 = vmatpush1.bf16.msra.mxu0 %v4542
        %4546 = vmatprep.subr.bf16.mxu0 0
        %4547 = vmatpush1.bf16.msra.mxu0 0
        %4548 = vmatprep.subr.bf16.mxu0 0
        %4549 = vmatpush1.bf16.msra.mxu0 0
        %4550 = vmatprep.subr.bf16.mxu0 0
        %4551 = vmatpush1.bf16.msra.mxu0 0
        %4552 = vmatprep.subr.bf16.mxu0 0
        %4553 = vmatpush1.bf16.msra.mxu0 0
        %4554 = vmatprep.subr.bf16.mxu0 0
        %4555 = vmatpush1.bf16.msra.mxu0 0
        %4556 = vmatprep.subr.bf16.mxu0 0
        %4557 = vmatpush1.bf16.msra.mxu0 0
        %4558 = vmatprep.subr.bf16.mxu0 0
        %4559 = vmatpush1.bf16.msra.mxu0 0
        %4560 = vmatprep.subr.bf16.mxu0 0
        %4561 = vmatpush1.bf16.msra.mxu0 0
        %4562 = vmatprep.subr.bf16.mxu0 0
        %4563 = vmatpush1.bf16.msra.mxu0 0
        %4564 = vmatprep.subr.bf16.mxu0 0
        %4565 = vmatpush1.bf16.msra.mxu0 0
        %4566 = vmatprep.subr.bf16.mxu0 0
        %4567 = vmatpush1.bf16.msra.mxu0 0
        %4568 = vmatprep.subr.bf16.mxu0 0
        %4569 = vmatpush1.bf16.msra.mxu0 0
        %4570 = vmatprep.subr.bf16.mxu0 0
        %4571 = vmatpush1.bf16.msra.mxu0 0
        %4572 = vmatprep.subr.bf16.mxu0 0
        %4573 = vmatpush1.bf16.msra.mxu0 0
        %4574 = vmatprep.subr.bf16.mxu0 0
        %4575 = vmatpush1.bf16.msra.mxu0 0
        %4576 = vmatprep.mubr.bf16.mxu0 0
        %4577 = vmatmul.mubr.bf16.gmra.mrb[0].mxu0 %v4494
        %v4578 = vpop.f32.mrb[0].mxu0
        %v4579 = vadd.f32 0.0, %v4578
        %v4580 = vpop.f32.mrb[0].mxu0
        %v4581 = vpop.f32.mrb[0].mxu0
        %v4582 = vadd.f32 0.0, %v4581
        %v4583 = vpop.f32.mrb[0].mxu0
        %4584 = vmatprep.mubr.bf16.mxu0 0
        %4585 = vmatmul.mubr.bf16.gmra.mrb[0].mxu0 %v4497
        %v4586 = vpop.f32.mrb[0].mxu0
        %v4587 = vadd.f32 0.0, %v4586
        %v4588 = vpop.f32.mrb[0].mxu0
        %v4589 = vpop.f32.mrb[0].mxu0
        %v4590 = vadd.f32 0.0, %v4589
        %v4591 = vpop.f32.mrb[0].mxu0
        %4592 = vmatprep.mubr.bf16.mxu0 0
        %4593 = vmatmul.mubr.bf16.gmra.mrb[0].mxu0 %v4500
        %v4594 = vpop.f32.mrb[0].mxu0
        %v4595 = vadd.f32 0.0, %v4594
        %v4596 = vpop.f32.mrb[0].mxu0
        %v4597 = vpop.f32.mrb[0].mxu0
        %v4598 = vadd.f32 0.0, %v4597
        %v4599 = vpop.f32.mrb[0].mxu0
        %4600 = vmatprep.mubr.bf16.mxu0 0
        %4601 = vmatmul.mubr.bf16.gmra.mrb[0].mxu0 %v4503
        %v4602 = vpop.f32.mrb[0].mxu0
        %v4603 = vadd.f32 0.0, %v4602
        %v4604 = vpop.f32.mrb[0].mxu0
        %v4605 = vpop.f32.mrb[0].mxu0
        %v4606 = vadd.f32 0.0, %v4605
        %v4607 = vpop.f32.mrb[0].mxu0
        %4608 = vmatprep.mubr.bf16.mxu0 0
        %4609 = vmatmul.mubr.bf16.gmra.mrb[0].mxu0 %v4506
        %v4610 = vpop.f32.mrb[0].mxu0
        %v4611 = vadd.f32 0.0, %v4610
        %v4612 = vpop.f32.mrb[0].mxu0
        %v4613 = vpop.f32.mrb[0].mxu0
        %v4614 = vadd.f32 0.0, %v4613
        %v4615 = vpop.f32.mrb[0].mxu0
        %4616 = vmatprep.mubr.bf16.mxu0 0
        %4617 = vmatmul.mubr.bf16.gmra.mrb[0].mxu0 %v4509
        %v4618 = vpop.f32.mrb[0].mxu0
        %v4619 = vadd.f32 0.0, %v4618
        %v4620 = vpop.f32.mrb[0].mxu0
        %v4621 = vpop.f32.mrb[0].mxu0
        %v4622 = vadd.f32 0.0, %v4621
        %v4623 = vpop.f32.mrb[0].mxu0
        %4624 = vmatprep.mubr.bf16.mxu0 0
        %4625 = vmatmul.mubr.bf16.gmra.mrb[0].mxu0 %v4512
        %v4626 = vpop.f32.mrb[0].mxu0
        %v4627 = vadd.f32 0.0, %v4626
        %v4628 = vpop.f32.mrb[0].mxu0
        %v4629 = vpop.f32.mrb[0].mxu0
        %v4630 = vadd.f32 0.0, %v4629
        %v4631 = vpop.f32.mrb[0].mxu0
        %4632 = vmatprep.mubr.bf16.mxu0 0
        %4633 = vmatmul.mubr.bf16.gmra.mrb[0].mxu0 %v4515
        %v4634 = vpop.f32.mrb[0].mxu0
        %v4635 = vadd.f32 0.0, %v4634
        %v4636 = vpop.f32.mrb[0].mxu0
        %v4637 = vpop.f32.mrb[0].mxu0
        %v4638 = vadd.f32 0.0, %v4637
        %v4639 = vpop.f32.mrb[0].mxu0
        %4640 = vmatprep.mubr.bf16.mxu0 0
        %4641 = vmatmul.mubr.bf16.gmra.mrb[0].mxu0 %v4518
        %v4642 = vpop.f32.mrb[0].mxu0
        %v4643 = vadd.f32 0.0, %v4642
        %v4644 = vpop.f32.mrb[0].mxu0
        %v4645 = vpop.f32.mrb[0].mxu0
        %v4646 = vadd.f32 0.0, %v4645
        %v4647 = vpop.f32.mrb[0].mxu0
        %4648 = vmatprep.mubr.bf16.mxu0 0
        %4649 = vmatmul.mubr.bf16.gmra.mrb[0].mxu0 %v4521
        %v4650 = vpop.f32.mrb[0].mxu0
        %v4651 = vadd.f32 0.0, %v4650
        %v4652 = vpop.f32.mrb[0].mxu0
        %v4653 = vpop.f32.mrb[0].mxu0
        %v4654 = vadd.f32 0.0, %v4653
        %v4655 = vpop.f32.mrb[0].mxu0
        %4656 = vmatprep.mubr.bf16.mxu0 0
        %4657 = vmatmul.mubr.bf16.gmra.mrb[0].mxu0 %v4524
        %v4658 = vpop.f32.mrb[0].mxu0
        %v4659 = vadd.f32 0.0, %v4658
        %v4660 = vpop.f32.mrb[0].mxu0
        %v4661 = vpop.f32.mrb[0].mxu0
        %v4662 = vadd.f32 0.0, %v4661
        %v4663 = vpop.f32.mrb[0].mxu0
        %4664 = vmatprep.mubr.bf16.mxu0 0
        %4665 = vmatmul.mubr.bf16.gmra.mrb[0].mxu0 %v4527
        %v4666 = vpop.f32.mrb[0].mxu0
        %v4667 = vadd.f32 0.0, %v4666
        %v4668 = vpop.f32.mrb[0].mxu0
        %v4669 = vpop.f32.mrb[0].mxu0
        %v4670 = vadd.f32 0.0, %v4669
        %v4671 = vpop.f32.mrb[0].mxu0
        %4672 = vmatprep.mubr.bf16.mxu0 0
        %4673 = vmatmul.mubr.bf16.gmra.mrb[0].mxu0 %v4530
        %v4674 = vpop.f32.mrb[0].mxu0
        %v4675 = vadd.f32 0.0, %v4674
        %v4676 = vpop.f32.mrb[0].mxu0
        %v4677 = vpop.f32.mrb[0].mxu0
        %v4678 = vadd.f32 0.0, %v4677
        %v4679 = vpop.f32.mrb[0].mxu0
        %4680 = vmatprep.mubr.bf16.mxu0 0
        %4681 = vmatmul.mubr.bf16.gmra.mrb[0].mxu0 %v4533
        %v4682 = vpop.f32.mrb[0].mxu0
        %v4683 = vadd.f32 0.0, %v4682
        %v4684 = vpop.f32.mrb[0].mxu0
        %v4685 = vpop.f32.mrb[0].mxu0
        %v4686 = vadd.f32 0.0, %v4685
        %v4687 = vpop.f32.mrb[0].mxu0
        %4688 = vmatprep.mubr.bf16.mxu0 0
        %4689 = vmatmul.mubr.bf16.gmra.mrb[0].mxu0 %v4536
        %v4690 = vpop.f32.mrb[0].mxu0
        %v4691 = vadd.f32 0.0, %v4690
        %v4692 = vpop.f32.mrb[0].mxu0
        %v4693 = vpop.f32.mrb[0].mxu0
        %v4694 = vadd.f32 0.0, %v4693
        %v4695 = vpop.f32.mrb[0].mxu0
        %4696 = vmatprep.mubr.bf16.mxu0 0
        %4697 = vmatmul.mubr.bf16.gmra.mrb[0].mxu0 %v4539
        %v4698 = vpop.f32.mrb[0].mxu0
        %v4699 = vadd.f32 0.0, %v4698
        %v4700 = vpop.f32.mrb[0].mxu0
        %v4701 = vpop.f32.mrb[0].mxu0
        %v4702 = vadd.f32 0.0, %v4701
        %v4703 = vpop.f32.mrb[0].mxu0
        %4704 = vdwg.mxu0
        %v4705 = vadd.f32 %v4235, %v4579
        %v4706 = vadd.f32 %v4236, %v4582
        %v4707 = vadd.f32 %v4237, %v4587
        %v4708 = vadd.f32 %v4238, %v4590
        %v4709 = vadd.f32 %v4239, %v4595
        %v4710 = vadd.f32 %v4240, %v4598
        %v4711 = vadd.f32 %v4241, %v4603
        %v4712 = vadd.f32 %v4242, %v4606
        %v4713 = vadd.f32 %v4243, %v4611
        %v4714 = vadd.f32 %v4244, %v4614
        %v4715 = vadd.f32 %v4245, %v4619
        %v4716 = vadd.f32 %v4246, %v4622
        %v4717 = vadd.f32 %v4247, %v4627
        %v4718 = vadd.f32 %v4248, %v4630
        %v4719 = vadd.f32 %v4249, %v4635
        %v4720 = vadd.f32 %v4250, %v4638
        %v4721 = vadd.f32 %v4251, %v4643
        %v4722 = vadd.f32 %v4252, %v4646
        %v4723 = vadd.f32 %v4253, %v4651
        %v4724 = vadd.f32 %v4254, %v4654
        %v4725 = vadd.f32 %v4255, %v4659
        %v4726 = vadd.f32 %v4256, %v4662
        %v4727 = vadd.f32 %v4257, %v4667
        %v4728 = vadd.f32 %v4258, %v4670
        %v4729 = vadd.f32 %v4259, %v4675
        %v4730 = vadd.f32 %v4260, %v4678
        %v4731 = vadd.f32 %v4261, %v4683
        %v4732 = vadd.f32 %v4262, %v4686
        %v4733 = vadd.f32 %v4263, %v4691
        %v4734 = vadd.f32 %v4264, %v4694
        %v4735 = vadd.f32 %v4265, %v4699
        %v4736 = vadd.f32 %v4266, %v4702
        %v4737 = vmax.f32 %v4705, 0.0
        %v4738 = vmax.f32 %v4706, 0.0
        %v4739 = vmax.f32 %v4707, 0.0
        %v4740 = vmax.f32 %v4708, 0.0
        %v4741 = vmax.f32 %v4709, 0.0
        %v4742 = vmax.f32 %v4710, 0.0
        %v4743 = vmax.f32 %v4711, 0.0
        %v4744 = vmax.f32 %v4712, 0.0
        %v4745 = vmax.f32 %v4713, 0.0
        %v4746 = vmax.f32 %v4714, 0.0
        %v4747 = vmax.f32 %v4715, 0.0
        %v4748 = vmax.f32 %v4716, 0.0
        %v4749 = vmax.f32 %v4717, 0.0
        %v4750 = vmax.f32 %v4718, 0.0
        %v4751 = vmax.f32 %v4719, 0.0
        %v4752 = vmax.f32 %v4720, 0.0
        %v4753 = vmax.f32 %v4721, 0.0
        %v4754 = vmax.f32 %v4722, 0.0
        %v4755 = vmax.f32 %v4723, 0.0
        %v4756 = vmax.f32 %v4724, 0.0
        %v4757 = vmax.f32 %v4725, 0.0
        %v4758 = vmax.f32 %v4726, 0.0
        %v4759 = vmax.f32 %v4727, 0.0
        %v4760 = vmax.f32 %v4728, 0.0
        %v4761 = vmax.f32 %v4729, 0.0
        %v4762 = vmax.f32 %v4730, 0.0
        %v4763 = vmax.f32 %v4731, 0.0
        %v4764 = vmax.f32 %v4732, 0.0
        %v4765 = vmax.f32 %v4733, 0.0
        %v4766 = vmax.f32 %v4734, 0.0
        %v4767 = vmax.f32 %v4735, 0.0
        %v4768 = vmax.f32 %v4736, 0.0
        %4769 = vst [vmem:[%s176] sm:$0xf] 0
        %4770 = vst [vmem:[%s176 + $0x4] sm:$0xf] 0
        %4771 = vst [vmem:[%s176 + $0x8] sm:$0x1] 0
        %s4772 = scalar_lea.vmem %s176, 204 [#allocation7]
        %4773 = vst [vmem:[%s4772] sm:$0xf] 0
        %4774 = vst [vmem:[%s4772 + $0x4] sm:$0xf] 0
        %4775 = vst [vmem:[%s4772 + $0x8] sm:$0x1] 0
        %s4776 = scalar_lea.vmem %s176, 12 [#allocation7]
        %vm4777 = vcmask 1040384
        %vm4778 = vsmask.f32 256
        %vm4779 = vmand %vm4777, %vm4778
        %v4780 = vld [vmem:[%s4776] sm:$0x1]
        %v4781 = vsel %vm4779, 0, %v4780
        %4782 = vst [vmem:[%s4776] sm:$0x1] %v4781
        %v4783 = vld [vmem:[%s4776 + $0xc] sm:$0x1]
        %v4784 = vsel %vm4779, 0, %v4783
        %4785 = vst [vmem:[%s4776 + $0xc] sm:$0x1] %v4784
        %v4786 = vld [vmem:[%s4776 + $0x18] sm:$0x1]
        %v4787 = vsel %vm4779, 0, %v4786
        %4788 = vst [vmem:[%s4776 + $0x18] sm:$0x1] %v4787
        %v4789 = vld [vmem:[%s4776 + $0x24] sm:$0x1]
        %v4790 = vsel %vm4779, 0, %v4789
        %4791 = vst [vmem:[%s4776 + $0x24] sm:$0x1] %v4790
        %v4792 = vld [vmem:[%s4776 + $0x30] sm:$0x1]
        %v4793 = vsel %vm4779, 0, %v4792
        %4794 = vst [vmem:[%s4776 + $0x30] sm:$0x1] %v4793
        %v4795 = vld [vmem:[%s4776 + $0x3c] sm:$0x1]
        %v4796 = vsel %vm4779, 0, %v4795
        %4797 = vst [vmem:[%s4776 + $0x3c] sm:$0x1] %v4796
        %v4798 = vld [vmem:[%s4776 + $0x48] sm:$0x1]
        %v4799 = vsel %vm4779, 0, %v4798
        %4800 = vst [vmem:[%s4776 + $0x48] sm:$0x1] %v4799
        %v4801 = vld [vmem:[%s4776 + $0x54] sm:$0x1]
        %v4802 = vsel %vm4779, 0, %v4801
        %4803 = vst [vmem:[%s4776 + $0x54] sm:$0x1] %v4802
        %v4804 = vld [vmem:[%s4776 + $0x60] sm:$0x1]
        %v4805 = vsel %vm4779, 0, %v4804
        %4806 = vst [vmem:[%s4776 + $0x60] sm:$0x1] %v4805
        %v4807 = vld [vmem:[%s4776 + $0x6c] sm:$0x1]
        %v4808 = vsel %vm4779, 0, %v4807
        %4809 = vst [vmem:[%s4776 + $0x6c] sm:$0x1] %v4808
        %v4810 = vld [vmem:[%s4776 + $0x78] sm:$0x1]
        %v4811 = vsel %vm4779, 0, %v4810
        %4812 = vst [vmem:[%s4776 + $0x78] sm:$0x1] %v4811
        %v4813 = vld [vmem:[%s4776 + $0x84] sm:$0x1]
        %v4814 = vsel %vm4779, 0, %v4813
        %4815 = vst [vmem:[%s4776 + $0x84] sm:$0x1] %v4814
        %v4816 = vld [vmem:[%s4776 + $0x90] sm:$0x1]
        %v4817 = vsel %vm4779, 0, %v4816
        %4818 = vst [vmem:[%s4776 + $0x90] sm:$0x1] %v4817
        %v4819 = vld [vmem:[%s4776 + $0x9c] sm:$0x1]
        %v4820 = vsel %vm4779, 0, %v4819
        %4821 = vst [vmem:[%s4776 + $0x9c] sm:$0x1] %v4820
        %v4822 = vld [vmem:[%s4776 + $0xa8] sm:$0x1]
        %v4823 = vsel %vm4779, 0, %v4822
        %4824 = vst [vmem:[%s4776 + $0xa8] sm:$0x1] %v4823
        %v4825 = vld [vmem:[%s4776 + $0xb4] sm:$0x1]
        %v4826 = vsel %vm4779, 0, %v4825
        %4827 = vst [vmem:[%s4776 + $0xb4] sm:$0x1] %v4826
        %vm4828 = vsmask.f32 7938
        %vm4829 = vmand %vm4777, %vm4828
        %v4830 = vld [vmem:[%s4776 + $0x8] sm:$0x1]
        %v4831 = vsel %vm4829, 0, %v4830
        %4832 = vst [vmem:[%s4776 + $0x8] sm:$0x1] %v4831
        %v4833 = vld [vmem:[%s4776 + $0x14] sm:$0x1]
        %v4834 = vsel %vm4829, 0, %v4833
        %4835 = vst [vmem:[%s4776 + $0x14] sm:$0x1] %v4834
        %v4836 = vld [vmem:[%s4776 + $0x20] sm:$0x1]
        %v4837 = vsel %vm4829, 0, %v4836
        %4838 = vst [vmem:[%s4776 + $0x20] sm:$0x1] %v4837
        %v4839 = vld [vmem:[%s4776 + $0x2c] sm:$0x1]
        %v4840 = vsel %vm4829, 0, %v4839
        %4841 = vst [vmem:[%s4776 + $0x2c] sm:$0x1] %v4840
        %v4842 = vld [vmem:[%s4776 + $0x38] sm:$0x1]
        %v4843 = vsel %vm4829, 0, %v4842
        %4844 = vst [vmem:[%s4776 + $0x38] sm:$0x1] %v4843
        %v4845 = vld [vmem:[%s4776 + $0x44] sm:$0x1]
        %v4846 = vsel %vm4829, 0, %v4845
        %4847 = vst [vmem:[%s4776 + $0x44] sm:$0x1] %v4846
        %v4848 = vld [vmem:[%s4776 + $0x50] sm:$0x1]
        %v4849 = vsel %vm4829, 0, %v4848
        %4850 = vst [vmem:[%s4776 + $0x50] sm:$0x1] %v4849
        %v4851 = vld [vmem:[%s4776 + $0x5c] sm:$0x1]
        %v4852 = vsel %vm4829, 0, %v4851
        %4853 = vst [vmem:[%s4776 + $0x5c] sm:$0x1] %v4852
        %v4854 = vld [vmem:[%s4776 + $0x68] sm:$0x1]
        %v4855 = vsel %vm4829, 0, %v4854
        %4856 = vst [vmem:[%s4776 + $0x68] sm:$0x1] %v4855
        %v4857 = vld [vmem:[%s4776 + $0x74] sm:$0x1]
        %v4858 = vsel %vm4829, 0, %v4857
        %4859 = vst [vmem:[%s4776 + $0x74] sm:$0x1] %v4858
        %v4860 = vld [vmem:[%s4776 + $0x80] sm:$0x1]
        %v4861 = vsel %vm4829, 0, %v4860
        %4862 = vst [vmem:[%s4776 + $0x80] sm:$0x1] %v4861
        %v4863 = vld [vmem:[%s4776 + $0x8c] sm:$0x1]
        %v4864 = vsel %vm4829, 0, %v4863
        %4865 = vst [vmem:[%s4776 + $0x8c] sm:$0x1] %v4864
        %v4866 = vld [vmem:[%s4776 + $0x98] sm:$0x1]
        %v4867 = vsel %vm4829, 0, %v4866
        %4868 = vst [vmem:[%s4776 + $0x98] sm:$0x1] %v4867
        %v4869 = vld [vmem:[%s4776 + $0xa4] sm:$0x1]
        %v4870 = vsel %vm4829, 0, %v4869
        %4871 = vst [vmem:[%s4776 + $0xa4] sm:$0x1] %v4870
        %v4872 = vld [vmem:[%s4776 + $0xb0] sm:$0x1]
        %v4873 = vsel %vm4829, 0, %v4872
        %4874 = vst [vmem:[%s4776 + $0xb0] sm:$0x1] %v4873
        %v4875 = vld [vmem:[%s4776 + $0xbc] sm:$0x1]
        %v4876 = vsel %vm4829, 0, %v4875
        %4877 = vst [vmem:[%s4776 + $0xbc] sm:$0x1] %v4876
        %v4878 = vpack.c.bf16 %v4738, %v4737
        %v4879 = vpack.c.bf16 %v4740, %v4739
        %v4880 = vpack.c.bf16 %v4742, %v4741
        %v4881 = vpack.c.bf16 %v4744, %v4743
        %v4882 = vpack.c.bf16 %v4746, %v4745
        %v4883 = vpack.c.bf16 %v4748, %v4747
        %v4884 = vpack.c.bf16 %v4750, %v4749
        %v4885 = vpack.c.bf16 %v4752, %v4751
        %v4886 = vpack.c.bf16 %v4754, %v4753
        %v4887 = vpack.c.bf16 %v4756, %v4755
        %v4888 = vpack.c.bf16 %v4758, %v4757
        %v4889 = vpack.c.bf16 %v4760, %v4759
        %v4890 = vpack.c.bf16 %v4762, %v4761
        %v4891 = vpack.c.bf16 %v4764, %v4763
        %v4892 = vpack.c.bf16 %v4766, %v4765
        %v4893 = vpack.c.bf16 %v4768, %v4767
        %v4910 = vunpack.c.l.b16 %v4878
        %v4911 = vunpack.c.h.b16 %v4878
        %v4912 = vunpack.c.l.b16 %v4879
        %v4913 = vunpack.c.h.b16 %v4879
        %v4914 = vunpack.c.l.b16 %v4880
        %v4915 = vunpack.c.h.b16 %v4880
        %v4916 = vunpack.c.l.b16 %v4881
        %v4917 = vunpack.c.h.b16 %v4881
        %v4918 = vunpack.c.l.b16 %v4882
        %v4919 = vunpack.c.h.b16 %v4882
        %v4920 = vunpack.c.l.b16 %v4883
        %v4921 = vunpack.c.h.b16 %v4883
        %v4922 = vunpack.c.l.b16 %v4884
        %v4923 = vunpack.c.h.b16 %v4884
        %v4924 = vunpack.c.l.b16 %v4885
        %v4925 = vunpack.c.h.b16 %v4885
        %v4926 = vunpack.c.l.b16 %v4886
        %v4927 = vunpack.c.h.b16 %v4886
        %v4928 = vunpack.c.l.b16 %v4887
        %v4929 = vunpack.c.h.b16 %v4887
        %v4930 = vunpack.c.l.b16 %v4888
        %v4931 = vunpack.c.h.b16 %v4888
        %v4932 = vunpack.c.l.b16 %v4889
        %v4933 = vunpack.c.h.b16 %v4889
        %v4934 = vunpack.c.l.b16 %v4890
        %v4935 = vunpack.c.h.b16 %v4890
        %v4936 = vunpack.c.l.b16 %v4891
        %v4937 = vunpack.c.h.b16 %v4891
        %v4938 = vunpack.c.l.b16 %v4892
        %v4939 = vunpack.c.h.b16 %v4892
        %v4940 = vunpack.c.l.b16 %v4893
        %v4941 = vunpack.c.h.b16 %v4893
        %v4942 = vpack.c.b16 %v4910, %v4910
        %v4943 = vpack.c.b16 %v4911, %v4911
        %v4944 = vpack.c.b16 %v4912, %v4912
        %v4945 = vpack.c.b16 %v4913, %v4913
        %v4946 = vpack.c.b16 %v4914, %v4914
        %v4947 = vpack.c.b16 %v4915, %v4915
        %v4948 = vpack.c.b16 %v4916, %v4916
        %v4949 = vpack.c.b16 %v4917, %v4917
        %v4950 = vpack.c.b16 %v4918, %v4918
        %v4951 = vpack.c.b16 %v4919, %v4919
        %v4952 = vpack.c.b16 %v4920, %v4920
        %v4953 = vpack.c.b16 %v4921, %v4921
        %v4954 = vpack.c.b16 %v4922, %v4922
        %v4955 = vpack.c.b16 %v4923, %v4923
        %v4956 = vpack.c.b16 %v4924, %v4924
        %v4957 = vpack.c.b16 %v4925, %v4925
        %v4958 = vpack.c.b16 %v4926, %v4926
        %v4959 = vpack.c.b16 %v4927, %v4927
        %v4960 = vpack.c.b16 %v4928, %v4928
        %v4961 = vpack.c.b16 %v4929, %v4929
        %v4962 = vpack.c.b16 %v4930, %v4930
        %v4963 = vpack.c.b16 %v4931, %v4931
        %v4964 = vpack.c.b16 %v4932, %v4932
        %v4965 = vpack.c.b16 %v4933, %v4933
        %v4966 = vpack.c.b16 %v4934, %v4934
        %v4967 = vpack.c.b16 %v4935, %v4935
        %v4968 = vpack.c.b16 %v4936, %v4936
        %v4969 = vpack.c.b16 %v4937, %v4937
        %v4970 = vpack.c.b16 %v4938, %v4938
        %v4971 = vpack.c.b16 %v4939, %v4939
        %v4972 = vpack.c.b16 %v4940, %v4940
        %v4973 = vpack.c.b16 %v4941, %v4941
        %vm4974 = vsmask.f32 4368
        %vm4975 = vmor %vm4778, %vm4974
        %v4977 = vshrl.u32 %v4942, 16
        %v4979 = vrot.slane %v4977, 7
        %v4980 = vshll.u32 %v4942, 16
        %v4982 = vor.u32 %v4979, %v4980
        %v4983 = vrot.slane %v4979, 4
        %v4985 = vshrl.u32 %v4943, 16
        %v4987 = vrot.slane %v4985, 7
        %v4988 = vshll.u32 %v4943, 16
        %v4990 = vor.u32 %v4987, %v4988
        %v4991 = vsel %vm4975, %v4983, %v4990
        %v4992 = vrot.slane %v4987, 4
        %v4994 = vshrl.u32 %v4944, 16
        %v4996 = vrot.slane %v4994, 7
        %v4997 = vshll.u32 %v4944, 16
        %v4999 = vor.u32 %v4996, %v4997
        %v5000 = vrot.slane %v4996, 4
        %v5002 = vshrl.u32 %v4945, 16
        %v5004 = vrot.slane %v5002, 7
        %v5005 = vshll.u32 %v4945, 16
        %v5007 = vor.u32 %v5004, %v5005
        %v5008 = vsel %vm4975, %v5000, %v5007
        %v5009 = vrot.slane %v5004, 4
        %v5011 = vshrl.u32 %v4946, 16
        %v5013 = vrot.slane %v5011, 7
        %v5014 = vshll.u32 %v4946, 16
        %v5016 = vor.u32 %v5013, %v5014
        %v5017 = vrot.slane %v5013, 4
        %v5019 = vshrl.u32 %v4947, 16
        %v5021 = vrot.slane %v5019, 7
        %v5022 = vshll.u32 %v4947, 16
        %v5024 = vor.u32 %v5021, %v5022
        %v5025 = vsel %vm4975, %v5017, %v5024
        %v5026 = vrot.slane %v5021, 4
        %v5028 = vshrl.u32 %v4948, 16
        %v5030 = vrot.slane %v5028, 7
        %v5031 = vshll.u32 %v4948, 16
        %v5033 = vor.u32 %v5030, %v5031
        %v5034 = vrot.slane %v5030, 4
        %v5036 = vshrl.u32 %v4949, 16
        %v5038 = vrot.slane %v5036, 7
        %v5039 = vshll.u32 %v4949, 16
        %v5041 = vor.u32 %v5038, %v5039
        %v5042 = vsel %vm4975, %v5034, %v5041
        %v5043 = vrot.slane %v5038, 4
        %v5045 = vshrl.u32 %v4950, 16
        %v5047 = vrot.slane %v5045, 7
        %v5048 = vshll.u32 %v4950, 16
        %v5050 = vor.u32 %v5047, %v5048
        %v5051 = vrot.slane %v5047, 4
        %v5053 = vshrl.u32 %v4951, 16
        %v5055 = vrot.slane %v5053, 7
        %v5056 = vshll.u32 %v4951, 16
        %v5058 = vor.u32 %v5055, %v5056
        %v5059 = vsel %vm4975, %v5051, %v5058
        %v5060 = vrot.slane %v5055, 4
        %v5062 = vshrl.u32 %v4952, 16
        %v5064 = vrot.slane %v5062, 7
        %v5065 = vshll.u32 %v4952, 16
        %v5067 = vor.u32 %v5064, %v5065
        %v5068 = vrot.slane %v5064, 4
        %v5070 = vshrl.u32 %v4953, 16
        %v5072 = vrot.slane %v5070, 7
        %v5073 = vshll.u32 %v4953, 16
        %v5075 = vor.u32 %v5072, %v5073
        %v5076 = vsel %vm4975, %v5068, %v5075
        %v5077 = vrot.slane %v5072, 4
        %v5079 = vshrl.u32 %v4954, 16
        %v5081 = vrot.slane %v5079, 7
        %v5082 = vshll.u32 %v4954, 16
        %v5084 = vor.u32 %v5081, %v5082
        %v5085 = vrot.slane %v5081, 4
        %v5087 = vshrl.u32 %v4955, 16
        %v5089 = vrot.slane %v5087, 7
        %v5090 = vshll.u32 %v4955, 16
        %v5092 = vor.u32 %v5089, %v5090
        %v5093 = vsel %vm4975, %v5085, %v5092
        %v5094 = vrot.slane %v5089, 4
        %v5096 = vshrl.u32 %v4956, 16
        %v5098 = vrot.slane %v5096, 7
        %v5099 = vshll.u32 %v4956, 16
        %v5101 = vor.u32 %v5098, %v5099
        %v5102 = vrot.slane %v5098, 4
        %v5104 = vshrl.u32 %v4957, 16
        %v5106 = vrot.slane %v5104, 7
        %v5107 = vshll.u32 %v4957, 16
        %v5109 = vor.u32 %v5106, %v5107
        %v5110 = vsel %vm4975, %v5102, %v5109
        %v5111 = vrot.slane %v5106, 4
        %v5113 = vshrl.u32 %v4958, 16
        %v5115 = vrot.slane %v5113, 7
        %v5116 = vshll.u32 %v4958, 16
        %v5118 = vor.u32 %v5115, %v5116
        %v5119 = vrot.slane %v5115, 4
        %v5121 = vshrl.u32 %v4959, 16
        %v5123 = vrot.slane %v5121, 7
        %v5124 = vshll.u32 %v4959, 16
        %v5126 = vor.u32 %v5123, %v5124
        %v5127 = vsel %vm4975, %v5119, %v5126
        %v5128 = vrot.slane %v5123, 4
        %v5130 = vshrl.u32 %v4960, 16
        %v5132 = vrot.slane %v5130, 7
        %v5133 = vshll.u32 %v4960, 16
        %v5135 = vor.u32 %v5132, %v5133
        %v5136 = vrot.slane %v5132, 4
        %v5138 = vshrl.u32 %v4961, 16
        %v5140 = vrot.slane %v5138, 7
        %v5141 = vshll.u32 %v4961, 16
        %v5143 = vor.u32 %v5140, %v5141
        %v5144 = vsel %vm4975, %v5136, %v5143
        %v5145 = vrot.slane %v5140, 4
        %v5147 = vshrl.u32 %v4962, 16
        %v5149 = vrot.slane %v5147, 7
        %v5150 = vshll.u32 %v4962, 16
        %v5152 = vor.u32 %v5149, %v5150
        %v5153 = vrot.slane %v5149, 4
        %v5155 = vshrl.u32 %v4963, 16
        %v5157 = vrot.slane %v5155, 7
        %v5158 = vshll.u32 %v4963, 16
        %v5160 = vor.u32 %v5157, %v5158
        %v5161 = vsel %vm4975, %v5153, %v5160
        %v5162 = vrot.slane %v5157, 4
        %v5164 = vshrl.u32 %v4964, 16
        %v5166 = vrot.slane %v5164, 7
        %v5167 = vshll.u32 %v4964, 16
        %v5169 = vor.u32 %v5166, %v5167
        %v5170 = vrot.slane %v5166, 4
        %v5172 = vshrl.u32 %v4965, 16
        %v5174 = vrot.slane %v5172, 7
        %v5175 = vshll.u32 %v4965, 16
        %v5177 = vor.u32 %v5174, %v5175
        %v5178 = vsel %vm4975, %v5170, %v5177
        %v5179 = vrot.slane %v5174, 4
        %v5181 = vshrl.u32 %v4966, 16
        %v5183 = vrot.slane %v5181, 7
        %v5184 = vshll.u32 %v4966, 16
        %v5186 = vor.u32 %v5183, %v5184
        %v5187 = vrot.slane %v5183, 4
        %v5189 = vshrl.u32 %v4967, 16
        %v5191 = vrot.slane %v5189, 7
        %v5192 = vshll.u32 %v4967, 16
        %v5194 = vor.u32 %v5191, %v5192
        %v5195 = vsel %vm4975, %v5187, %v5194
        %v5196 = vrot.slane %v5191, 4
        %v5198 = vshrl.u32 %v4968, 16
        %v5200 = vrot.slane %v5198, 7
        %v5201 = vshll.u32 %v4968, 16
        %v5203 = vor.u32 %v5200, %v5201
        %v5204 = vrot.slane %v5200, 4
        %v5206 = vshrl.u32 %v4969, 16
        %v5208 = vrot.slane %v5206, 7
        %v5209 = vshll.u32 %v4969, 16
        %v5211 = vor.u32 %v5208, %v5209
        %v5212 = vsel %vm4975, %v5204, %v5211
        %v5213 = vrot.slane %v5208, 4
        %v5215 = vshrl.u32 %v4970, 16
        %v5217 = vrot.slane %v5215, 7
        %v5218 = vshll.u32 %v4970, 16
        %v5220 = vor.u32 %v5217, %v5218
        %v5221 = vrot.slane %v5217, 4
        %v5223 = vshrl.u32 %v4971, 16
        %v5225 = vrot.slane %v5223, 7
        %v5226 = vshll.u32 %v4971, 16
        %v5228 = vor.u32 %v5225, %v5226
        %v5229 = vsel %vm4975, %v5221, %v5228
        %v5230 = vrot.slane %v5225, 4
        %v5232 = vshrl.u32 %v4972, 16
        %v5234 = vrot.slane %v5232, 7
        %v5235 = vshll.u32 %v4972, 16
        %v5237 = vor.u32 %v5234, %v5235
        %v5238 = vrot.slane %v5234, 4
        %v5240 = vshrl.u32 %v4973, 16
        %v5242 = vrot.slane %v5240, 7
        %v5243 = vshll.u32 %v4973, 16
        %v5245 = vor.u32 %v5242, %v5243
        %v5246 = vsel %vm4975, %v5238, %v5245
        %v5247 = vrot.slane %v5242, 4
        %vm5296 = vcmask 1043456
        %vm5297 = vmand %vm5296, %vm4828
        %v5298 = vld [vmem:[%s4776] sm:$0xf]
        %v5299 = vsel %vm5297, %v4982, %v5298
        %5300 = vst [vmem:[%s4776] sm:$0xf] %v5299
        %5301 = vst [vmem:[%s4776 + $0x4] sm:$0xf] %v4991
        %v5302 = vld [vmem:[%s4776 + $0x8] sm:$0x1]
        %v5303 = vsel %vm4779, %v4992, %v5302
        %5304 = vst [vmem:[%s4776 + $0x8] sm:$0x1] %v5303
        %v5305 = vld [vmem:[%s4776 + $0xc] sm:$0xf]
        %v5306 = vsel %vm5297, %v4999, %v5305
        %5307 = vst [vmem:[%s4776 + $0xc] sm:$0xf] %v5306
        %5308 = vst [vmem:[%s4776 + $0x10] sm:$0xf] %v5008
        %v5309 = vld [vmem:[%s4776 + $0x14] sm:$0x1]
        %v5310 = vsel %vm4779, %v5009, %v5309
        %5311 = vst [vmem:[%s4776 + $0x14] sm:$0x1] %v5310
        %v5312 = vld [vmem:[%s4776 + $0x18] sm:$0xf]
        %v5313 = vsel %vm5297, %v5016, %v5312
        %5314 = vst [vmem:[%s4776 + $0x18] sm:$0xf] %v5313
        %5315 = vst [vmem:[%s4776 + $0x1c] sm:$0xf] %v5025
        %v5316 = vld [vmem:[%s4776 + $0x20] sm:$0x1]
        %v5317 = vsel %vm4779, %v5026, %v5316
        %5318 = vst [vmem:[%s4776 + $0x20] sm:$0x1] %v5317
        %v5319 = vld [vmem:[%s4776 + $0x24] sm:$0xf]
        %v5320 = vsel %vm5297, %v5033, %v5319
        %5321 = vst [vmem:[%s4776 + $0x24] sm:$0xf] %v5320
        %5322 = vst [vmem:[%s4776 + $0x28] sm:$0xf] %v5042
        %v5323 = vld [vmem:[%s4776 + $0x2c] sm:$0x1]
        %v5324 = vsel %vm4779, %v5043, %v5323
        %5325 = vst [vmem:[%s4776 + $0x2c] sm:$0x1] %v5324
        %v5326 = vld [vmem:[%s4776 + $0x30] sm:$0xf]
        %v5327 = vsel %vm5297, %v5050, %v5326
        %5328 = vst [vmem:[%s4776 + $0x30] sm:$0xf] %v5327
        %5329 = vst [vmem:[%s4776 + $0x34] sm:$0xf] %v5059
        %v5330 = vld [vmem:[%s4776 + $0x38] sm:$0x1]
        %v5331 = vsel %vm4779, %v5060, %v5330
        %5332 = vst [vmem:[%s4776 + $0x38] sm:$0x1] %v5331
        %v5333 = vld [vmem:[%s4776 + $0x3c] sm:$0xf]
        %v5334 = vsel %vm5297, %v5067, %v5333
        %5335 = vst [vmem:[%s4776 + $0x3c] sm:$0xf] %v5334
        %5336 = vst [vmem:[%s4776 + $0x40] sm:$0xf] %v5076
        %v5337 = vld [vmem:[%s4776 + $0x44] sm:$0x1]
        %v5338 = vsel %vm4779, %v5077, %v5337
        %5339 = vst [vmem:[%s4776 + $0x44] sm:$0x1] %v5338
        %v5340 = vld [vmem:[%s4776 + $0x48] sm:$0xf]
        %v5341 = vsel %vm5297, %v5084, %v5340
        %5342 = vst [vmem:[%s4776 + $0x48] sm:$0xf] %v5341
        %5343 = vst [vmem:[%s4776 + $0x4c] sm:$0xf] %v5093
        %v5344 = vld [vmem:[%s4776 + $0x50] sm:$0x1]
        %v5345 = vsel %vm4779, %v5094, %v5344
        %5346 = vst [vmem:[%s4776 + $0x50] sm:$0x1] %v5345
        %v5347 = vld [vmem:[%s4776 + $0x54] sm:$0xf]
        %v5348 = vsel %vm5297, %v5101, %v5347
        %5349 = vst [vmem:[%s4776 + $0x54] sm:$0xf] %v5348
        %5350 = vst [vmem:[%s4776 + $0x58] sm:$0xf] %v5110
        %v5351 = vld [vmem:[%s4776 + $0x5c] sm:$0x1]
        %v5352 = vsel %vm4779, %v5111, %v5351
        %5353 = vst [vmem:[%s4776 + $0x5c] sm:$0x1] %v5352
        %v5354 = vld [vmem:[%s4776 + $0x60] sm:$0xf]
        %v5355 = vsel %vm5297, %v5118, %v5354
        %5356 = vst [vmem:[%s4776 + $0x60] sm:$0xf] %v5355
        %5357 = vst [vmem:[%s4776 + $0x64] sm:$0xf] %v5127
        %v5358 = vld [vmem:[%s4776 + $0x68] sm:$0x1]
        %v5359 = vsel %vm4779, %v5128, %v5358
        %5360 = vst [vmem:[%s4776 + $0x68] sm:$0x1] %v5359
        %v5361 = vld [vmem:[%s4776 + $0x6c] sm:$0xf]
        %v5362 = vsel %vm5297, %v5135, %v5361
        %5363 = vst [vmem:[%s4776 + $0x6c] sm:$0xf] %v5362
        %5364 = vst [vmem:[%s4776 + $0x70] sm:$0xf] %v5144
        %v5365 = vld [vmem:[%s4776 + $0x74] sm:$0x1]
        %v5366 = vsel %vm4779, %v5145, %v5365
        %5367 = vst [vmem:[%s4776 + $0x74] sm:$0x1] %v5366
        %v5368 = vld [vmem:[%s4776 + $0x78] sm:$0xf]
        %v5369 = vsel %vm5297, %v5152, %v5368
        %5370 = vst [vmem:[%s4776 + $0x78] sm:$0xf] %v5369
        %5371 = vst [vmem:[%s4776 + $0x7c] sm:$0xf] %v5161
        %v5372 = vld [vmem:[%s4776 + $0x80] sm:$0x1]
        %v5373 = vsel %vm4779, %v5162, %v5372
        %5374 = vst [vmem:[%s4776 + $0x80] sm:$0x1] %v5373
        %v5375 = vld [vmem:[%s4776 + $0x84] sm:$0xf]
        %v5376 = vsel %vm5297, %v5169, %v5375
        %5377 = vst [vmem:[%s4776 + $0x84] sm:$0xf] %v5376
        %5378 = vst [vmem:[%s4776 + $0x88] sm:$0xf] %v5178
        %v5379 = vld [vmem:[%s4776 + $0x8c] sm:$0x1]
        %v5380 = vsel %vm4779, %v5179, %v5379
        %5381 = vst [vmem:[%s4776 + $0x8c] sm:$0x1] %v5380
        %v5382 = vld [vmem:[%s4776 + $0x90] sm:$0xf]
        %v5383 = vsel %vm5297, %v5186, %v5382
        %5384 = vst [vmem:[%s4776 + $0x90] sm:$0xf] %v5383
        %5385 = vst [vmem:[%s4776 + $0x94] sm:$0xf] %v5195
        %v5386 = vld [vmem:[%s4776 + $0x98] sm:$0x1]
        %v5387 = vsel %vm4779, %v5196, %v5386
        %5388 = vst [vmem:[%s4776 + $0x98] sm:$0x1] %v5387
        %v5389 = vld [vmem:[%s4776 + $0x9c] sm:$0xf]
        %v5390 = vsel %vm5297, %v5203, %v5389
        %5391 = vst [vmem:[%s4776 + $0x9c] sm:$0xf] %v5390
        %5392 = vst [vmem:[%s4776 + $0xa0] sm:$0xf] %v5212
        %v5393 = vld [vmem:[%s4776 + $0xa4] sm:$0x1]
        %v5394 = vsel %vm4779, %v5213, %v5393
        %5395 = vst [vmem:[%s4776 + $0xa4] sm:$0x1] %v5394
        %v5396 = vld [vmem:[%s4776 + $0xa8] sm:$0xf]
        %v5397 = vsel %vm5297, %v5220, %v5396
        %5398 = vst [vmem:[%s4776 + $0xa8] sm:$0xf] %v5397
        %5399 = vst [vmem:[%s4776 + $0xac] sm:$0xf] %v5229
        %v5400 = vld [vmem:[%s4776 + $0xb0] sm:$0x1]
        %v5401 = vsel %vm4779, %v5230, %v5400
        %5402 = vst [vmem:[%s4776 + $0xb0] sm:$0x1] %v5401
        %v5403 = vld [vmem:[%s4776 + $0xb4] sm:$0xf]
        %v5404 = vsel %vm5297, %v5237, %v5403
        %5405 = vst [vmem:[%s4776 + $0xb4] sm:$0xf] %v5404
        %5406 = vst [vmem:[%s4776 + $0xb8] sm:$0xf] %v5246
        %v5407 = vld [vmem:[%s4776 + $0xbc] sm:$0x1]
        %v5408 = vsel %vm4779, %v5247, %v5407
        %5409 = vst [vmem:[%s4776 + $0xbc] sm:$0x1] %v5408
        %s5410 = sand.u32 %s75, 1
        %s5411 = scalar_lea.sflag [#allocation4], %s5410
        %s5412 = sand.u32 %s75, 1
        %s5413 = smul.addr %s5412, 216
        %s5414 = scalar_lea.vmem [#allocation7], %s5413
        // Predicated region
        $region37: #{tpu_custom_call.1} parent=27 // pred_check
          %p5415 = pneg %p85
        $region38: #{tpu_custom_call.1} parent=27 // pred_check_branch
          %5417 = sbr.rel (%p5415) target = $region40
        $region39: #{tpu_custom_call.1} parent=27 // pred_region
          %s5419 = ssub.s32 3456, 3456
          %5420 = vsyncadd %s5411, %s5419
          %s5421 = smul.addr %s20, 54
          %s5422 = smul.addr %s5421, 64
          %s5423 = scalar_lea.hbm %s2, %s5422
          %s5424 = sshll.u32 %s5414, 4
          %s5425 = int_to_ptr.vmem [resolvable:$true] %s5424
          %5430 = dma.vmem_to_hbm [thread:$0]  %s5425, 3456, %s5423, %s5411, 64, 64, 4
        $region40: #{tpu_custom_call.1} parent=27 // pred_fallthru
          _
      $region28: #{tpu_custom_call.1} parent=5 // pred_fallthru
        _
      %p5431 = scmp.le.s32.totalorder 2, %s15
      // Predicated region
      $region41: #{tpu_custom_call.1} parent=5 // pred_check
        %p5432 = pneg %p5431
      $region42: #{tpu_custom_call.1} parent=5 // pred_check_branch
        %5434 = sbr.rel (%p5432) target = $region44
      $region43: #{tpu_custom_call.1} parent=5 // pred_region
        %s5435 = ssub.s32 %s15, 2
        // Predicated region
        $region45: #{tpu_custom_call.1} parent=43 // pred_check
          %p5436 = pneg %p91
        $region46: #{tpu_custom_call.1} parent=43 // pred_check_branch
          %5438 = sbr.rel (%p5436) target = $region48
        $region47: #{tpu_custom_call.1} parent=43 // pred_region
          %s5439 = sand.u32 %s76, 1
          %s5440 = scalar_lea.sflag [#allocation4], %s5439
          %s5441 = sand.u32 %s76, 1
          %s5442 = smul.addr %s5441, 216
          %s5443 = scalar_lea.vmem [#allocation7], %s5442
          %5444 = dma.done %s5440, 3456
        $region48: #{tpu_custom_call.1} parent=43 // pred_fallthru
          _
      $region44: #{tpu_custom_call.1} parent=5 // pred_fallthru
        _
    $region6: #{tpu_custom_call.1} parent=1 // loop_footer
      %s19 = sadd.s32 1, %s15
    $region7: #{tpu_custom_call.1} parent=1 // loop_footer_branch
      %14 = sbr.rel target = $region3
    $region8: #{tpu_custom_call.1} parent=1 // loop_exit
      _
    %5445 = vsyncpa [#allocation3], 1
    %s5446 = scalar_lea.sflag [#allocation3], 1
    %5447 = vsyncpa %s5446, 1
    %5448 = vsyncpa [#allocation6], 1
    %5449 = vsyncpa [#allocation4], 1
    %s5450 = scalar_lea.sflag [#allocation4], 1
    %5451 = vsyncpa %s5450, 1

</llo_original>
